<compile_context>
chip_gen: v7x
topology: tpu7x:2x2x1
jax: 0.10.0
libtpu: 0.0.40
codegen_flags: <defaults>
</compile_context>

<pallas_src>
import functools

import jax
import jax.numpy as jnp
from jax.experimental import pallas as pl
from jax.experimental.pallas import tpu as pltpu

NEG_SLOPE = 0.2


def _resblock_kernel(x_ref, w1_ref, w2_ref, s1_ref, b1_ref, s2_ref, b2_ref,
                     mask_ref, o_ref, mid_ref, *, wp, margin):
    # x_ref   : (C, MG + S + MG) f32  margin-extended zero-padded input slab;
    #                                 flat index q = n*Hp*Wp + hp*Wp + wpos
    # w*_ref  : (9, C, C) f32         per-tap weights, w[k] = W[:, :, kh, kw], k = kh*3+kw
    # s*/b*   : (C, 1) f32            folded BN scale / shift (per channel, sublane axis)
    # mask_ref: (1, S) f32            1.0 at interior padded positions, 0.0 on the halo ring
    # o_ref   : (C, S) f32            output at padded positions (halo ring is garbage,
    #                                 sliced away by the wrapper)
    # mid_ref : VMEM (C, MG+S+MG) f32 slab scratch holding the conv1 activation
    C, s_ext = mid_ref.shape
    S = o_ref.shape[1]
    deltas = [(kh - 1) * wp + (kw - 1) for kh in range(3) for kw in range(3)]

    # ---- conv1: 9 lane-shifted taps, accumulated K=C matmuls (f32) ----
    residual = x_ref[:, margin:margin + S]          # delta == 0 tap == unpadded x
    acc1 = jnp.zeros((C, S), jnp.float32)
    for k, d in enumerate(deltas):
        tap = residual if d == 0 else x_ref[:, margin + d:margin + d + S]
        acc1 = acc1 + jnp.dot(w1_ref[k], tap, preferred_element_type=jnp.float32)

    # ---- bn1 (folded) + LeakyReLU(0.2); zero the 1-px halo ring with one mask mul ----
    act1 = acc1 * s1_ref[...] + b1_ref[...]
    act1 = jnp.where(act1 > 0, act1, NEG_SLOPE * act1)
    act1 = act1 * mask_ref[...]

    # stage conv1 activation into the slab scratch (margins zeroed, center lane-aligned)
    mid_ref[:, :margin] = jnp.zeros((C, margin), jnp.float32)
    mid_ref[:, margin + S:s_ext] = jnp.zeros((C, s_ext - margin - S), jnp.float32)
    mid_ref[:, margin:margin + S] = act1

    # ---- conv2: same 9 shifted taps, read back out of the slab ----
    acc2 = jnp.zeros((C, S), jnp.float32)
    for k, d in enumerate(deltas):
        acc2 = acc2 + jnp.dot(w2_ref[k], mid_ref[:, margin + d:margin + d + S],
                              preferred_element_type=jnp.float32)

    # ---- bn2 (folded) + LeakyReLU(0.2) + residual ----
    act2 = acc2 * s2_ref[...] + b2_ref[...]
    act2 = jnp.where(act2 > 0, act2, NEG_SLOPE * act2)
    o_ref[...] = (act2 + residual).astype(o_ref.dtype)


def prepare_resblock_params(w1_oihw, w2_oihw, scale1, shift1, scale2, shift2):
    """One-time preprocessing (hoisted out of the forward): OIHW conv weights ->
    per-tap (9, Cout, Cin) layout; folded BN scale/shift -> (C, 1) sublane vectors."""
    C = w1_oihw.shape[0]
    w1 = jnp.transpose(w1_oihw, (2, 3, 0, 1)).reshape(9, C, C).astype(jnp.float32)
    w2 = jnp.transpose(w2_oihw, (2, 3, 0, 1)).reshape(9, C, C).astype(jnp.float32)
    return (w1, w2,
            scale1.reshape(C, 1).astype(jnp.float32),
            shift1.reshape(C, 1).astype(jnp.float32),
            scale2.reshape(C, 1).astype(jnp.float32),
            shift2.reshape(C, 1).astype(jnp.float32))


@jax.jit
def resblock_forward(x_nchw, params):
    w1, w2, s1, b1, s2, b2 = params
    N, C, H, W = x_nchw.shape
    Hp, Wp = H + 2, W + 2
    S = N * Hp * Wp
    MG = -(-(Wp + 1) // 128) * 128        # lane-aligned margin, >= Wp + 1
    S_ext = S + 2 * MG

    # (N,C,H,W) -> zero-padded channel-major flat layout (C, S), then margin-extend.
    xpad = jnp.pad(x_nchw.astype(jnp.float32), ((0, 0), (0, 0), (1, 1), (1, 1)))
    xflat = jnp.transpose(xpad, (1, 0, 2, 3)).reshape(C, S)
    xslab = jnp.pad(xflat, ((0, 0), (MG, MG)))
    mask = jnp.pad(jnp.ones((N, H, W), jnp.float32),
                   ((0, 0), (1, 1), (1, 1))).reshape(1, S)

    kernel = functools.partial(_resblock_kernel, wp=Wp, margin=MG)

    out_flat = pl.pallas_call(
        kernel,
        out_shape=jax.ShapeDtypeStruct((C, S), jnp.float32),
        grid_spec=pltpu.PrefetchScalarGridSpec(
            num_scalar_prefetch=0,
            grid=(1,),                                  # whole batch in one step
            in_specs=[
                pl.BlockSpec((C, S_ext), lambda i: (0, 0)),
                pl.BlockSpec((9, C, C), lambda i: (0, 0, 0)),
                pl.BlockSpec((9, C, C), lambda i: (0, 0, 0)),
                pl.BlockSpec((C, 1), lambda i: (0, 0)),
                pl.BlockSpec((C, 1), lambda i: (0, 0)),
                pl.BlockSpec((C, 1), lambda i: (0, 0)),
                pl.BlockSpec((C, 1), lambda i: (0, 0)),
                pl.BlockSpec((1, S), lambda i: (0, 0)),
            ],
            out_specs=pl.BlockSpec((C, S), lambda i: (0, 0)),
            scratch_shapes=[pltpu.VMEM((C, S_ext), jnp.float32)],
        ),
        compiler_params=pltpu.CompilerParams(dimension_semantics=("arbitrary",)),
    )(xslab, w1, w2, s1, b1, s2, b2, mask)

    # drop the halo ring, restore NCHW
    out = out_flat.reshape(C, N, Hp, Wp)[:, :, 1:H + 1, 1:W + 1]
    return jnp.transpose(out, (1, 0, 2, 3)).astype(x_nchw.dtype)


def _reference_forward(x, w1, w2, scale1, shift1, scale2, shift2):
    """Pure-JAX f32 reference (lax conv, HIGHEST precision), NCHW / OIHW."""
    def conv(z, w):
        return jax.lax.conv_general_dilated(
            z, w, window_strides=(1, 1), padding=((1, 1), (1, 1)),
            dimension_numbers=("NCHW", "OIHW", "NCHW"),
            precision=jax.lax.Precision.HIGHEST)

    def lrelu(z):
        return jnp.where(z > 0, z, NEG_SLOPE * z)

    out = lrelu(conv(x, w1) * scale1[None, :, None, None] + shift1[None, :, None, None])
    out = lrelu(conv(out, w2) * scale2[None, :, None, None] + shift2[None, :, None, None])
    return out + x


if __name__ == "__main__":
    N, C, H, W = 2, 4, 16, 16  # residual add requires in_channels == out_channels

    key = jax.random.PRNGKey(0)
    kx, kw1, kw2, kg1, kb1, km1, kv1, kg2, kb2, km2, kv2 = jax.random.split(key, 11)

    x = jax.random.normal(kx, (N, C, H, W), jnp.float32)

    # conv weights (OIHW), no bias
    w1 = 0.1 * jax.random.normal(kw1, (C, C, 3, 3), jnp.float32)
    w2 = 0.1 * jax.random.normal(kw2, (C, C, 3, 3), jnp.float32)

    # BatchNorm params + running stats (deterministic, synthetic)
    eps = 1e-5
    gamma1 = jax.random.uniform(kg1, (C,), jnp.float32, 0.5, 1.5)
    beta1 = 0.1 * jax.random.normal(kb1, (C,), jnp.float32)
    mean1 = 0.1 * jax.random.normal(km1, (C,), jnp.float32)
    var1 = jax.random.uniform(kv1, (C,), jnp.float32, 0.5, 1.5)
    gamma2 = jax.random.uniform(kg2, (C,), jnp.float32, 0.5, 1.5)
    beta2 = 0.1 * jax.random.normal(kb2, (C,), jnp.float32)
    mean2 = 0.1 * jax.random.normal(km2, (C,), jnp.float32)
    var2 = jax.random.uniform(kv2, (C,), jnp.float32, 0.5, 1.5)

    # one-time preprocessing: fold inference-mode BN, repack conv weights
    scale1 = gamma1 / jnp.sqrt(var1 + eps)
    shift1 = beta1 - mean1 * scale1
    scale2 = gamma2 / jnp.sqrt(var2 + eps)
    shift2 = beta2 - mean2 * scale2
    params = prepare_resblock_params(w1, w2, scale1, shift1, scale2, shift2)

    out = resblock_forward(x, params)
    out = jax.block_until_ready(out)
    assert out.shape == (N, C, H, W)

    ref = _reference_forward(x, w1, w2, scale1, shift1, scale2, shift2)
    assert jnp.allclose(out, ref, atol=2e-2, rtol=2e-2), \
        float(jnp.max(jnp.abs(out - ref)))

    print("KERNEL_OK")
</pallas_src>

<mosaic_0001>
module attributes {stable_mosaic.version = 11 : i64} {
  func.func @_resblock_kernel(%arg0: i32, %arg1: memref<4x904xf32, #tpu.memory_space<vmem>>, %arg2: memref<9x4x4xf32, #tpu.memory_space<vmem>>, %arg3: memref<9x4x4xf32, #tpu.memory_space<vmem>>, %arg4: memref<4x1xf32, #tpu.memory_space<vmem>>, %arg5: memref<4x1xf32, #tpu.memory_space<vmem>>, %arg6: memref<4x1xf32, #tpu.memory_space<vmem>>, %arg7: memref<4x1xf32, #tpu.memory_space<vmem>>, %arg8: memref<1x648xf32, #tpu.memory_space<vmem>>, %arg9: memref<4x648xf32, #tpu.memory_space<vmem>>, %arg10: memref<4x904xf32, #tpu.memory_space<vmem>>) attributes {dimension_semantics = [#tpu.dimension_semantics<arbitrary>], iteration_bounds = array<i64: 1>, scalar_prefetch = 0 : i64, scratch_operands = 1 : i64, tpu.core_type = #tpu.core_type<tc>, window_params = [{pipeline_mode = #tpu.pipeline_mode<synchronous>, transform_indices = @transform_0, window_bounds = array<i64: 4, 904>}, {pipeline_mode = #tpu.pipeline_mode<synchronous>, transform_indices = @transform_1, window_bounds = array<i64: 9, 4, 4>}, {pipeline_mode = #tpu.pipeline_mode<synchronous>, transform_indices = @transform_2, window_bounds = array<i64: 9, 4, 4>}, {pipeline_mode = #tpu.pipeline_mode<synchronous>, transform_indices = @transform_3, window_bounds = array<i64: 4, 1>}, {pipeline_mode = #tpu.pipeline_mode<synchronous>, transform_indices = @transform_4, window_bounds = array<i64: 4, 1>}, {pipeline_mode = #tpu.pipeline_mode<synchronous>, transform_indices = @transform_5, window_bounds = array<i64: 4, 1>}, {pipeline_mode = #tpu.pipeline_mode<synchronous>, transform_indices = @transform_6, window_bounds = array<i64: 4, 1>}, {pipeline_mode = #tpu.pipeline_mode<synchronous>, transform_indices = @transform_7, window_bounds = array<i64: 1, 648>}, {pipeline_mode = #tpu.pipeline_mode<synchronous>, transform_indices = @transform_8, window_bounds = array<i64: 4, 648>}]} {
    %c0 = arith.constant 0 : index
    %c128 = arith.constant 128 : index
    %0 = vector.load %arg1[%c0, %c128] : memref<4x904xf32, #tpu.memory_space<vmem>>, vector<4x648xf32>
    %cst = arith.constant 0.000000e+00 : f32
    %1 = vector.broadcast %cst : f32 to vector<4x648xf32>
    %c0_0 = arith.constant 0 : index
    %c109 = arith.constant 109 : index
    %2 = vector.load %arg1[%c0_0, %c109] : memref<4x904xf32, #tpu.memory_space<vmem>>, vector<4x648xf32>
    %c0_1 = arith.constant 0 : index
    %c0_2 = arith.constant 0 : index
    %c0_3 = arith.constant 0 : index
    %3 = vector.load %arg2[%c0_1, %c0_2, %c0_3] : memref<9x4x4xf32, #tpu.memory_space<vmem>>, vector<1x4x4xf32>
    %4 = vector.shape_cast %3 : vector<1x4x4xf32> to vector<4x4xf32>
    %cst_4 = arith.constant dense<0.000000e+00> : vector<4x648xf32>
    %5 = tpu.matmul %4, %2, %cst_4 {dimension_numbers = #tpu.dot_dimension_numbers<[1], [0], [0], [1], [0, 0, 1, 1], [], []>} : vector<4x4xf32>, vector<4x648xf32>, vector<4x648xf32> -> vector<4x648xf32>
    %6 = arith.addf %1, %5 : vector<4x648xf32>
    %c0_5 = arith.constant 0 : index
    %c110 = arith.constant 110 : index
    %7 = vector.load %arg1[%c0_5, %c110] : memref<4x904xf32, #tpu.memory_space<vmem>>, vector<4x648xf32>
    %c1 = arith.constant 1 : index
    %c0_6 = arith.constant 0 : index
    %c0_7 = arith.constant 0 : index
    %8 = vector.load %arg2[%c1, %c0_6, %c0_7] : memref<9x4x4xf32, #tpu.memory_space<vmem>>, vector<1x4x4xf32>
    %9 = vector.shape_cast %8 : vector<1x4x4xf32> to vector<4x4xf32>
    %cst_8 = arith.constant dense<0.000000e+00> : vector<4x648xf32>
    %10 = tpu.matmul %9, %7, %cst_8 {dimension_numbers = #tpu.dot_dimension_numbers<[1], [0], [0], [1], [0, 0, 1, 1], [], []>} : vector<4x4xf32>, vector<4x648xf32>, vector<4x648xf32> -> vector<4x648xf32>
    %11 = arith.addf %6, %10 : vector<4x648xf32>
    %c0_9 = arith.constant 0 : index
    %c111 = arith.constant 111 : index
    %12 = vector.load %arg1[%c0_9, %c111] : memref<4x904xf32, #tpu.memory_space<vmem>>, vector<4x648xf32>
    %c2 = arith.constant 2 : index
    %c0_10 = arith.constant 0 : index
    %c0_11 = arith.constant 0 : index
    %13 = vector.load %arg2[%c2, %c0_10, %c0_11] : memref<9x4x4xf32, #tpu.memory_space<vmem>>, vector<1x4x4xf32>
    %14 = vector.shape_cast %13 : vector<1x4x4xf32> to vector<4x4xf32>
    %cst_12 = arith.constant dense<0.000000e+00> : vector<4x648xf32>
    %15 = tpu.matmul %14, %12, %cst_12 {dimension_numbers = #tpu.dot_dimension_numbers<[1], [0], [0], [1], [0, 0, 1, 1], [], []>} : vector<4x4xf32>, vector<4x648xf32>, vector<4x648xf32> -> vector<4x648xf32>
    %16 = arith.addf %11, %15 : vector<4x648xf32>
    %c0_13 = arith.constant 0 : index
    %c127 = arith.constant 127 : index
    %17 = vector.load %arg1[%c0_13, %c127] : memref<4x904xf32, #tpu.memory_space<vmem>>, vector<4x648xf32>
    %c3 = arith.constant 3 : index
    %c0_14 = arith.constant 0 : index
    %c0_15 = arith.constant 0 : index
    %18 = vector.load %arg2[%c3, %c0_14, %c0_15] : memref<9x4x4xf32, #tpu.memory_space<vmem>>, vector<1x4x4xf32>
    %19 = vector.shape_cast %18 : vector<1x4x4xf32> to vector<4x4xf32>
    %cst_16 = arith.constant dense<0.000000e+00> : vector<4x648xf32>
    %20 = tpu.matmul %19, %17, %cst_16 {dimension_numbers = #tpu.dot_dimension_numbers<[1], [0], [0], [1], [0, 0, 1, 1], [], []>} : vector<4x4xf32>, vector<4x648xf32>, vector<4x648xf32> -> vector<4x648xf32>
    %21 = arith.addf %16, %20 : vector<4x648xf32>
    %c4 = arith.constant 4 : index
    %c0_17 = arith.constant 0 : index
    %c0_18 = arith.constant 0 : index
    %22 = vector.load %arg2[%c4, %c0_17, %c0_18] : memref<9x4x4xf32, #tpu.memory_space<vmem>>, vector<1x4x4xf32>
    %23 = vector.shape_cast %22 : vector<1x4x4xf32> to vector<4x4xf32>
    %cst_19 = arith.constant dense<0.000000e+00> : vector<4x648xf32>
    %24 = tpu.matmul %23, %0, %cst_19 {dimension_numbers = #tpu.dot_dimension_numbers<[1], [0], [0], [1], [0, 0, 1, 1], [], []>} : vector<4x4xf32>, vector<4x648xf32>, vector<4x648xf32> -> vector<4x648xf32>
    %25 = arith.addf %21, %24 : vector<4x648xf32>
    %c0_20 = arith.constant 0 : index
    %c129 = arith.constant 129 : index
    %26 = vector.load %arg1[%c0_20, %c129] : memref<4x904xf32, #tpu.memory_space<vmem>>, vector<4x648xf32>
    %c5 = arith.constant 5 : index
    %c0_21 = arith.constant 0 : index
    %c0_22 = arith.constant 0 : index
    %27 = vector.load %arg2[%c5, %c0_21, %c0_22] : memref<9x4x4xf32, #tpu.memory_space<vmem>>, vector<1x4x4xf32>
    %28 = vector.shape_cast %27 : vector<1x4x4xf32> to vector<4x4xf32>
    %cst_23 = arith.constant dense<0.000000e+00> : vector<4x648xf32>
    %29 = tpu.matmul %28, %26, %cst_23 {dimension_numbers = #tpu.dot_dimension_numbers<[1], [0], [0], [1], [0, 0, 1, 1], [], []>} : vector<4x4xf32>, vector<4x648xf32>, vector<4x648xf32> -> vector<4x648xf32>
    %30 = arith.addf %25, %29 : vector<4x648xf32>
    %c0_24 = arith.constant 0 : index
    %c145 = arith.constant 145 : index
    %31 = vector.load %arg1[%c0_24, %c145] : memref<4x904xf32, #tpu.memory_space<vmem>>, vector<4x648xf32>
    %c6 = arith.constant 6 : index
    %c0_25 = arith.constant 0 : index
    %c0_26 = arith.constant 0 : index
    %32 = vector.load %arg2[%c6, %c0_25, %c0_26] : memref<9x4x4xf32, #tpu.memory_space<vmem>>, vector<1x4x4xf32>
    %33 = vector.shape_cast %32 : vector<1x4x4xf32> to vector<4x4xf32>
    %cst_27 = arith.constant dense<0.000000e+00> : vector<4x648xf32>
    %34 = tpu.matmul %33, %31, %cst_27 {dimension_numbers = #tpu.dot_dimension_numbers<[1], [0], [0], [1], [0, 0, 1, 1], [], []>} : vector<4x4xf32>, vector<4x648xf32>, vector<4x648xf32> -> vector<4x648xf32>
    %35 = arith.addf %30, %34 : vector<4x648xf32>
    %c0_28 = arith.constant 0 : index
    %c146 = arith.constant 146 : index
    %36 = vector.load %arg1[%c0_28, %c146] : memref<4x904xf32, #tpu.memory_space<vmem>>, vector<4x648xf32>
    %c7 = arith.constant 7 : index
    %c0_29 = arith.constant 0 : index
    %c0_30 = arith.constant 0 : index
    %37 = vector.load %arg2[%c7, %c0_29, %c0_30] : memref<9x4x4xf32, #tpu.memory_space<vmem>>, vector<1x4x4xf32>
    %38 = vector.shape_cast %37 : vector<1x4x4xf32> to vector<4x4xf32>
    %cst_31 = arith.constant dense<0.000000e+00> : vector<4x648xf32>
    %39 = tpu.matmul %38, %36, %cst_31 {dimension_numbers = #tpu.dot_dimension_numbers<[1], [0], [0], [1], [0, 0, 1, 1], [], []>} : vector<4x4xf32>, vector<4x648xf32>, vector<4x648xf32> -> vector<4x648xf32>
    %40 = arith.addf %35, %39 : vector<4x648xf32>
    %c0_32 = arith.constant 0 : index
    %c147 = arith.constant 147 : index
    %41 = vector.load %arg1[%c0_32, %c147] : memref<4x904xf32, #tpu.memory_space<vmem>>, vector<4x648xf32>
    %c8 = arith.constant 8 : index
    %c0_33 = arith.constant 0 : index
    %c0_34 = arith.constant 0 : index
    %42 = vector.load %arg2[%c8, %c0_33, %c0_34] : memref<9x4x4xf32, #tpu.memory_space<vmem>>, vector<1x4x4xf32>
    %43 = vector.shape_cast %42 : vector<1x4x4xf32> to vector<4x4xf32>
    %cst_35 = arith.constant dense<0.000000e+00> : vector<4x648xf32>
    %44 = tpu.matmul %43, %41, %cst_35 {dimension_numbers = #tpu.dot_dimension_numbers<[1], [0], [0], [1], [0, 0, 1, 1], [], []>} : vector<4x4xf32>, vector<4x648xf32>, vector<4x648xf32> -> vector<4x648xf32>
    %45 = arith.addf %40, %44 : vector<4x648xf32>
    %c0_36 = arith.constant 0 : index
    %c0_37 = arith.constant 0 : index
    %46 = vector.load %arg4[%c0_36, %c0_37] : memref<4x1xf32, #tpu.memory_space<vmem>>, vector<4x1xf32>
    %47 = vector.broadcast %46 : vector<4x1xf32> to vector<4x648xf32>
    %48 = arith.mulf %45, %47 : vector<4x648xf32>
    %c0_38 = arith.constant 0 : index
    %c0_39 = arith.constant 0 : index
    %49 = vector.load %arg5[%c0_38, %c0_39] : memref<4x1xf32, #tpu.memory_space<vmem>>, vector<4x1xf32>
    %50 = vector.broadcast %49 : vector<4x1xf32> to vector<4x648xf32>
    %51 = arith.addf %48, %50 : vector<4x648xf32>
    %cst_40 = arith.constant 0.000000e+00 : f32
    %52 = vector.broadcast %cst_40 : f32 to vector<4x648xf32>
    %53 = arith.cmpf ogt, %51, %52 : vector<4x648xf32>
    %cst_41 = arith.constant 2.000000e-01 : f32
    %54 = vector.broadcast %cst_41 : f32 to vector<4x648xf32>
    %55 = arith.mulf %54, %51 : vector<4x648xf32>
    %56 = arith.select %53, %51, %55 : vector<4x648xi1>, vector<4x648xf32>
    %c0_42 = arith.constant 0 : index
    %c0_43 = arith.constant 0 : index
    %57 = vector.load %arg8[%c0_42, %c0_43] : memref<1x648xf32, #tpu.memory_space<vmem>>, vector<1x648xf32>
    %58 = vector.broadcast %57 : vector<1x648xf32> to vector<4x648xf32>
    %59 = arith.mulf %56, %58 : vector<4x648xf32>
    %cst_44 = arith.constant 0.000000e+00 : f32
    %60 = vector.broadcast %cst_44 : f32 to vector<4x128xf32>
    %c0_45 = arith.constant 0 : index
    %c0_46 = arith.constant 0 : index
    %61 = vector.load %arg10[%c0_45, %c0_46] : memref<4x904xf32, #tpu.memory_space<vmem>>, vector<4x128xf32>
    tpu.vector_store %arg10[%c0_45, %c0_46], %60 {strides = array<i32>} : memref<4x904xf32, #tpu.memory_space<vmem>>, vector<4x128xf32>,
    %cst_47 = arith.constant 0.000000e+00 : f32
    %62 = vector.broadcast %cst_47 : f32 to vector<4x128xf32>
    %c0_48 = arith.constant 0 : index
    %c776 = arith.constant 776 : index
    %63 = vector.load %arg10[%c0_48, %c776] : memref<4x904xf32, #tpu.memory_space<vmem>>, vector<4x128xf32>
    tpu.vector_store %arg10[%c0_48, %c776], %62 {strides = array<i32>} : memref<4x904xf32, #tpu.memory_space<vmem>>, vector<4x128xf32>,
    %c0_49 = arith.constant 0 : index
    %c128_50 = arith.constant 128 : index
    %64 = vector.load %arg10[%c0_49, %c128_50] : memref<4x904xf32, #tpu.memory_space<vmem>>, vector<4x648xf32>
    tpu.vector_store %arg10[%c0_49, %c128_50], %59 {strides = array<i32>} : memref<4x904xf32, #tpu.memory_space<vmem>>, vector<4x648xf32>,
    %cst_51 = arith.constant 0.000000e+00 : f32
    %65 = vector.broadcast %cst_51 : f32 to vector<4x648xf32>
    %c0_52 = arith.constant 0 : index
    %c0_53 = arith.constant 0 : index
    %c0_54 = arith.constant 0 : index
    %66 = vector.load %arg3[%c0_52, %c0_53, %c0_54] : memref<9x4x4xf32, #tpu.memory_space<vmem>>, vector<1x4x4xf32>
    %67 = vector.shape_cast %66 : vector<1x4x4xf32> to vector<4x4xf32>
    %c0_55 = arith.constant 0 : index
    %c109_56 = arith.constant 109 : index
    %68 = vector.load %arg10[%c0_55, %c109_56] : memref<4x904xf32, #tpu.memory_space<vmem>>, vector<4x648xf32>
    %cst_57 = arith.constant dense<0.000000e+00> : vector<4x648xf32>
    %69 = tpu.matmul %67, %68, %cst_57 {dimension_numbers = #tpu.dot_dimension_numbers<[1], [0], [0], [1], [0, 0, 1, 1], [], []>} : vector<4x4xf32>, vector<4x648xf32>, vector<4x648xf32> -> vector<4x648xf32>
    %70 = arith.addf %65, %69 : vector<4x648xf32>
    %c1_58 = arith.constant 1 : index
    %c0_59 = arith.constant 0 : index
    %c0_60 = arith.constant 0 : index
    %71 = vector.load %arg3[%c1_58, %c0_59, %c0_60] : memref<9x4x4xf32, #tpu.memory_space<vmem>>, vector<1x4x4xf32>
    %72 = vector.shape_cast %71 : vector<1x4x4xf32> to vector<4x4xf32>
    %c0_61 = arith.constant 0 : index
    %c110_62 = arith.constant 110 : index
    %73 = vector.load %arg10[%c0_61, %c110_62] : memref<4x904xf32, #tpu.memory_space<vmem>>, vector<4x648xf32>
    %cst_63 = arith.constant dense<0.000000e+00> : vector<4x648xf32>
    %74 = tpu.matmul %72, %73, %cst_63 {dimension_numbers = #tpu.dot_dimension_numbers<[1], [0], [0], [1], [0, 0, 1, 1], [], []>} : vector<4x4xf32>, vector<4x648xf32>, vector<4x648xf32> -> vector<4x648xf32>
    %75 = arith.addf %70, %74 : vector<4x648xf32>
    %c2_64 = arith.constant 2 : index
    %c0_65 = arith.constant 0 : index
    %c0_66 = arith.constant 0 : index
    %76 = vector.load %arg3[%c2_64, %c0_65, %c0_66] : memref<9x4x4xf32, #tpu.memory_space<vmem>>, vector<1x4x4xf32>
    %77 = vector.shape_cast %76 : vector<1x4x4xf32> to vector<4x4xf32>
    %c0_67 = arith.constant 0 : index
    %c111_68 = arith.constant 111 : index
    %78 = vector.load %arg10[%c0_67, %c111_68] : memref<4x904xf32, #tpu.memory_space<vmem>>, vector<4x648xf32>
    %cst_69 = arith.constant dense<0.000000e+00> : vector<4x648xf32>
    %79 = tpu.matmul %77, %78, %cst_69 {dimension_numbers = #tpu.dot_dimension_numbers<[1], [0], [0], [1], [0, 0, 1, 1], [], []>} : vector<4x4xf32>, vector<4x648xf32>, vector<4x648xf32> -> vector<4x648xf32>
    %80 = arith.addf %75, %79 : vector<4x648xf32>
    %c3_70 = arith.constant 3 : index
    %c0_71 = arith.constant 0 : index
    %c0_72 = arith.constant 0 : index
    %81 = vector.load %arg3[%c3_70, %c0_71, %c0_72] : memref<9x4x4xf32, #tpu.memory_space<vmem>>, vector<1x4x4xf32>
    %82 = vector.shape_cast %81 : vector<1x4x4xf32> to vector<4x4xf32>
    %c0_73 = arith.constant 0 : index
    %c127_74 = arith.constant 127 : index
    %83 = vector.load %arg10[%c0_73, %c127_74] : memref<4x904xf32, #tpu.memory_space<vmem>>, vector<4x648xf32>
    %cst_75 = arith.constant dense<0.000000e+00> : vector<4x648xf32>
    %84 = tpu.matmul %82, %83, %cst_75 {dimension_numbers = #tpu.dot_dimension_numbers<[1], [0], [0], [1], [0, 0, 1, 1], [], []>} : vector<4x4xf32>, vector<4x648xf32>, vector<4x648xf32> -> vector<4x648xf32>
    %85 = arith.addf %80, %84 : vector<4x648xf32>
    %c4_76 = arith.constant 4 : index
    %c0_77 = arith.constant 0 : index
    %c0_78 = arith.constant 0 : index
    %86 = vector.load %arg3[%c4_76, %c0_77, %c0_78] : memref<9x4x4xf32, #tpu.memory_space<vmem>>, vector<1x4x4xf32>
    %87 = vector.shape_cast %86 : vector<1x4x4xf32> to vector<4x4xf32>
    %c0_79 = arith.constant 0 : index
    %c128_80 = arith.constant 128 : index
    %88 = vector.load %arg10[%c0_79, %c128_80] : memref<4x904xf32, #tpu.memory_space<vmem>>, vector<4x648xf32>
    %cst_81 = arith.constant dense<0.000000e+00> : vector<4x648xf32>
    %89 = tpu.matmul %87, %88, %cst_81 {dimension_numbers = #tpu.dot_dimension_numbers<[1], [0], [0], [1], [0, 0, 1, 1], [], []>} : vector<4x4xf32>, vector<4x648xf32>, vector<4x648xf32> -> vector<4x648xf32>
    %90 = arith.addf %85, %89 : vector<4x648xf32>
    %c5_82 = arith.constant 5 : index
    %c0_83 = arith.constant 0 : index
    %c0_84 = arith.constant 0 : index
    %91 = vector.load %arg3[%c5_82, %c0_83, %c0_84] : memref<9x4x4xf32, #tpu.memory_space<vmem>>, vector<1x4x4xf32>
    %92 = vector.shape_cast %91 : vector<1x4x4xf32> to vector<4x4xf32>
    %c0_85 = arith.constant 0 : index
    %c129_86 = arith.constant 129 : index
    %93 = vector.load %arg10[%c0_85, %c129_86] : memref<4x904xf32, #tpu.memory_space<vmem>>, vector<4x648xf32>
    %cst_87 = arith.constant dense<0.000000e+00> : vector<4x648xf32>
    %94 = tpu.matmul %92, %93, %cst_87 {dimension_numbers = #tpu.dot_dimension_numbers<[1], [0], [0], [1], [0, 0, 1, 1], [], []>} : vector<4x4xf32>, vector<4x648xf32>, vector<4x648xf32> -> vector<4x648xf32>
    %95 = arith.addf %90, %94 : vector<4x648xf32>
    %c6_88 = arith.constant 6 : index
    %c0_89 = arith.constant 0 : index
    %c0_90 = arith.constant 0 : index
    %96 = vector.load %arg3[%c6_88, %c0_89, %c0_90] : memref<9x4x4xf32, #tpu.memory_space<vmem>>, vector<1x4x4xf32>
    %97 = vector.shape_cast %96 : vector<1x4x4xf32> to vector<4x4xf32>
    %c0_91 = arith.constant 0 : index
    %c145_92 = arith.constant 145 : index
    %98 = vector.load %arg10[%c0_91, %c145_92] : memref<4x904xf32, #tpu.memory_space<vmem>>, vector<4x648xf32>
    %cst_93 = arith.constant dense<0.000000e+00> : vector<4x648xf32>
    %99 = tpu.matmul %97, %98, %cst_93 {dimension_numbers = #tpu.dot_dimension_numbers<[1], [0], [0], [1], [0, 0, 1, 1], [], []>} : vector<4x4xf32>, vector<4x648xf32>, vector<4x648xf32> -> vector<4x648xf32>
    %100 = arith.addf %95, %99 : vector<4x648xf32>
    %c7_94 = arith.constant 7 : index
    %c0_95 = arith.constant 0 : index
    %c0_96 = arith.constant 0 : index
    %101 = vector.load %arg3[%c7_94, %c0_95, %c0_96] : memref<9x4x4xf32, #tpu.memory_space<vmem>>, vector<1x4x4xf32>
    %102 = vector.shape_cast %101 : vector<1x4x4xf32> to vector<4x4xf32>
    %c0_97 = arith.constant 0 : index
    %c146_98 = arith.constant 146 : index
    %103 = vector.load %arg10[%c0_97, %c146_98] : memref<4x904xf32, #tpu.memory_space<vmem>>, vector<4x648xf32>
    %cst_99 = arith.constant dense<0.000000e+00> : vector<4x648xf32>
    %104 = tpu.matmul %102, %103, %cst_99 {dimension_numbers = #tpu.dot_dimension_numbers<[1], [0], [0], [1], [0, 0, 1, 1], [], []>} : vector<4x4xf32>, vector<4x648xf32>, vector<4x648xf32> -> vector<4x648xf32>
    %105 = arith.addf %100, %104 : vector<4x648xf32>
    %c8_100 = arith.constant 8 : index
    %c0_101 = arith.constant 0 : index
    %c0_102 = arith.constant 0 : index
    %106 = vector.load %arg3[%c8_100, %c0_101, %c0_102] : memref<9x4x4xf32, #tpu.memory_space<vmem>>, vector<1x4x4xf32>
    %107 = vector.shape_cast %106 : vector<1x4x4xf32> to vector<4x4xf32>
    %c0_103 = arith.constant 0 : index
    %c147_104 = arith.constant 147 : index
    %108 = vector.load %arg10[%c0_103, %c147_104] : memref<4x904xf32, #tpu.memory_space<vmem>>, vector<4x648xf32>
    %cst_105 = arith.constant dense<0.000000e+00> : vector<4x648xf32>
    %109 = tpu.matmul %107, %108, %cst_105 {dimension_numbers = #tpu.dot_dimension_numbers<[1], [0], [0], [1], [0, 0, 1, 1], [], []>} : vector<4x4xf32>, vector<4x648xf32>, vector<4x648xf32> -> vector<4x648xf32>
    %110 = arith.addf %105, %109 : vector<4x648xf32>
    %c0_106 = arith.constant 0 : index
    %c0_107 = arith.constant 0 : index
    %111 = vector.load %arg6[%c0_106, %c0_107] : memref<4x1xf32, #tpu.memory_space<vmem>>, vector<4x1xf32>
    %112 = vector.broadcast %111 : vector<4x1xf32> to vector<4x648xf32>
    %113 = arith.mulf %110, %112 : vector<4x648xf32>
    %c0_108 = arith.constant 0 : index
    %c0_109 = arith.constant 0 : index
    %114 = vector.load %arg7[%c0_108, %c0_109] : memref<4x1xf32, #tpu.memory_space<vmem>>, vector<4x1xf32>
    %115 = vector.broadcast %114 : vector<4x1xf32> to vector<4x648xf32>
    %116 = arith.addf %113, %115 : vector<4x648xf32>
    %cst_110 = arith.constant 0.000000e+00 : f32
    %117 = vector.broadcast %cst_110 : f32 to vector<4x648xf32>
    %118 = arith.cmpf ogt, %116, %117 : vector<4x648xf32>
    %cst_111 = arith.constant 2.000000e-01 : f32
    %119 = vector.broadcast %cst_111 : f32 to vector<4x648xf32>
    %120 = arith.mulf %119, %116 : vector<4x648xf32>
    %121 = arith.select %118, %116, %120 : vector<4x648xi1>, vector<4x648xf32>
    %122 = arith.addf %121, %0 : vector<4x648xf32>
    %c0_112 = arith.constant 0 : index
    %c0_113 = arith.constant 0 : index
    %123 = vector.load %arg9[%c0_112, %c0_113] : memref<4x648xf32, #tpu.memory_space<vmem>>, vector<4x648xf32>
    tpu.vector_store %arg9[%c0_112, %c0_113], %122 {strides = array<i32>} : memref<4x648xf32, #tpu.memory_space<vmem>>, vector<4x648xf32>,
    return
  }
  func.func @transform_0(%arg0: i32) -> (i32, i32) {
    %c0_i32 = arith.constant 0 : i32
    %c0_i32_0 = arith.constant 0 : i32
    %c0_i32_1 = arith.constant 0 : i32
    return %c0_i32, %c0_i32_0 : i32, i32
  }
  func.func @transform_1(%arg0: i32) -> (i32, i32, i32) {
    %c0_i32 = arith.constant 0 : i32
    %c0_i32_0 = arith.constant 0 : i32
    %c0_i32_1 = arith.constant 0 : i32
    %c0_i32_2 = arith.constant 0 : i32
    return %c0_i32, %c0_i32_0, %c0_i32_1 : i32, i32, i32
  }
  func.func @transform_2(%arg0: i32) -> (i32, i32, i32) {
    %c0_i32 = arith.constant 0 : i32
    %c0_i32_0 = arith.constant 0 : i32
    %c0_i32_1 = arith.constant 0 : i32
    %c0_i32_2 = arith.constant 0 : i32
    return %c0_i32, %c0_i32_0, %c0_i32_1 : i32, i32, i32
  }
  func.func @transform_3(%arg0: i32) -> (i32, i32) {
    %c0_i32 = arith.constant 0 : i32
    %c0_i32_0 = arith.constant 0 : i32
    %c0_i32_1 = arith.constant 0 : i32
    return %c0_i32, %c0_i32_0 : i32, i32
  }
  func.func @transform_4(%arg0: i32) -> (i32, i32) {
    %c0_i32 = arith.constant 0 : i32
    %c0_i32_0 = arith.constant 0 : i32
    %c0_i32_1 = arith.constant 0 : i32
    return %c0_i32, %c0_i32_0 : i32, i32
  }
  func.func @transform_5(%arg0: i32) -> (i32, i32) {
    %c0_i32 = arith.constant 0 : i32
    %c0_i32_0 = arith.constant 0 : i32
    %c0_i32_1 = arith.constant 0 : i32
    return %c0_i32, %c0_i32_0 : i32, i32
  }
  func.func @transform_6(%arg0: i32) -> (i32, i32) {
    %c0_i32 = arith.constant 0 : i32
    %c0_i32_0 = arith.constant 0 : i32
    %c0_i32_1 = arith.constant 0 : i32
    return %c0_i32, %c0_i32_0 : i32, i32
  }
  func.func @transform_7(%arg0: i32) -> (i32, i32) {
    %c0_i32 = arith.constant 0 : i32
    %c0_i32_0 = arith.constant 0 : i32
    %c0_i32_1 = arith.constant 0 : i32
    return %c0_i32, %c0_i32_0 : i32, i32
  }
  func.func @transform_8(%arg0: i32) -> (i32, i32) {
    %c0_i32 = arith.constant 0 : i32
    %c0_i32_0 = arith.constant 0 : i32
    %c0_i32_1 = arith.constant 0 : i32
    return %c0_i32, %c0_i32_0 : i32, i32
  }
}

</mosaic_0001>

<llo_original>
// kernel: resblock_forward.1
$region0: #{resblock_forward.1}
  #allocation0 [shape = 'u32[]', space=smem, size = 0x4, offset = 0x4, fixed_abs, tag = 'smem constant byte address 0x4 - core index']
  #allocation1 [shape = 'u32[144,128]{1,0:T(1,128)}', space=vmem, size = 0x12000, scoped, tag = 'internal scratch']
  #allocation2 [shape = 'f32[4,904]{1,0:T(4,128)}', space=vmem, size = 0x4000, scoped, tag = 'scratch operand']
  %s0 = inlined_call_operand.vmem [shape: f32[4,904], index: 0, kind: input, shape index: {}]
  %s1 = inlined_call_operand.vmem [shape: f32[9,4,4], index: 1, kind: input, shape index: {}]
  %s2 = inlined_call_operand.vmem [shape: f32[9,4,4], index: 2, kind: input, shape index: {}]
  %s3 = inlined_call_operand.vmem [shape: f32[4,1], index: 3, kind: input, shape index: {}]
  %s4 = inlined_call_operand.vmem [shape: f32[4,1], index: 4, kind: input, shape index: {}]
  %s5 = inlined_call_operand.vmem [shape: f32[4,1], index: 5, kind: input, shape index: {}]
  %s6 = inlined_call_operand.vmem [shape: f32[4,1], index: 6, kind: input, shape index: {}]
  %s7 = inlined_call_operand.vmem [shape: f32[1,648], index: 7, kind: input, shape index: {}]
  %s8 = inlined_call_operand.vmem [shape: f32[4,648], index: 8, kind: output, shape index: {}]
  %s9 = sld [smem:[#allocation0]]
  $region42: #{resblock_forward.1} parent=0
    _
  %s11 = ssub.s32 1, %s9
  %s12 = scalar_select 0, %s11, %s9
  // Predicated region
  $region2: #{resblock_forward.1} parent=0 // pred_check
    _
  $region3: #{resblock_forward.1} parent=0 // pred_check_branch
    %14 = sbr.rel (0) target = $region5
  $region4: #{resblock_forward.1} parent=0 // pred_region
    _
  $region5: #{resblock_forward.1} parent=0 // pred_fallthru
    _
  // Predicated region
  $region6: #{resblock_forward.1} parent=0 // pred_check
    _
  $region7: #{resblock_forward.1} parent=0 // pred_check_branch
    %16 = sbr.rel (0) target = $region9
  $region8: #{resblock_forward.1} parent=0 // pred_region
    _
  $region9: #{resblock_forward.1} parent=0 // pred_fallthru
    _
  // Predicated region
  $region10: #{resblock_forward.1} parent=0 // pred_check
    _
  $region11: #{resblock_forward.1} parent=0 // pred_check_branch
    %18 = sbr.rel (0) target = $region13
  $region12: #{resblock_forward.1} parent=0 // pred_region
    _
  $region13: #{resblock_forward.1} parent=0 // pred_fallthru
    _
  // Predicated region
  $region14: #{resblock_forward.1} parent=0 // pred_check
    _
  $region15: #{resblock_forward.1} parent=0 // pred_check_branch
    %20 = sbr.rel (0) target = $region17
  $region16: #{resblock_forward.1} parent=0 // pred_region
    _
  $region17: #{resblock_forward.1} parent=0 // pred_fallthru
    _
  // Predicated region
  $region18: #{resblock_forward.1} parent=0 // pred_check
    _
  $region19: #{resblock_forward.1} parent=0 // pred_check_branch
    %22 = sbr.rel (0) target = $region21
  $region20: #{resblock_forward.1} parent=0 // pred_region
    _
  $region21: #{resblock_forward.1} parent=0 // pred_fallthru
    _
  // Predicated region
  $region22: #{resblock_forward.1} parent=0 // pred_check
    _
  $region23: #{resblock_forward.1} parent=0 // pred_check_branch
    %24 = sbr.rel (0) target = $region25
  $region24: #{resblock_forward.1} parent=0 // pred_region
    _
  $region25: #{resblock_forward.1} parent=0 // pred_fallthru
    _
  // Predicated region
  $region26: #{resblock_forward.1} parent=0 // pred_check
    _
  $region27: #{resblock_forward.1} parent=0 // pred_check_branch
    %26 = sbr.rel (0) target = $region29
  $region28: #{resblock_forward.1} parent=0 // pred_region
    _
  $region29: #{resblock_forward.1} parent=0 // pred_fallthru
    _
  // Predicated region
  $region30: #{resblock_forward.1} parent=0 // pred_check
    _
  $region31: #{resblock_forward.1} parent=0 // pred_check_branch
    %28 = sbr.rel (0) target = $region33
  $region32: #{resblock_forward.1} parent=0 // pred_region
    _
  $region33: #{resblock_forward.1} parent=0 // pred_fallthru
    _
  %v29 = vld [vmem:[%s0 + $0x4] sm:$0xff]
  %v30 = vld [vmem:[%s0 + $0xc] sm:$0xff]
  %v31 = vld [vmem:[%s0 + $0x14] sm:$0xff]
  %v32 = vld [vmem:[%s0] sm:$0xff]
  %v33 = vld [vmem:[%s0 + $0x8] sm:$0xff]
  %v34 = vld [vmem:[%s0 + $0x10] sm:$0xff]
  %v35 = vld [vmem:[%s1] sm:$0xf]
  %s36 = scalar_lea.vmem %s1, 4
  %v37 = vld [vmem:[%s36] sm:$0xf]
  %v41 = vcombine.high %v32, %v32
  %v42 = vcombine.high %v33, %v33
  %v43 = vcombine.high %v34, %v34
  %44 = vrot.lane.b32.xlu0 %v32, 18
  %v45 = vpop.permute.xlu0 %44
  %46 = vrot.lane.b32.xlu0 %v41, 18
  %v47 = vpop.permute.xlu0 %46
  %48 = vrot.lane.b32.xlu0 %v33, 18
  %v49 = vpop.permute.xlu0 %48
  %50 = vrot.lane.b32.xlu0 %v42, 18
  %v51 = vpop.permute.xlu0 %50
  %52 = vrot.lane.b32.xlu0 %v34, 18
  %v53 = vpop.permute.xlu0 %52
  %54 = vrot.lane.b32.xlu0 %v43, 18
  %v55 = vpop.permute.xlu0 %54
  %vm56 = vcmask 146432
  %v57 = vsel %vm56, %v45, %v47
  %v58 = vsel %vm56, %v47, %v49
  %v59 = vsel %vm56, %v49, %v51
  %v60 = vsel %vm56, %v51, %v53
  %v61 = vsel %vm56, %v53, %v55
  %vm62 = vcmask 31744
  %v64 = vsel %vm62, %v37, 0
  %vm66 = vcmask 1043456
  %v67 = vsel %vm66, %v57, 0
  %v69 = vsel %vm66, %v58, 0
  %v71 = vsel %vm66, %v59, 0
  %v73 = vsel %vm66, %v60, 0
  %v75 = vsel %vm66, %v61, 0
  %v77 = vsel %vm66, %v55, 0
  %79 = vmatprep.subr.mxu0 %v69
  %80 = vmatpush1.msra.mxu0 %v67
  %81 = vmatprep.subr.mxu0 0.0
  %82 = vmatpush1.msra.mxu0 0.0
  %83 = vmatprep.subr.mxu0 0.0
  %84 = vmatpush1.msra.mxu0 0.0
  %85 = vmatprep.subr.mxu0 0.0
  %86 = vmatpush1.msra.mxu0 0.0
  %87 = vmatprep.subr.mxu0 0.0
  %88 = vmatpush1.msra.mxu0 0.0
  %89 = vmatprep.subr.mxu0 0.0
  %90 = vmatpush1.msra.mxu0 0.0
  %91 = vmatprep.subr.mxu0 0.0
  %92 = vmatpush1.msra.mxu0 0.0
  %93 = vmatprep.subr.mxu0 0.0
  %94 = vmatpush1.msra.mxu0 0.0
  %95 = vmatprep.subr.mxu0 0.0
  %96 = vmatpush1.msra.mxu0 0.0
  %97 = vmatprep.subr.mxu0 0.0
  %98 = vmatpush1.msra.mxu0 0.0
  %99 = vmatprep.subr.mxu0 0.0
  %100 = vmatpush1.msra.mxu0 0.0
  %101 = vmatprep.subr.mxu0 0.0
  %102 = vmatpush1.msra.mxu0 0.0
  %103 = vmatprep.subr.mxu0 0.0
  %104 = vmatpush1.msra.mxu0 0.0
  %105 = vmatprep.subr.mxu0 0.0
  %106 = vmatpush1.msra.mxu0 0.0
  %107 = vmatprep.subr.mxu0 0.0
  %108 = vmatpush1.msra.mxu0 0.0
  %109 = vmatprep.subr.mxu0 0.0
  %110 = vmatpush1.msra.mxu0 0.0
  %111 = vmatprep.subr.mxu0 0.0
  %112 = vmatpush1.msra.mxu0 0.0
  %113 = vmatprep.subr.mxu0 0.0
  %114 = vmatpush1.msra.mxu0 0.0
  %115 = vmatprep.subr.mxu0 0.0
  %116 = vmatpush1.msra.mxu0 0.0
  %117 = vmatprep.subr.mxu0 0.0
  %118 = vmatpush1.msra.mxu0 0.0
  %119 = vmatprep.subr.mxu0 0.0
  %120 = vmatpush1.msra.mxu0 0.0
  %121 = vmatprep.subr.mxu0 0.0
  %122 = vmatpush1.msra.mxu0 0.0
  %123 = vmatprep.subr.mxu0 0.0
  %124 = vmatpush1.msra.mxu0 0.0
  %125 = vmatprep.subr.mxu0 0.0
  %126 = vmatpush1.msra.mxu0 0.0
  %127 = vmatprep.subr.mxu0 0.0
  %128 = vmatpush1.msra.mxu0 0.0
  %129 = vmatprep.subr.mxu0 0.0
  %130 = vmatpush1.msra.mxu0 0.0
  %131 = vmatprep.subr.mxu0 0.0
  %132 = vmatpush1.msra.mxu0 0.0
  %133 = vmatprep.subr.mxu0 0.0
  %134 = vmatpush1.msra.mxu0 0.0
  %135 = vmatprep.subr.mxu0 0.0
  %136 = vmatpush1.msra.mxu0 0.0
  %137 = vmatprep.subr.mxu0 0.0
  %138 = vmatpush1.msra.mxu0 0.0
  %139 = vmatprep.subr.mxu0 0.0
  %140 = vmatpush1.msra.mxu0 0.0
  %141 = vmatprep.subr.mxu0 0.0
  %142 = vmatpush1.msra.mxu0 0.0
  %143 = vmatprep.mubr.f32.mxu0 0.0
  %144 = vmatmul.mubr.f32.gmra.mrb[0].mxu0 %v64
  %v145 = vpop.f32.mrb[0].mxu0
  %v146 = vadd.f32 0.0, %v145
  %v147 = vpop.f32.mrb[0].mxu0
  %v148 = vadd.f32 0.0, %v147
  %149 = vdwg.mxu0
  %150 = vmatprep.subr.mxu0 %v73
  %151 = vmatpush1.msra.mxu0 %v71
  %152 = vmatprep.subr.mxu0 0.0
  %153 = vmatpush1.msra.mxu0 0.0
  %154 = vmatprep.subr.mxu0 0.0
  %155 = vmatpush1.msra.mxu0 0.0
  %156 = vmatprep.subr.mxu0 0.0
  %157 = vmatpush1.msra.mxu0 0.0
  %158 = vmatprep.subr.mxu0 0.0
  %159 = vmatpush1.msra.mxu0 0.0
  %160 = vmatprep.subr.mxu0 0.0
  %161 = vmatpush1.msra.mxu0 0.0
  %162 = vmatprep.subr.mxu0 0.0
  %163 = vmatpush1.msra.mxu0 0.0
  %164 = vmatprep.subr.mxu0 0.0
  %165 = vmatpush1.msra.mxu0 0.0
  %166 = vmatprep.subr.mxu0 0.0
  %167 = vmatpush1.msra.mxu0 0.0
  %168 = vmatprep.subr.mxu0 0.0
  %169 = vmatpush1.msra.mxu0 0.0
  %170 = vmatprep.subr.mxu0 0.0
  %171 = vmatpush1.msra.mxu0 0.0
  %172 = vmatprep.subr.mxu0 0.0
  %173 = vmatpush1.msra.mxu0 0.0
  %174 = vmatprep.subr.mxu0 0.0
  %175 = vmatpush1.msra.mxu0 0.0
  %176 = vmatprep.subr.mxu0 0.0
  %177 = vmatpush1.msra.mxu0 0.0
  %178 = vmatprep.subr.mxu0 0.0
  %179 = vmatpush1.msra.mxu0 0.0
  %180 = vmatprep.subr.mxu0 0.0
  %181 = vmatpush1.msra.mxu0 0.0
  %182 = vmatprep.subr.mxu0 0.0
  %183 = vmatpush1.msra.mxu0 0.0
  %184 = vmatprep.subr.mxu0 0.0
  %185 = vmatpush1.msra.mxu0 0.0
  %186 = vmatprep.subr.mxu0 0.0
  %187 = vmatpush1.msra.mxu0 0.0
  %188 = vmatprep.subr.mxu0 0.0
  %189 = vmatpush1.msra.mxu0 0.0
  %190 = vmatprep.subr.mxu0 0.0
  %191 = vmatpush1.msra.mxu0 0.0
  %192 = vmatprep.subr.mxu0 0.0
  %193 = vmatpush1.msra.mxu0 0.0
  %194 = vmatprep.subr.mxu0 0.0
  %195 = vmatpush1.msra.mxu0 0.0
  %196 = vmatprep.subr.mxu0 0.0
  %197 = vmatpush1.msra.mxu0 0.0
  %198 = vmatprep.subr.mxu0 0.0
  %199 = vmatpush1.msra.mxu0 0.0
  %200 = vmatprep.subr.mxu0 0.0
  %201 = vmatpush1.msra.mxu0 0.0
  %202 = vmatprep.subr.mxu0 0.0
  %203 = vmatpush1.msra.mxu0 0.0
  %204 = vmatprep.subr.mxu0 0.0
  %205 = vmatpush1.msra.mxu0 0.0
  %206 = vmatprep.subr.mxu0 0.0
  %207 = vmatpush1.msra.mxu0 0.0
  %208 = vmatprep.subr.mxu0 0.0
  %209 = vmatpush1.msra.mxu0 0.0
  %210 = vmatprep.subr.mxu0 0.0
  %211 = vmatpush1.msra.mxu0 0.0
  %212 = vmatprep.subr.mxu0 0.0
  %213 = vmatpush1.msra.mxu0 0.0
  %214 = vmatprep.mubr.f32.mxu0 0.0
  %215 = vmatmul.mubr.f32.gmra.mrb[0].mxu0 %v64
  %v216 = vpop.f32.mrb[0].mxu0
  %v217 = vadd.f32 0.0, %v216
  %v218 = vpop.f32.mrb[0].mxu0
  %v219 = vadd.f32 0.0, %v218
  %220 = vdwg.mxu0
  %221 = vmatprep.subr.mxu0 %v77
  %222 = vmatpush1.msra.mxu0 %v75
  %223 = vmatprep.subr.mxu0 0.0
  %224 = vmatpush1.msra.mxu0 0.0
  %225 = vmatprep.subr.mxu0 0.0
  %226 = vmatpush1.msra.mxu0 0.0
  %227 = vmatprep.subr.mxu0 0.0
  %228 = vmatpush1.msra.mxu0 0.0
  %229 = vmatprep.subr.mxu0 0.0
  %230 = vmatpush1.msra.mxu0 0.0
  %231 = vmatprep.subr.mxu0 0.0
  %232 = vmatpush1.msra.mxu0 0.0
  %233 = vmatprep.subr.mxu0 0.0
  %234 = vmatpush1.msra.mxu0 0.0
  %235 = vmatprep.subr.mxu0 0.0
  %236 = vmatpush1.msra.mxu0 0.0
  %237 = vmatprep.subr.mxu0 0.0
  %238 = vmatpush1.msra.mxu0 0.0
  %239 = vmatprep.subr.mxu0 0.0
  %240 = vmatpush1.msra.mxu0 0.0
  %241 = vmatprep.subr.mxu0 0.0
  %242 = vmatpush1.msra.mxu0 0.0
  %243 = vmatprep.subr.mxu0 0.0
  %244 = vmatpush1.msra.mxu0 0.0
  %245 = vmatprep.subr.mxu0 0.0
  %246 = vmatpush1.msra.mxu0 0.0
  %247 = vmatprep.subr.mxu0 0.0
  %248 = vmatpush1.msra.mxu0 0.0
  %249 = vmatprep.subr.mxu0 0.0
  %250 = vmatpush1.msra.mxu0 0.0
  %251 = vmatprep.subr.mxu0 0.0
  %252 = vmatpush1.msra.mxu0 0.0
  %253 = vmatprep.subr.mxu0 0.0
  %254 = vmatpush1.msra.mxu0 0.0
  %255 = vmatprep.subr.mxu0 0.0
  %256 = vmatpush1.msra.mxu0 0.0
  %257 = vmatprep.subr.mxu0 0.0
  %258 = vmatpush1.msra.mxu0 0.0
  %259 = vmatprep.subr.mxu0 0.0
  %260 = vmatpush1.msra.mxu0 0.0
  %261 = vmatprep.subr.mxu0 0.0
  %262 = vmatpush1.msra.mxu0 0.0
  %263 = vmatprep.subr.mxu0 0.0
  %264 = vmatpush1.msra.mxu0 0.0
  %265 = vmatprep.subr.mxu0 0.0
  %266 = vmatpush1.msra.mxu0 0.0
  %267 = vmatprep.subr.mxu0 0.0
  %268 = vmatpush1.msra.mxu0 0.0
  %269 = vmatprep.subr.mxu0 0.0
  %270 = vmatpush1.msra.mxu0 0.0
  %271 = vmatprep.subr.mxu0 0.0
  %272 = vmatpush1.msra.mxu0 0.0
  %273 = vmatprep.subr.mxu0 0.0
  %274 = vmatpush1.msra.mxu0 0.0
  %275 = vmatprep.subr.mxu0 0.0
  %276 = vmatpush1.msra.mxu0 0.0
  %277 = vmatprep.subr.mxu0 0.0
  %278 = vmatpush1.msra.mxu0 0.0
  %279 = vmatprep.subr.mxu0 0.0
  %280 = vmatpush1.msra.mxu0 0.0
  %281 = vmatprep.subr.mxu0 0.0
  %282 = vmatpush1.msra.mxu0 0.0
  %283 = vmatprep.subr.mxu0 0.0
  %284 = vmatpush1.msra.mxu0 0.0
  %285 = vmatprep.mubr.f32.mxu0 0.0
  %286 = vmatmul.mubr.f32.gmra.mrb[0].mxu0 %v64
  %v287 = vpop.f32.mrb[0].mxu0
  %v288 = vadd.f32 0.0, %v287
  %v289 = vpop.f32.mrb[0].mxu0
  %v290 = vadd.f32 0.0, %v289
  %291 = vdwg.mxu0
  %292 = vrot.lane.b32.xlu0 %v32, 19
  %v293 = vpop.permute.xlu0 %292
  %294 = vrot.lane.b32.xlu0 %v41, 19
  %v295 = vpop.permute.xlu0 %294
  %296 = vrot.lane.b32.xlu0 %v33, 19
  %v297 = vpop.permute.xlu0 %296
  %298 = vrot.lane.b32.xlu0 %v42, 19
  %v299 = vpop.permute.xlu0 %298
  %300 = vrot.lane.b32.xlu0 %v34, 19
  %v301 = vpop.permute.xlu0 %300
  %302 = vrot.lane.b32.xlu0 %v43, 19
  %v303 = vpop.permute.xlu0 %302
  %vm304 = vcmask 154624
  %v305 = vsel %vm304, %v293, %v295
  %v306 = vsel %vm304, %v295, %v297
  %v307 = vsel %vm304, %v297, %v299
  %v308 = vsel %vm304, %v299, %v301
  %v309 = vsel %vm304, %v301, %v303
  %v311 = vsel %vm62, %v35, 0
  %v313 = vsel %vm66, %v305, 0
  %v315 = vsel %vm66, %v306, 0
  %v317 = vsel %vm66, %v307, 0
  %v319 = vsel %vm66, %v308, 0
  %v321 = vsel %vm66, %v309, 0
  %v323 = vsel %vm66, %v303, 0
  %325 = vmatprep.subr.mxu0 %v315
  %326 = vmatpush1.msra.mxu0 %v313
  %327 = vmatprep.subr.mxu0 0.0
  %328 = vmatpush1.msra.mxu0 0.0
  %329 = vmatprep.subr.mxu0 0.0
  %330 = vmatpush1.msra.mxu0 0.0
  %331 = vmatprep.subr.mxu0 0.0
  %332 = vmatpush1.msra.mxu0 0.0
  %333 = vmatprep.subr.mxu0 0.0
  %334 = vmatpush1.msra.mxu0 0.0
  %335 = vmatprep.subr.mxu0 0.0
  %336 = vmatpush1.msra.mxu0 0.0
  %337 = vmatprep.subr.mxu0 0.0
  %338 = vmatpush1.msra.mxu0 0.0
  %339 = vmatprep.subr.mxu0 0.0
  %340 = vmatpush1.msra.mxu0 0.0
  %341 = vmatprep.subr.mxu0 0.0
  %342 = vmatpush1.msra.mxu0 0.0
  %343 = vmatprep.subr.mxu0 0.0
  %344 = vmatpush1.msra.mxu0 0.0
  %345 = vmatprep.subr.mxu0 0.0
  %346 = vmatpush1.msra.mxu0 0.0
  %347 = vmatprep.subr.mxu0 0.0
  %348 = vmatpush1.msra.mxu0 0.0
  %349 = vmatprep.subr.mxu0 0.0
  %350 = vmatpush1.msra.mxu0 0.0
  %351 = vmatprep.subr.mxu0 0.0
  %352 = vmatpush1.msra.mxu0 0.0
  %353 = vmatprep.subr.mxu0 0.0
  %354 = vmatpush1.msra.mxu0 0.0
  %355 = vmatprep.subr.mxu0 0.0
  %356 = vmatpush1.msra.mxu0 0.0
  %357 = vmatprep.subr.mxu0 0.0
  %358 = vmatpush1.msra.mxu0 0.0
  %359 = vmatprep.subr.mxu0 0.0
  %360 = vmatpush1.msra.mxu0 0.0
  %361 = vmatprep.subr.mxu0 0.0
  %362 = vmatpush1.msra.mxu0 0.0
  %363 = vmatprep.subr.mxu0 0.0
  %364 = vmatpush1.msra.mxu0 0.0
  %365 = vmatprep.subr.mxu0 0.0
  %366 = vmatpush1.msra.mxu0 0.0
  %367 = vmatprep.subr.mxu0 0.0
  %368 = vmatpush1.msra.mxu0 0.0
  %369 = vmatprep.subr.mxu0 0.0
  %370 = vmatpush1.msra.mxu0 0.0
  %371 = vmatprep.subr.mxu0 0.0
  %372 = vmatpush1.msra.mxu0 0.0
  %373 = vmatprep.subr.mxu0 0.0
  %374 = vmatpush1.msra.mxu0 0.0
  %375 = vmatprep.subr.mxu0 0.0
  %376 = vmatpush1.msra.mxu0 0.0
  %377 = vmatprep.subr.mxu0 0.0
  %378 = vmatpush1.msra.mxu0 0.0
  %379 = vmatprep.subr.mxu0 0.0
  %380 = vmatpush1.msra.mxu0 0.0
  %381 = vmatprep.subr.mxu0 0.0
  %382 = vmatpush1.msra.mxu0 0.0
  %383 = vmatprep.subr.mxu0 0.0
  %384 = vmatpush1.msra.mxu0 0.0
  %385 = vmatprep.subr.mxu0 0.0
  %386 = vmatpush1.msra.mxu0 0.0
  %387 = vmatprep.subr.mxu0 0.0
  %388 = vmatpush1.msra.mxu0 0.0
  %389 = vmatprep.mubr.f32.mxu0 0.0
  %390 = vmatmul.mubr.f32.gmra.mrb[0].mxu0 %v311
  %v391 = vpop.f32.mrb[0].mxu0
  %v392 = vadd.f32 %v146, %v391
  %v393 = vpop.f32.mrb[0].mxu0
  %v394 = vadd.f32 %v148, %v393
  %395 = vdwg.mxu0
  %396 = vmatprep.subr.mxu0 %v319
  %397 = vmatpush1.msra.mxu0 %v317
  %398 = vmatprep.subr.mxu0 0.0
  %399 = vmatpush1.msra.mxu0 0.0
  %400 = vmatprep.subr.mxu0 0.0
  %401 = vmatpush1.msra.mxu0 0.0
  %402 = vmatprep.subr.mxu0 0.0
  %403 = vmatpush1.msra.mxu0 0.0
  %404 = vmatprep.subr.mxu0 0.0
  %405 = vmatpush1.msra.mxu0 0.0
  %406 = vmatprep.subr.mxu0 0.0
  %407 = vmatpush1.msra.mxu0 0.0
  %408 = vmatprep.subr.mxu0 0.0
  %409 = vmatpush1.msra.mxu0 0.0
  %410 = vmatprep.subr.mxu0 0.0
  %411 = vmatpush1.msra.mxu0 0.0
  %412 = vmatprep.subr.mxu0 0.0
  %413 = vmatpush1.msra.mxu0 0.0
  %414 = vmatprep.subr.mxu0 0.0
  %415 = vmatpush1.msra.mxu0 0.0
  %416 = vmatprep.subr.mxu0 0.0
  %417 = vmatpush1.msra.mxu0 0.0
  %418 = vmatprep.subr.mxu0 0.0
  %419 = vmatpush1.msra.mxu0 0.0
  %420 = vmatprep.subr.mxu0 0.0
  %421 = vmatpush1.msra.mxu0 0.0
  %422 = vmatprep.subr.mxu0 0.0
  %423 = vmatpush1.msra.mxu0 0.0
  %424 = vmatprep.subr.mxu0 0.0
  %425 = vmatpush1.msra.mxu0 0.0
  %426 = vmatprep.subr.mxu0 0.0
  %427 = vmatpush1.msra.mxu0 0.0
  %428 = vmatprep.subr.mxu0 0.0
  %429 = vmatpush1.msra.mxu0 0.0
  %430 = vmatprep.subr.mxu0 0.0
  %431 = vmatpush1.msra.mxu0 0.0
  %432 = vmatprep.subr.mxu0 0.0
  %433 = vmatpush1.msra.mxu0 0.0
  %434 = vmatprep.subr.mxu0 0.0
  %435 = vmatpush1.msra.mxu0 0.0
  %436 = vmatprep.subr.mxu0 0.0
  %437 = vmatpush1.msra.mxu0 0.0
  %438 = vmatprep.subr.mxu0 0.0
  %439 = vmatpush1.msra.mxu0 0.0
  %440 = vmatprep.subr.mxu0 0.0
  %441 = vmatpush1.msra.mxu0 0.0
  %442 = vmatprep.subr.mxu0 0.0
  %443 = vmatpush1.msra.mxu0 0.0
  %444 = vmatprep.subr.mxu0 0.0
  %445 = vmatpush1.msra.mxu0 0.0
  %446 = vmatprep.subr.mxu0 0.0
  %447 = vmatpush1.msra.mxu0 0.0
  %448 = vmatprep.subr.mxu0 0.0
  %449 = vmatpush1.msra.mxu0 0.0
  %450 = vmatprep.subr.mxu0 0.0
  %451 = vmatpush1.msra.mxu0 0.0
  %452 = vmatprep.subr.mxu0 0.0
  %453 = vmatpush1.msra.mxu0 0.0
  %454 = vmatprep.subr.mxu0 0.0
  %455 = vmatpush1.msra.mxu0 0.0
  %456 = vmatprep.subr.mxu0 0.0
  %457 = vmatpush1.msra.mxu0 0.0
  %458 = vmatprep.subr.mxu0 0.0
  %459 = vmatpush1.msra.mxu0 0.0
  %460 = vmatprep.mubr.f32.mxu0 0.0
  %461 = vmatmul.mubr.f32.gmra.mrb[0].mxu0 %v311
  %v462 = vpop.f32.mrb[0].mxu0
  %v463 = vadd.f32 %v217, %v462
  %v464 = vpop.f32.mrb[0].mxu0
  %v465 = vadd.f32 %v219, %v464
  %466 = vdwg.mxu0
  %467 = vmatprep.subr.mxu0 %v323
  %468 = vmatpush1.msra.mxu0 %v321
  %469 = vmatprep.subr.mxu0 0.0
  %470 = vmatpush1.msra.mxu0 0.0
  %471 = vmatprep.subr.mxu0 0.0
  %472 = vmatpush1.msra.mxu0 0.0
  %473 = vmatprep.subr.mxu0 0.0
  %474 = vmatpush1.msra.mxu0 0.0
  %475 = vmatprep.subr.mxu0 0.0
  %476 = vmatpush1.msra.mxu0 0.0
  %477 = vmatprep.subr.mxu0 0.0
  %478 = vmatpush1.msra.mxu0 0.0
  %479 = vmatprep.subr.mxu0 0.0
  %480 = vmatpush1.msra.mxu0 0.0
  %481 = vmatprep.subr.mxu0 0.0
  %482 = vmatpush1.msra.mxu0 0.0
  %483 = vmatprep.subr.mxu0 0.0
  %484 = vmatpush1.msra.mxu0 0.0
  %485 = vmatprep.subr.mxu0 0.0
  %486 = vmatpush1.msra.mxu0 0.0
  %487 = vmatprep.subr.mxu0 0.0
  %488 = vmatpush1.msra.mxu0 0.0
  %489 = vmatprep.subr.mxu0 0.0
  %490 = vmatpush1.msra.mxu0 0.0
  %491 = vmatprep.subr.mxu0 0.0
  %492 = vmatpush1.msra.mxu0 0.0
  %493 = vmatprep.subr.mxu0 0.0
  %494 = vmatpush1.msra.mxu0 0.0
  %495 = vmatprep.subr.mxu0 0.0
  %496 = vmatpush1.msra.mxu0 0.0
  %497 = vmatprep.subr.mxu0 0.0
  %498 = vmatpush1.msra.mxu0 0.0
  %499 = vmatprep.subr.mxu0 0.0
  %500 = vmatpush1.msra.mxu0 0.0
  %501 = vmatprep.subr.mxu0 0.0
  %502 = vmatpush1.msra.mxu0 0.0
  %503 = vmatprep.subr.mxu0 0.0
  %504 = vmatpush1.msra.mxu0 0.0
  %505 = vmatprep.subr.mxu0 0.0
  %506 = vmatpush1.msra.mxu0 0.0
  %507 = vmatprep.subr.mxu0 0.0
  %508 = vmatpush1.msra.mxu0 0.0
  %509 = vmatprep.subr.mxu0 0.0
  %510 = vmatpush1.msra.mxu0 0.0
  %511 = vmatprep.subr.mxu0 0.0
  %512 = vmatpush1.msra.mxu0 0.0
  %513 = vmatprep.subr.mxu0 0.0
  %514 = vmatpush1.msra.mxu0 0.0
  %515 = vmatprep.subr.mxu0 0.0
  %516 = vmatpush1.msra.mxu0 0.0
  %517 = vmatprep.subr.mxu0 0.0
  %518 = vmatpush1.msra.mxu0 0.0
  %519 = vmatprep.subr.mxu0 0.0
  %520 = vmatpush1.msra.mxu0 0.0
  %521 = vmatprep.subr.mxu0 0.0
  %522 = vmatpush1.msra.mxu0 0.0
  %523 = vmatprep.subr.mxu0 0.0
  %524 = vmatpush1.msra.mxu0 0.0
  %525 = vmatprep.subr.mxu0 0.0
  %526 = vmatpush1.msra.mxu0 0.0
  %527 = vmatprep.subr.mxu0 0.0
  %528 = vmatpush1.msra.mxu0 0.0
  %529 = vmatprep.subr.mxu0 0.0
  %530 = vmatpush1.msra.mxu0 0.0
  %531 = vmatprep.mubr.f32.mxu0 0.0
  %532 = vmatmul.mubr.f32.gmra.mrb[0].mxu0 %v311
  %v533 = vpop.f32.mrb[0].mxu0
  %v534 = vadd.f32 %v288, %v533
  %v535 = vpop.f32.mrb[0].mxu0
  %v536 = vadd.f32 %v290, %v535
  %537 = vdwg.mxu0
  %v538 = vld [vmem:[%s0] sm:$0xff]
  %v539 = vld [vmem:[%s0 + $0x8] sm:$0xff]
  %v540 = vld [vmem:[%s0 + $0x10] sm:$0xff]
  %s541 = scalar_lea.vmem %s1, 8
  %v542 = vld [vmem:[%s541] sm:$0xf]
  %v546 = vcombine.high %v538, %v538
  %v547 = vcombine.high %v539, %v539
  %v548 = vcombine.high %v540, %v540
  %549 = vrot.lane.b32.xlu0 %v538, 17
  %v550 = vpop.permute.xlu0 %549
  %551 = vrot.lane.b32.xlu0 %v546, 17
  %v552 = vpop.permute.xlu0 %551
  %553 = vrot.lane.b32.xlu0 %v539, 17
  %v554 = vpop.permute.xlu0 %553
  %555 = vrot.lane.b32.xlu0 %v547, 17
  %v556 = vpop.permute.xlu0 %555
  %557 = vrot.lane.b32.xlu0 %v540, 17
  %v558 = vpop.permute.xlu0 %557
  %559 = vrot.lane.b32.xlu0 %v548, 17
  %v560 = vpop.permute.xlu0 %559
  %vm561 = vcmask 138240
  %v562 = vsel %vm561, %v550, %v552
  %v563 = vsel %vm561, %v552, %v554
  %v564 = vsel %vm561, %v554, %v556
  %v565 = vsel %vm561, %v556, %v558
  %v566 = vsel %vm561, %v558, %v560
  %v568 = vsel %vm62, %v542, 0
  %v570 = vsel %vm66, %v562, 0
  %v572 = vsel %vm66, %v563, 0
  %v574 = vsel %vm66, %v564, 0
  %v576 = vsel %vm66, %v565, 0
  %v578 = vsel %vm66, %v566, 0
  %v580 = vsel %vm66, %v560, 0
  %582 = vmatprep.subr.mxu0 %v572
  %583 = vmatpush1.msra.mxu0 %v570
  %584 = vmatprep.subr.mxu0 0.0
  %585 = vmatpush1.msra.mxu0 0.0
  %586 = vmatprep.subr.mxu0 0.0
  %587 = vmatpush1.msra.mxu0 0.0
  %588 = vmatprep.subr.mxu0 0.0
  %589 = vmatpush1.msra.mxu0 0.0
  %590 = vmatprep.subr.mxu0 0.0
  %591 = vmatpush1.msra.mxu0 0.0
  %592 = vmatprep.subr.mxu0 0.0
  %593 = vmatpush1.msra.mxu0 0.0
  %594 = vmatprep.subr.mxu0 0.0
  %595 = vmatpush1.msra.mxu0 0.0
  %596 = vmatprep.subr.mxu0 0.0
  %597 = vmatpush1.msra.mxu0 0.0
  %598 = vmatprep.subr.mxu0 0.0
  %599 = vmatpush1.msra.mxu0 0.0
  %600 = vmatprep.subr.mxu0 0.0
  %601 = vmatpush1.msra.mxu0 0.0
  %602 = vmatprep.subr.mxu0 0.0
  %603 = vmatpush1.msra.mxu0 0.0
  %604 = vmatprep.subr.mxu0 0.0
  %605 = vmatpush1.msra.mxu0 0.0
  %606 = vmatprep.subr.mxu0 0.0
  %607 = vmatpush1.msra.mxu0 0.0
  %608 = vmatprep.subr.mxu0 0.0
  %609 = vmatpush1.msra.mxu0 0.0
  %610 = vmatprep.subr.mxu0 0.0
  %611 = vmatpush1.msra.mxu0 0.0
  %612 = vmatprep.subr.mxu0 0.0
  %613 = vmatpush1.msra.mxu0 0.0
  %614 = vmatprep.subr.mxu0 0.0
  %615 = vmatpush1.msra.mxu0 0.0
  %616 = vmatprep.subr.mxu0 0.0
  %617 = vmatpush1.msra.mxu0 0.0
  %618 = vmatprep.subr.mxu0 0.0
  %619 = vmatpush1.msra.mxu0 0.0
  %620 = vmatprep.subr.mxu0 0.0
  %621 = vmatpush1.msra.mxu0 0.0
  %622 = vmatprep.subr.mxu0 0.0
  %623 = vmatpush1.msra.mxu0 0.0
  %624 = vmatprep.subr.mxu0 0.0
  %625 = vmatpush1.msra.mxu0 0.0
  %626 = vmatprep.subr.mxu0 0.0
  %627 = vmatpush1.msra.mxu0 0.0
  %628 = vmatprep.subr.mxu0 0.0
  %629 = vmatpush1.msra.mxu0 0.0
  %630 = vmatprep.subr.mxu0 0.0
  %631 = vmatpush1.msra.mxu0 0.0
  %632 = vmatprep.subr.mxu0 0.0
  %633 = vmatpush1.msra.mxu0 0.0
  %634 = vmatprep.subr.mxu0 0.0
  %635 = vmatpush1.msra.mxu0 0.0
  %636 = vmatprep.subr.mxu0 0.0
  %637 = vmatpush1.msra.mxu0 0.0
  %638 = vmatprep.subr.mxu0 0.0
  %639 = vmatpush1.msra.mxu0 0.0
  %640 = vmatprep.subr.mxu0 0.0
  %641 = vmatpush1.msra.mxu0 0.0
  %642 = vmatprep.subr.mxu0 0.0
  %643 = vmatpush1.msra.mxu0 0.0
  %644 = vmatprep.subr.mxu0 0.0
  %645 = vmatpush1.msra.mxu0 0.0
  %646 = vmatprep.mubr.f32.mxu0 0.0
  %647 = vmatmul.mubr.f32.gmra.mrb[0].mxu0 %v568
  %v648 = vpop.f32.mrb[0].mxu0
  %v649 = vadd.f32 0.0, %v648
  %v650 = vpop.f32.mrb[0].mxu0
  %v651 = vadd.f32 0.0, %v650
  %652 = vdwg.mxu0
  %653 = vmatprep.subr.mxu0 %v576
  %654 = vmatpush1.msra.mxu0 %v574
  %655 = vmatprep.subr.mxu0 0.0
  %656 = vmatpush1.msra.mxu0 0.0
  %657 = vmatprep.subr.mxu0 0.0
  %658 = vmatpush1.msra.mxu0 0.0
  %659 = vmatprep.subr.mxu0 0.0
  %660 = vmatpush1.msra.mxu0 0.0
  %661 = vmatprep.subr.mxu0 0.0
  %662 = vmatpush1.msra.mxu0 0.0
  %663 = vmatprep.subr.mxu0 0.0
  %664 = vmatpush1.msra.mxu0 0.0
  %665 = vmatprep.subr.mxu0 0.0
  %666 = vmatpush1.msra.mxu0 0.0
  %667 = vmatprep.subr.mxu0 0.0
  %668 = vmatpush1.msra.mxu0 0.0
  %669 = vmatprep.subr.mxu0 0.0
  %670 = vmatpush1.msra.mxu0 0.0
  %671 = vmatprep.subr.mxu0 0.0
  %672 = vmatpush1.msra.mxu0 0.0
  %673 = vmatprep.subr.mxu0 0.0
  %674 = vmatpush1.msra.mxu0 0.0
  %675 = vmatprep.subr.mxu0 0.0
  %676 = vmatpush1.msra.mxu0 0.0
  %677 = vmatprep.subr.mxu0 0.0
  %678 = vmatpush1.msra.mxu0 0.0
  %679 = vmatprep.subr.mxu0 0.0
  %680 = vmatpush1.msra.mxu0 0.0
  %681 = vmatprep.subr.mxu0 0.0
  %682 = vmatpush1.msra.mxu0 0.0
  %683 = vmatprep.subr.mxu0 0.0
  %684 = vmatpush1.msra.mxu0 0.0
  %685 = vmatprep.subr.mxu0 0.0
  %686 = vmatpush1.msra.mxu0 0.0
  %687 = vmatprep.subr.mxu0 0.0
  %688 = vmatpush1.msra.mxu0 0.0
  %689 = vmatprep.subr.mxu0 0.0
  %690 = vmatpush1.msra.mxu0 0.0
  %691 = vmatprep.subr.mxu0 0.0
  %692 = vmatpush1.msra.mxu0 0.0
  %693 = vmatprep.subr.mxu0 0.0
  %694 = vmatpush1.msra.mxu0 0.0
  %695 = vmatprep.subr.mxu0 0.0
  %696 = vmatpush1.msra.mxu0 0.0
  %697 = vmatprep.subr.mxu0 0.0
  %698 = vmatpush1.msra.mxu0 0.0
  %699 = vmatprep.subr.mxu0 0.0
  %700 = vmatpush1.msra.mxu0 0.0
  %701 = vmatprep.subr.mxu0 0.0
  %702 = vmatpush1.msra.mxu0 0.0
  %703 = vmatprep.subr.mxu0 0.0
  %704 = vmatpush1.msra.mxu0 0.0
  %705 = vmatprep.subr.mxu0 0.0
  %706 = vmatpush1.msra.mxu0 0.0
  %707 = vmatprep.subr.mxu0 0.0
  %708 = vmatpush1.msra.mxu0 0.0
  %709 = vmatprep.subr.mxu0 0.0
  %710 = vmatpush1.msra.mxu0 0.0
  %711 = vmatprep.subr.mxu0 0.0
  %712 = vmatpush1.msra.mxu0 0.0
  %713 = vmatprep.subr.mxu0 0.0
  %714 = vmatpush1.msra.mxu0 0.0
  %715 = vmatprep.subr.mxu0 0.0
  %716 = vmatpush1.msra.mxu0 0.0
  %717 = vmatprep.mubr.f32.mxu0 0.0
  %718 = vmatmul.mubr.f32.gmra.mrb[0].mxu0 %v568
  %v719 = vpop.f32.mrb[0].mxu0
  %v720 = vadd.f32 0.0, %v719
  %v721 = vpop.f32.mrb[0].mxu0
  %v722 = vadd.f32 0.0, %v721
  %723 = vdwg.mxu0
  %724 = vmatprep.subr.mxu0 %v580
  %725 = vmatpush1.msra.mxu0 %v578
  %726 = vmatprep.subr.mxu0 0.0
  %727 = vmatpush1.msra.mxu0 0.0
  %728 = vmatprep.subr.mxu0 0.0
  %729 = vmatpush1.msra.mxu0 0.0
  %730 = vmatprep.subr.mxu0 0.0
  %731 = vmatpush1.msra.mxu0 0.0
  %732 = vmatprep.subr.mxu0 0.0
  %733 = vmatpush1.msra.mxu0 0.0
  %734 = vmatprep.subr.mxu0 0.0
  %735 = vmatpush1.msra.mxu0 0.0
  %736 = vmatprep.subr.mxu0 0.0
  %737 = vmatpush1.msra.mxu0 0.0
  %738 = vmatprep.subr.mxu0 0.0
  %739 = vmatpush1.msra.mxu0 0.0
  %740 = vmatprep.subr.mxu0 0.0
  %741 = vmatpush1.msra.mxu0 0.0
  %742 = vmatprep.subr.mxu0 0.0
  %743 = vmatpush1.msra.mxu0 0.0
  %744 = vmatprep.subr.mxu0 0.0
  %745 = vmatpush1.msra.mxu0 0.0
  %746 = vmatprep.subr.mxu0 0.0
  %747 = vmatpush1.msra.mxu0 0.0
  %748 = vmatprep.subr.mxu0 0.0
  %749 = vmatpush1.msra.mxu0 0.0
  %750 = vmatprep.subr.mxu0 0.0
  %751 = vmatpush1.msra.mxu0 0.0
  %752 = vmatprep.subr.mxu0 0.0
  %753 = vmatpush1.msra.mxu0 0.0
  %754 = vmatprep.subr.mxu0 0.0
  %755 = vmatpush1.msra.mxu0 0.0
  %756 = vmatprep.subr.mxu0 0.0
  %757 = vmatpush1.msra.mxu0 0.0
  %758 = vmatprep.subr.mxu0 0.0
  %759 = vmatpush1.msra.mxu0 0.0
  %760 = vmatprep.subr.mxu0 0.0
  %761 = vmatpush1.msra.mxu0 0.0
  %762 = vmatprep.subr.mxu0 0.0
  %763 = vmatpush1.msra.mxu0 0.0
  %764 = vmatprep.subr.mxu0 0.0
  %765 = vmatpush1.msra.mxu0 0.0
  %766 = vmatprep.subr.mxu0 0.0
  %767 = vmatpush1.msra.mxu0 0.0
  %768 = vmatprep.subr.mxu0 0.0
  %769 = vmatpush1.msra.mxu0 0.0
  %770 = vmatprep.subr.mxu0 0.0
  %771 = vmatpush1.msra.mxu0 0.0
  %772 = vmatprep.subr.mxu0 0.0
  %773 = vmatpush1.msra.mxu0 0.0
  %774 = vmatprep.subr.mxu0 0.0
  %775 = vmatpush1.msra.mxu0 0.0
  %776 = vmatprep.subr.mxu0 0.0
  %777 = vmatpush1.msra.mxu0 0.0
  %778 = vmatprep.subr.mxu0 0.0
  %779 = vmatpush1.msra.mxu0 0.0
  %780 = vmatprep.subr.mxu0 0.0
  %781 = vmatpush1.msra.mxu0 0.0
  %782 = vmatprep.subr.mxu0 0.0
  %783 = vmatpush1.msra.mxu0 0.0
  %784 = vmatprep.subr.mxu0 0.0
  %785 = vmatpush1.msra.mxu0 0.0
  %786 = vmatprep.subr.mxu0 0.0
  %787 = vmatpush1.msra.mxu0 0.0
  %788 = vmatprep.mubr.f32.mxu0 0.0
  %789 = vmatmul.mubr.f32.gmra.mrb[0].mxu0 %v568
  %v790 = vpop.f32.mrb[0].mxu0
  %v791 = vadd.f32 0.0, %v790
  %v792 = vpop.f32.mrb[0].mxu0
  %v793 = vadd.f32 0.0, %v792
  %794 = vdwg.mxu0
  %v795 = vadd.f32 %v392, %v649
  %v796 = vadd.f32 %v394, %v651
  %v797 = vadd.f32 %v463, %v720
  %v798 = vadd.f32 %v465, %v722
  %v799 = vadd.f32 %v534, %v791
  %v800 = vadd.f32 %v536, %v793
  %v801 = vld [vmem:[%s0] sm:$0xff]
  %v802 = vld [vmem:[%s0 + $0x8] sm:$0xff]
  %v803 = vld [vmem:[%s0 + $0x10] sm:$0xff]
  %v804 = vld [vmem:[%s0 + $0x18] sm:$0xf]
  %s805 = scalar_lea.vmem %s1, 12
  %v806 = vld [vmem:[%s805] sm:$0xf]
  %v811 = vcombine.high %v801, %v801
  %v812 = vcombine.high %v802, %v802
  %v813 = vcombine.high %v803, %v803
  %814 = vrot.lane.b32.xlu0 %v801, 1
  %v815 = vpop.permute.xlu0 %814
  %816 = vrot.lane.b32.xlu0 %v811, 1
  %v817 = vpop.permute.xlu0 %816
  %818 = vrot.lane.b32.xlu0 %v802, 1
  %v819 = vpop.permute.xlu0 %818
  %820 = vrot.lane.b32.xlu0 %v812, 1
  %v821 = vpop.permute.xlu0 %820
  %822 = vrot.lane.b32.xlu0 %v803, 1
  %v823 = vpop.permute.xlu0 %822
  %824 = vrot.lane.b32.xlu0 %v813, 1
  %v825 = vpop.permute.xlu0 %824
  %826 = vrot.lane.b32.xlu0 %v804, 1
  %v827 = vpop.permute.xlu0 %826
  %vm828 = vcmask 7168
  %v829 = vsel %vm828, %v815, %v817
  %v830 = vsel %vm828, %v817, %v819
  %v831 = vsel %vm828, %v819, %v821
  %v832 = vsel %vm828, %v821, %v823
  %v833 = vsel %vm828, %v823, %v825
  %v834 = vsel %vm828, %v825, %v827
  %v836 = vsel %vm62, %v806, 0
  %v838 = vsel %vm66, %v829, 0
  %v840 = vsel %vm66, %v830, 0
  %v842 = vsel %vm66, %v831, 0
  %v844 = vsel %vm66, %v832, 0
  %v846 = vsel %vm66, %v833, 0
  %v848 = vsel %vm66, %v834, 0
  %850 = vmatprep.subr.mxu0 %v840
  %851 = vmatpush1.msra.mxu0 %v838
  %852 = vmatprep.subr.mxu0 0.0
  %853 = vmatpush1.msra.mxu0 0.0
  %854 = vmatprep.subr.mxu0 0.0
  %855 = vmatpush1.msra.mxu0 0.0
  %856 = vmatprep.subr.mxu0 0.0
  %857 = vmatpush1.msra.mxu0 0.0
  %858 = vmatprep.subr.mxu0 0.0
  %859 = vmatpush1.msra.mxu0 0.0
  %860 = vmatprep.subr.mxu0 0.0
  %861 = vmatpush1.msra.mxu0 0.0
  %862 = vmatprep.subr.mxu0 0.0
  %863 = vmatpush1.msra.mxu0 0.0
  %864 = vmatprep.subr.mxu0 0.0
  %865 = vmatpush1.msra.mxu0 0.0
  %866 = vmatprep.subr.mxu0 0.0
  %867 = vmatpush1.msra.mxu0 0.0
  %868 = vmatprep.subr.mxu0 0.0
  %869 = vmatpush1.msra.mxu0 0.0
  %870 = vmatprep.subr.mxu0 0.0
  %871 = vmatpush1.msra.mxu0 0.0
  %872 = vmatprep.subr.mxu0 0.0
  %873 = vmatpush1.msra.mxu0 0.0
  %874 = vmatprep.subr.mxu0 0.0
  %875 = vmatpush1.msra.mxu0 0.0
  %876 = vmatprep.subr.mxu0 0.0
  %877 = vmatpush1.msra.mxu0 0.0
  %878 = vmatprep.subr.mxu0 0.0
  %879 = vmatpush1.msra.mxu0 0.0
  %880 = vmatprep.subr.mxu0 0.0
  %881 = vmatpush1.msra.mxu0 0.0
  %882 = vmatprep.subr.mxu0 0.0
  %883 = vmatpush1.msra.mxu0 0.0
  %884 = vmatprep.subr.mxu0 0.0
  %885 = vmatpush1.msra.mxu0 0.0
  %886 = vmatprep.subr.mxu0 0.0
  %887 = vmatpush1.msra.mxu0 0.0
  %888 = vmatprep.subr.mxu0 0.0
  %889 = vmatpush1.msra.mxu0 0.0
  %890 = vmatprep.subr.mxu0 0.0
  %891 = vmatpush1.msra.mxu0 0.0
  %892 = vmatprep.subr.mxu0 0.0
  %893 = vmatpush1.msra.mxu0 0.0
  %894 = vmatprep.subr.mxu0 0.0
  %895 = vmatpush1.msra.mxu0 0.0
  %896 = vmatprep.subr.mxu0 0.0
  %897 = vmatpush1.msra.mxu0 0.0
  %898 = vmatprep.subr.mxu0 0.0
  %899 = vmatpush1.msra.mxu0 0.0
  %900 = vmatprep.subr.mxu0 0.0
  %901 = vmatpush1.msra.mxu0 0.0
  %902 = vmatprep.subr.mxu0 0.0
  %903 = vmatpush1.msra.mxu0 0.0
  %904 = vmatprep.subr.mxu0 0.0
  %905 = vmatpush1.msra.mxu0 0.0
  %906 = vmatprep.subr.mxu0 0.0
  %907 = vmatpush1.msra.mxu0 0.0
  %908 = vmatprep.subr.mxu0 0.0
  %909 = vmatpush1.msra.mxu0 0.0
  %910 = vmatprep.subr.mxu0 0.0
  %911 = vmatpush1.msra.mxu0 0.0
  %912 = vmatprep.subr.mxu0 0.0
  %913 = vmatpush1.msra.mxu0 0.0
  %914 = vmatprep.mubr.f32.mxu0 0.0
  %915 = vmatmul.mubr.f32.gmra.mrb[0].mxu0 %v836
  %v916 = vpop.f32.mrb[0].mxu0
  %v917 = vadd.f32 0.0, %v916
  %v918 = vpop.f32.mrb[0].mxu0
  %v919 = vadd.f32 0.0, %v918
  %920 = vdwg.mxu0
  %921 = vmatprep.subr.mxu0 %v844
  %922 = vmatpush1.msra.mxu0 %v842
  %923 = vmatprep.subr.mxu0 0.0
  %924 = vmatpush1.msra.mxu0 0.0
  %925 = vmatprep.subr.mxu0 0.0
  %926 = vmatpush1.msra.mxu0 0.0
  %927 = vmatprep.subr.mxu0 0.0
  %928 = vmatpush1.msra.mxu0 0.0
  %929 = vmatprep.subr.mxu0 0.0
  %930 = vmatpush1.msra.mxu0 0.0
  %931 = vmatprep.subr.mxu0 0.0
  %932 = vmatpush1.msra.mxu0 0.0
  %933 = vmatprep.subr.mxu0 0.0
  %934 = vmatpush1.msra.mxu0 0.0
  %935 = vmatprep.subr.mxu0 0.0
  %936 = vmatpush1.msra.mxu0 0.0
  %937 = vmatprep.subr.mxu0 0.0
  %938 = vmatpush1.msra.mxu0 0.0
  %939 = vmatprep.subr.mxu0 0.0
  %940 = vmatpush1.msra.mxu0 0.0
  %941 = vmatprep.subr.mxu0 0.0
  %942 = vmatpush1.msra.mxu0 0.0
  %943 = vmatprep.subr.mxu0 0.0
  %944 = vmatpush1.msra.mxu0 0.0
  %945 = vmatprep.subr.mxu0 0.0
  %946 = vmatpush1.msra.mxu0 0.0
  %947 = vmatprep.subr.mxu0 0.0
  %948 = vmatpush1.msra.mxu0 0.0
  %949 = vmatprep.subr.mxu0 0.0
  %950 = vmatpush1.msra.mxu0 0.0
  %951 = vmatprep.subr.mxu0 0.0
  %952 = vmatpush1.msra.mxu0 0.0
  %953 = vmatprep.subr.mxu0 0.0
  %954 = vmatpush1.msra.mxu0 0.0
  %955 = vmatprep.subr.mxu0 0.0
  %956 = vmatpush1.msra.mxu0 0.0
  %957 = vmatprep.subr.mxu0 0.0
  %958 = vmatpush1.msra.mxu0 0.0
  %959 = vmatprep.subr.mxu0 0.0
  %960 = vmatpush1.msra.mxu0 0.0
  %961 = vmatprep.subr.mxu0 0.0
  %962 = vmatpush1.msra.mxu0 0.0
  %963 = vmatprep.subr.mxu0 0.0
  %964 = vmatpush1.msra.mxu0 0.0
  %965 = vmatprep.subr.mxu0 0.0
  %966 = vmatpush1.msra.mxu0 0.0
  %967 = vmatprep.subr.mxu0 0.0
  %968 = vmatpush1.msra.mxu0 0.0
  %969 = vmatprep.subr.mxu0 0.0
  %970 = vmatpush1.msra.mxu0 0.0
  %971 = vmatprep.subr.mxu0 0.0
  %972 = vmatpush1.msra.mxu0 0.0
  %973 = vmatprep.subr.mxu0 0.0
  %974 = vmatpush1.msra.mxu0 0.0
  %975 = vmatprep.subr.mxu0 0.0
  %976 = vmatpush1.msra.mxu0 0.0
  %977 = vmatprep.subr.mxu0 0.0
  %978 = vmatpush1.msra.mxu0 0.0
  %979 = vmatprep.subr.mxu0 0.0
  %980 = vmatpush1.msra.mxu0 0.0
  %981 = vmatprep.subr.mxu0 0.0
  %982 = vmatpush1.msra.mxu0 0.0
  %983 = vmatprep.subr.mxu0 0.0
  %984 = vmatpush1.msra.mxu0 0.0
  %985 = vmatprep.mubr.f32.mxu0 0.0
  %986 = vmatmul.mubr.f32.gmra.mrb[0].mxu0 %v836
  %v987 = vpop.f32.mrb[0].mxu0
  %v988 = vadd.f32 0.0, %v987
  %v989 = vpop.f32.mrb[0].mxu0
  %v990 = vadd.f32 0.0, %v989
  %991 = vdwg.mxu0
  %992 = vmatprep.subr.mxu0 %v848
  %993 = vmatpush1.msra.mxu0 %v846
  %994 = vmatprep.subr.mxu0 0.0
  %995 = vmatpush1.msra.mxu0 0.0
  %996 = vmatprep.subr.mxu0 0.0
  %997 = vmatpush1.msra.mxu0 0.0
  %998 = vmatprep.subr.mxu0 0.0
  %999 = vmatpush1.msra.mxu0 0.0
  %1000 = vmatprep.subr.mxu0 0.0
  %1001 = vmatpush1.msra.mxu0 0.0
  %1002 = vmatprep.subr.mxu0 0.0
  %1003 = vmatpush1.msra.mxu0 0.0
  %1004 = vmatprep.subr.mxu0 0.0
  %1005 = vmatpush1.msra.mxu0 0.0
  %1006 = vmatprep.subr.mxu0 0.0
  %1007 = vmatpush1.msra.mxu0 0.0
  %1008 = vmatprep.subr.mxu0 0.0
  %1009 = vmatpush1.msra.mxu0 0.0
  %1010 = vmatprep.subr.mxu0 0.0
  %1011 = vmatpush1.msra.mxu0 0.0
  %1012 = vmatprep.subr.mxu0 0.0
  %1013 = vmatpush1.msra.mxu0 0.0
  %1014 = vmatprep.subr.mxu0 0.0
  %1015 = vmatpush1.msra.mxu0 0.0
  %1016 = vmatprep.subr.mxu0 0.0
  %1017 = vmatpush1.msra.mxu0 0.0
  %1018 = vmatprep.subr.mxu0 0.0
  %1019 = vmatpush1.msra.mxu0 0.0
  %1020 = vmatprep.subr.mxu0 0.0
  %1021 = vmatpush1.msra.mxu0 0.0
  %1022 = vmatprep.subr.mxu0 0.0
  %1023 = vmatpush1.msra.mxu0 0.0
  %1024 = vmatprep.subr.mxu0 0.0
  %1025 = vmatpush1.msra.mxu0 0.0
  %1026 = vmatprep.subr.mxu0 0.0
  %1027 = vmatpush1.msra.mxu0 0.0
  %1028 = vmatprep.subr.mxu0 0.0
  %1029 = vmatpush1.msra.mxu0 0.0
  %1030 = vmatprep.subr.mxu0 0.0
  %1031 = vmatpush1.msra.mxu0 0.0
  %1032 = vmatprep.subr.mxu0 0.0
  %1033 = vmatpush1.msra.mxu0 0.0
  %1034 = vmatprep.subr.mxu0 0.0
  %1035 = vmatpush1.msra.mxu0 0.0
  %1036 = vmatprep.subr.mxu0 0.0
  %1037 = vmatpush1.msra.mxu0 0.0
  %1038 = vmatprep.subr.mxu0 0.0
  %1039 = vmatpush1.msra.mxu0 0.0
  %1040 = vmatprep.subr.mxu0 0.0
  %1041 = vmatpush1.msra.mxu0 0.0
  %1042 = vmatprep.subr.mxu0 0.0
  %1043 = vmatpush1.msra.mxu0 0.0
  %1044 = vmatprep.subr.mxu0 0.0
  %1045 = vmatpush1.msra.mxu0 0.0
  %1046 = vmatprep.subr.mxu0 0.0
  %1047 = vmatpush1.msra.mxu0 0.0
  %1048 = vmatprep.subr.mxu0 0.0
  %1049 = vmatpush1.msra.mxu0 0.0
  %1050 = vmatprep.subr.mxu0 0.0
  %1051 = vmatpush1.msra.mxu0 0.0
  %1052 = vmatprep.subr.mxu0 0.0
  %1053 = vmatpush1.msra.mxu0 0.0
  %1054 = vmatprep.subr.mxu0 0.0
  %1055 = vmatpush1.msra.mxu0 0.0
  %1056 = vmatprep.mubr.f32.mxu0 0.0
  %1057 = vmatmul.mubr.f32.gmra.mrb[0].mxu0 %v836
  %v1058 = vpop.f32.mrb[0].mxu0
  %v1059 = vadd.f32 0.0, %v1058
  %v1060 = vpop.f32.mrb[0].mxu0
  %v1061 = vadd.f32 0.0, %v1060
  %1062 = vdwg.mxu0
  %v1063 = vadd.f32 %v795, %v917
  %v1064 = vadd.f32 %v796, %v919
  %v1065 = vadd.f32 %v797, %v988
  %v1066 = vadd.f32 %v798, %v990
  %v1067 = vadd.f32 %v799, %v1059
  %v1068 = vadd.f32 %v800, %v1061
  %s1069 = scalar_lea.vmem %s1, 16
  %v1070 = vld [vmem:[%s1069] sm:$0xf]
  %v1074 = vcombine.high %v29, %v29
  %v1075 = vcombine.high %v30, %v30
  %v1076 = vcombine.high %v31, %v31
  %v1078 = vsel %vm62, %v1070, 0
  %v1080 = vsel %vm66, %v29, 0
  %v1082 = vsel %vm66, %v1074, 0
  %v1084 = vsel %vm66, %v30, 0
  %v1086 = vsel %vm66, %v1075, 0
  %v1088 = vsel %vm66, %v31, 0
  %v1090 = vsel %vm66, %v1076, 0
  %1092 = vmatprep.subr.mxu0 %v1082
  %1093 = vmatpush1.msra.mxu0 %v1080
  %1094 = vmatprep.subr.mxu0 0.0
  %1095 = vmatpush1.msra.mxu0 0.0
  %1096 = vmatprep.subr.mxu0 0.0
  %1097 = vmatpush1.msra.mxu0 0.0
  %1098 = vmatprep.subr.mxu0 0.0
  %1099 = vmatpush1.msra.mxu0 0.0
  %1100 = vmatprep.subr.mxu0 0.0
  %1101 = vmatpush1.msra.mxu0 0.0
  %1102 = vmatprep.subr.mxu0 0.0
  %1103 = vmatpush1.msra.mxu0 0.0
  %1104 = vmatprep.subr.mxu0 0.0
  %1105 = vmatpush1.msra.mxu0 0.0
  %1106 = vmatprep.subr.mxu0 0.0
  %1107 = vmatpush1.msra.mxu0 0.0
  %1108 = vmatprep.subr.mxu0 0.0
  %1109 = vmatpush1.msra.mxu0 0.0
  %1110 = vmatprep.subr.mxu0 0.0
  %1111 = vmatpush1.msra.mxu0 0.0
  %1112 = vmatprep.subr.mxu0 0.0
  %1113 = vmatpush1.msra.mxu0 0.0
  %1114 = vmatprep.subr.mxu0 0.0
  %1115 = vmatpush1.msra.mxu0 0.0
  %1116 = vmatprep.subr.mxu0 0.0
  %1117 = vmatpush1.msra.mxu0 0.0
  %1118 = vmatprep.subr.mxu0 0.0
  %1119 = vmatpush1.msra.mxu0 0.0
  %1120 = vmatprep.subr.mxu0 0.0
  %1121 = vmatpush1.msra.mxu0 0.0
  %1122 = vmatprep.subr.mxu0 0.0
  %1123 = vmatpush1.msra.mxu0 0.0
  %1124 = vmatprep.subr.mxu0 0.0
  %1125 = vmatpush1.msra.mxu0 0.0
  %1126 = vmatprep.subr.mxu0 0.0
  %1127 = vmatpush1.msra.mxu0 0.0
  %1128 = vmatprep.subr.mxu0 0.0
  %1129 = vmatpush1.msra.mxu0 0.0
  %1130 = vmatprep.subr.mxu0 0.0
  %1131 = vmatpush1.msra.mxu0 0.0
  %1132 = vmatprep.subr.mxu0 0.0
  %1133 = vmatpush1.msra.mxu0 0.0
  %1134 = vmatprep.subr.mxu0 0.0
  %1135 = vmatpush1.msra.mxu0 0.0
  %1136 = vmatprep.subr.mxu0 0.0
  %1137 = vmatpush1.msra.mxu0 0.0
  %1138 = vmatprep.subr.mxu0 0.0
  %1139 = vmatpush1.msra.mxu0 0.0
  %1140 = vmatprep.subr.mxu0 0.0
  %1141 = vmatpush1.msra.mxu0 0.0
  %1142 = vmatprep.subr.mxu0 0.0
  %1143 = vmatpush1.msra.mxu0 0.0
  %1144 = vmatprep.subr.mxu0 0.0
  %1145 = vmatpush1.msra.mxu0 0.0
  %1146 = vmatprep.subr.mxu0 0.0
  %1147 = vmatpush1.msra.mxu0 0.0
  %1148 = vmatprep.subr.mxu0 0.0
  %1149 = vmatpush1.msra.mxu0 0.0
  %1150 = vmatprep.subr.mxu0 0.0
  %1151 = vmatpush1.msra.mxu0 0.0
  %1152 = vmatprep.subr.mxu0 0.0
  %1153 = vmatpush1.msra.mxu0 0.0
  %1154 = vmatprep.subr.mxu0 0.0
  %1155 = vmatpush1.msra.mxu0 0.0
  %1156 = vmatprep.mubr.f32.mxu0 0.0
  %1157 = vmatmul.mubr.f32.gmra.mrb[0].mxu0 %v1078
  %v1158 = vpop.f32.mrb[0].mxu0
  %v1159 = vadd.f32 0.0, %v1158
  %v1160 = vpop.f32.mrb[0].mxu0
  %v1161 = vadd.f32 0.0, %v1160
  %1162 = vdwg.mxu0
  %1163 = vmatprep.subr.mxu0 %v1086
  %1164 = vmatpush1.msra.mxu0 %v1084
  %1165 = vmatprep.subr.mxu0 0.0
  %1166 = vmatpush1.msra.mxu0 0.0
  %1167 = vmatprep.subr.mxu0 0.0
  %1168 = vmatpush1.msra.mxu0 0.0
  %1169 = vmatprep.subr.mxu0 0.0
  %1170 = vmatpush1.msra.mxu0 0.0
  %1171 = vmatprep.subr.mxu0 0.0
  %1172 = vmatpush1.msra.mxu0 0.0
  %1173 = vmatprep.subr.mxu0 0.0
  %1174 = vmatpush1.msra.mxu0 0.0
  %1175 = vmatprep.subr.mxu0 0.0
  %1176 = vmatpush1.msra.mxu0 0.0
  %1177 = vmatprep.subr.mxu0 0.0
  %1178 = vmatpush1.msra.mxu0 0.0
  %1179 = vmatprep.subr.mxu0 0.0
  %1180 = vmatpush1.msra.mxu0 0.0
  %1181 = vmatprep.subr.mxu0 0.0
  %1182 = vmatpush1.msra.mxu0 0.0
  %1183 = vmatprep.subr.mxu0 0.0
  %1184 = vmatpush1.msra.mxu0 0.0
  %1185 = vmatprep.subr.mxu0 0.0
  %1186 = vmatpush1.msra.mxu0 0.0
  %1187 = vmatprep.subr.mxu0 0.0
  %1188 = vmatpush1.msra.mxu0 0.0
  %1189 = vmatprep.subr.mxu0 0.0
  %1190 = vmatpush1.msra.mxu0 0.0
  %1191 = vmatprep.subr.mxu0 0.0
  %1192 = vmatpush1.msra.mxu0 0.0
  %1193 = vmatprep.subr.mxu0 0.0
  %1194 = vmatpush1.msra.mxu0 0.0
  %1195 = vmatprep.subr.mxu0 0.0
  %1196 = vmatpush1.msra.mxu0 0.0
  %1197 = vmatprep.subr.mxu0 0.0
  %1198 = vmatpush1.msra.mxu0 0.0
  %1199 = vmatprep.subr.mxu0 0.0
  %1200 = vmatpush1.msra.mxu0 0.0
  %1201 = vmatprep.subr.mxu0 0.0
  %1202 = vmatpush1.msra.mxu0 0.0
  %1203 = vmatprep.subr.mxu0 0.0
  %1204 = vmatpush1.msra.mxu0 0.0
  %1205 = vmatprep.subr.mxu0 0.0
  %1206 = vmatpush1.msra.mxu0 0.0
  %1207 = vmatprep.subr.mxu0 0.0
  %1208 = vmatpush1.msra.mxu0 0.0
  %1209 = vmatprep.subr.mxu0 0.0
  %1210 = vmatpush1.msra.mxu0 0.0
  %1211 = vmatprep.subr.mxu0 0.0
  %1212 = vmatpush1.msra.mxu0 0.0
  %1213 = vmatprep.subr.mxu0 0.0
  %1214 = vmatpush1.msra.mxu0 0.0
  %1215 = vmatprep.subr.mxu0 0.0
  %1216 = vmatpush1.msra.mxu0 0.0
  %1217 = vmatprep.subr.mxu0 0.0
  %1218 = vmatpush1.msra.mxu0 0.0
  %1219 = vmatprep.subr.mxu0 0.0
  %1220 = vmatpush1.msra.mxu0 0.0
  %1221 = vmatprep.subr.mxu0 0.0
  %1222 = vmatpush1.msra.mxu0 0.0
  %1223 = vmatprep.subr.mxu0 0.0
  %1224 = vmatpush1.msra.mxu0 0.0
  %1225 = vmatprep.subr.mxu0 0.0
  %1226 = vmatpush1.msra.mxu0 0.0
  %1227 = vmatprep.mubr.f32.mxu0 0.0
  %1228 = vmatmul.mubr.f32.gmra.mrb[0].mxu0 %v1078
  %v1229 = vpop.f32.mrb[0].mxu0
  %v1230 = vadd.f32 0.0, %v1229
  %v1231 = vpop.f32.mrb[0].mxu0
  %v1232 = vadd.f32 0.0, %v1231
  %1233 = vdwg.mxu0
  %1234 = vmatprep.subr.mxu0 %v1090
  %1235 = vmatpush1.msra.mxu0 %v1088
  %1236 = vmatprep.subr.mxu0 0.0
  %1237 = vmatpush1.msra.mxu0 0.0
  %1238 = vmatprep.subr.mxu0 0.0
  %1239 = vmatpush1.msra.mxu0 0.0
  %1240 = vmatprep.subr.mxu0 0.0
  %1241 = vmatpush1.msra.mxu0 0.0
  %1242 = vmatprep.subr.mxu0 0.0
  %1243 = vmatpush1.msra.mxu0 0.0
  %1244 = vmatprep.subr.mxu0 0.0
  %1245 = vmatpush1.msra.mxu0 0.0
  %1246 = vmatprep.subr.mxu0 0.0
  %1247 = vmatpush1.msra.mxu0 0.0
  %1248 = vmatprep.subr.mxu0 0.0
  %1249 = vmatpush1.msra.mxu0 0.0
  %1250 = vmatprep.subr.mxu0 0.0
  %1251 = vmatpush1.msra.mxu0 0.0
  %1252 = vmatprep.subr.mxu0 0.0
  %1253 = vmatpush1.msra.mxu0 0.0
  %1254 = vmatprep.subr.mxu0 0.0
  %1255 = vmatpush1.msra.mxu0 0.0
  %1256 = vmatprep.subr.mxu0 0.0
  %1257 = vmatpush1.msra.mxu0 0.0
  %1258 = vmatprep.subr.mxu0 0.0
  %1259 = vmatpush1.msra.mxu0 0.0
  %1260 = vmatprep.subr.mxu0 0.0
  %1261 = vmatpush1.msra.mxu0 0.0
  %1262 = vmatprep.subr.mxu0 0.0
  %1263 = vmatpush1.msra.mxu0 0.0
  %1264 = vmatprep.subr.mxu0 0.0
  %1265 = vmatpush1.msra.mxu0 0.0
  %1266 = vmatprep.subr.mxu0 0.0
  %1267 = vmatpush1.msra.mxu0 0.0
  %1268 = vmatprep.subr.mxu0 0.0
  %1269 = vmatpush1.msra.mxu0 0.0
  %1270 = vmatprep.subr.mxu0 0.0
  %1271 = vmatpush1.msra.mxu0 0.0
  %1272 = vmatprep.subr.mxu0 0.0
  %1273 = vmatpush1.msra.mxu0 0.0
  %1274 = vmatprep.subr.mxu0 0.0
  %1275 = vmatpush1.msra.mxu0 0.0
  %1276 = vmatprep.subr.mxu0 0.0
  %1277 = vmatpush1.msra.mxu0 0.0
  %1278 = vmatprep.subr.mxu0 0.0
  %1279 = vmatpush1.msra.mxu0 0.0
  %1280 = vmatprep.subr.mxu0 0.0
  %1281 = vmatpush1.msra.mxu0 0.0
  %1282 = vmatprep.subr.mxu0 0.0
  %1283 = vmatpush1.msra.mxu0 0.0
  %1284 = vmatprep.subr.mxu0 0.0
  %1285 = vmatpush1.msra.mxu0 0.0
  %1286 = vmatprep.subr.mxu0 0.0
  %1287 = vmatpush1.msra.mxu0 0.0
  %1288 = vmatprep.subr.mxu0 0.0
  %1289 = vmatpush1.msra.mxu0 0.0
  %1290 = vmatprep.subr.mxu0 0.0
  %1291 = vmatpush1.msra.mxu0 0.0
  %1292 = vmatprep.subr.mxu0 0.0
  %1293 = vmatpush1.msra.mxu0 0.0
  %1294 = vmatprep.subr.mxu0 0.0
  %1295 = vmatpush1.msra.mxu0 0.0
  %1296 = vmatprep.subr.mxu0 0.0
  %1297 = vmatpush1.msra.mxu0 0.0
  %1298 = vmatprep.mubr.f32.mxu0 0.0
  %1299 = vmatmul.mubr.f32.gmra.mrb[0].mxu0 %v1078
  %v1300 = vpop.f32.mrb[0].mxu0
  %v1301 = vadd.f32 0.0, %v1300
  %v1302 = vpop.f32.mrb[0].mxu0
  %v1303 = vadd.f32 0.0, %v1302
  %1304 = vdwg.mxu0
  %v1305 = vadd.f32 %v1063, %v1159
  %v1306 = vadd.f32 %v1064, %v1161
  %v1307 = vadd.f32 %v1065, %v1230
  %v1308 = vadd.f32 %v1066, %v1232
  %v1309 = vadd.f32 %v1067, %v1301
  %v1310 = vadd.f32 %v1068, %v1303
  %v1311 = vld [vmem:[%s0 + $0x4] sm:$0xff]
  %v1312 = vld [vmem:[%s0 + $0xc] sm:$0xff]
  %v1313 = vld [vmem:[%s0 + $0x14] sm:$0xff]
  %s1314 = scalar_lea.vmem %s1, 20
  %v1315 = vld [vmem:[%s1314] sm:$0xf]
  %v1319 = vcombine.high %v1311, %v1311
  %v1320 = vcombine.high %v1312, %v1312
  %v1321 = vcombine.high %v1313, %v1313
  %1322 = vrot.lane.b32.xlu0 %v1311, 127
  %v1323 = vpop.permute.xlu0 %1322
  %1324 = vrot.lane.b32.xlu0 %v1319, 127
  %v1325 = vpop.permute.xlu0 %1324
  %1326 = vrot.lane.b32.xlu0 %v1312, 127
  %v1327 = vpop.permute.xlu0 %1326
  %1328 = vrot.lane.b32.xlu0 %v1320, 127
  %v1329 = vpop.permute.xlu0 %1328
  %1330 = vrot.lane.b32.xlu0 %v1313, 127
  %v1331 = vpop.permute.xlu0 %1330
  %1332 = vrot.lane.b32.xlu0 %v1321, 127
  %v1333 = vpop.permute.xlu0 %1332
  %vm1334 = vcmask 1039360
  %v1335 = vsel %vm1334, %v1323, %v1325
  %v1336 = vsel %vm1334, %v1325, %v1327
  %v1337 = vsel %vm1334, %v1327, %v1329
  %v1338 = vsel %vm1334, %v1329, %v1331
  %v1339 = vsel %vm1334, %v1331, %v1333
  %v1341 = vsel %vm62, %v1315, 0
  %v1343 = vsel %vm66, %v1335, 0
  %v1345 = vsel %vm66, %v1336, 0
  %v1347 = vsel %vm66, %v1337, 0
  %v1349 = vsel %vm66, %v1338, 0
  %v1351 = vsel %vm66, %v1339, 0
  %v1353 = vsel %vm66, %v1333, 0
  %1355 = vmatprep.subr.mxu0 %v1345
  %1356 = vmatpush1.msra.mxu0 %v1343
  %1357 = vmatprep.subr.mxu0 0.0
  %1358 = vmatpush1.msra.mxu0 0.0
  %1359 = vmatprep.subr.mxu0 0.0
  %1360 = vmatpush1.msra.mxu0 0.0
  %1361 = vmatprep.subr.mxu0 0.0
  %1362 = vmatpush1.msra.mxu0 0.0
  %1363 = vmatprep.subr.mxu0 0.0
  %1364 = vmatpush1.msra.mxu0 0.0
  %1365 = vmatprep.subr.mxu0 0.0
  %1366 = vmatpush1.msra.mxu0 0.0
  %1367 = vmatprep.subr.mxu0 0.0
  %1368 = vmatpush1.msra.mxu0 0.0
  %1369 = vmatprep.subr.mxu0 0.0
  %1370 = vmatpush1.msra.mxu0 0.0
  %1371 = vmatprep.subr.mxu0 0.0
  %1372 = vmatpush1.msra.mxu0 0.0
  %1373 = vmatprep.subr.mxu0 0.0
  %1374 = vmatpush1.msra.mxu0 0.0
  %1375 = vmatprep.subr.mxu0 0.0
  %1376 = vmatpush1.msra.mxu0 0.0
  %1377 = vmatprep.subr.mxu0 0.0
  %1378 = vmatpush1.msra.mxu0 0.0
  %1379 = vmatprep.subr.mxu0 0.0
  %1380 = vmatpush1.msra.mxu0 0.0
  %1381 = vmatprep.subr.mxu0 0.0
  %1382 = vmatpush1.msra.mxu0 0.0
  %1383 = vmatprep.subr.mxu0 0.0
  %1384 = vmatpush1.msra.mxu0 0.0
  %1385 = vmatprep.subr.mxu0 0.0
  %1386 = vmatpush1.msra.mxu0 0.0
  %1387 = vmatprep.subr.mxu0 0.0
  %1388 = vmatpush1.msra.mxu0 0.0
  %1389 = vmatprep.subr.mxu0 0.0
  %1390 = vmatpush1.msra.mxu0 0.0
  %1391 = vmatprep.subr.mxu0 0.0
  %1392 = vmatpush1.msra.mxu0 0.0
  %1393 = vmatprep.subr.mxu0 0.0
  %1394 = vmatpush1.msra.mxu0 0.0
  %1395 = vmatprep.subr.mxu0 0.0
  %1396 = vmatpush1.msra.mxu0 0.0
  %1397 = vmatprep.subr.mxu0 0.0
  %1398 = vmatpush1.msra.mxu0 0.0
  %1399 = vmatprep.subr.mxu0 0.0
  %1400 = vmatpush1.msra.mxu0 0.0
  %1401 = vmatprep.subr.mxu0 0.0
  %1402 = vmatpush1.msra.mxu0 0.0
  %1403 = vmatprep.subr.mxu0 0.0
  %1404 = vmatpush1.msra.mxu0 0.0
  %1405 = vmatprep.subr.mxu0 0.0
  %1406 = vmatpush1.msra.mxu0 0.0
  %1407 = vmatprep.subr.mxu0 0.0
  %1408 = vmatpush1.msra.mxu0 0.0
  %1409 = vmatprep.subr.mxu0 0.0
  %1410 = vmatpush1.msra.mxu0 0.0
  %1411 = vmatprep.subr.mxu0 0.0
  %1412 = vmatpush1.msra.mxu0 0.0
  %1413 = vmatprep.subr.mxu0 0.0
  %1414 = vmatpush1.msra.mxu0 0.0
  %1415 = vmatprep.subr.mxu0 0.0
  %1416 = vmatpush1.msra.mxu0 0.0
  %1417 = vmatprep.subr.mxu0 0.0
  %1418 = vmatpush1.msra.mxu0 0.0
  %1419 = vmatprep.mubr.f32.mxu0 0.0
  %1420 = vmatmul.mubr.f32.gmra.mrb[0].mxu0 %v1341
  %v1421 = vpop.f32.mrb[0].mxu0
  %v1422 = vadd.f32 0.0, %v1421
  %v1423 = vpop.f32.mrb[0].mxu0
  %v1424 = vadd.f32 0.0, %v1423
  %1425 = vdwg.mxu0
  %1426 = vmatprep.subr.mxu0 %v1349
  %1427 = vmatpush1.msra.mxu0 %v1347
  %1428 = vmatprep.subr.mxu0 0.0
  %1429 = vmatpush1.msra.mxu0 0.0
  %1430 = vmatprep.subr.mxu0 0.0
  %1431 = vmatpush1.msra.mxu0 0.0
  %1432 = vmatprep.subr.mxu0 0.0
  %1433 = vmatpush1.msra.mxu0 0.0
  %1434 = vmatprep.subr.mxu0 0.0
  %1435 = vmatpush1.msra.mxu0 0.0
  %1436 = vmatprep.subr.mxu0 0.0
  %1437 = vmatpush1.msra.mxu0 0.0
  %1438 = vmatprep.subr.mxu0 0.0
  %1439 = vmatpush1.msra.mxu0 0.0
  %1440 = vmatprep.subr.mxu0 0.0
  %1441 = vmatpush1.msra.mxu0 0.0
  %1442 = vmatprep.subr.mxu0 0.0
  %1443 = vmatpush1.msra.mxu0 0.0
  %1444 = vmatprep.subr.mxu0 0.0
  %1445 = vmatpush1.msra.mxu0 0.0
  %1446 = vmatprep.subr.mxu0 0.0
  %1447 = vmatpush1.msra.mxu0 0.0
  %1448 = vmatprep.subr.mxu0 0.0
  %1449 = vmatpush1.msra.mxu0 0.0
  %1450 = vmatprep.subr.mxu0 0.0
  %1451 = vmatpush1.msra.mxu0 0.0
  %1452 = vmatprep.subr.mxu0 0.0
  %1453 = vmatpush1.msra.mxu0 0.0
  %1454 = vmatprep.subr.mxu0 0.0
  %1455 = vmatpush1.msra.mxu0 0.0
  %1456 = vmatprep.subr.mxu0 0.0
  %1457 = vmatpush1.msra.mxu0 0.0
  %1458 = vmatprep.subr.mxu0 0.0
  %1459 = vmatpush1.msra.mxu0 0.0
  %1460 = vmatprep.subr.mxu0 0.0
  %1461 = vmatpush1.msra.mxu0 0.0
  %1462 = vmatprep.subr.mxu0 0.0
  %1463 = vmatpush1.msra.mxu0 0.0
  %1464 = vmatprep.subr.mxu0 0.0
  %1465 = vmatpush1.msra.mxu0 0.0
  %1466 = vmatprep.subr.mxu0 0.0
  %1467 = vmatpush1.msra.mxu0 0.0
  %1468 = vmatprep.subr.mxu0 0.0
  %1469 = vmatpush1.msra.mxu0 0.0
  %1470 = vmatprep.subr.mxu0 0.0
  %1471 = vmatpush1.msra.mxu0 0.0
  %1472 = vmatprep.subr.mxu0 0.0
  %1473 = vmatpush1.msra.mxu0 0.0
  %1474 = vmatprep.subr.mxu0 0.0
  %1475 = vmatpush1.msra.mxu0 0.0
  %1476 = vmatprep.subr.mxu0 0.0
  %1477 = vmatpush1.msra.mxu0 0.0
  %1478 = vmatprep.subr.mxu0 0.0
  %1479 = vmatpush1.msra.mxu0 0.0
  %1480 = vmatprep.subr.mxu0 0.0
  %1481 = vmatpush1.msra.mxu0 0.0
  %1482 = vmatprep.subr.mxu0 0.0
  %1483 = vmatpush1.msra.mxu0 0.0
  %1484 = vmatprep.subr.mxu0 0.0
  %1485 = vmatpush1.msra.mxu0 0.0
  %1486 = vmatprep.subr.mxu0 0.0
  %1487 = vmatpush1.msra.mxu0 0.0
  %1488 = vmatprep.subr.mxu0 0.0
  %1489 = vmatpush1.msra.mxu0 0.0
  %1490 = vmatprep.mubr.f32.mxu0 0.0
  %1491 = vmatmul.mubr.f32.gmra.mrb[0].mxu0 %v1341
  %v1492 = vpop.f32.mrb[0].mxu0
  %v1493 = vadd.f32 0.0, %v1492
  %v1494 = vpop.f32.mrb[0].mxu0
  %v1495 = vadd.f32 0.0, %v1494
  %1496 = vdwg.mxu0
  %1497 = vmatprep.subr.mxu0 %v1353
  %1498 = vmatpush1.msra.mxu0 %v1351
  %1499 = vmatprep.subr.mxu0 0.0
  %1500 = vmatpush1.msra.mxu0 0.0
  %1501 = vmatprep.subr.mxu0 0.0
  %1502 = vmatpush1.msra.mxu0 0.0
  %1503 = vmatprep.subr.mxu0 0.0
  %1504 = vmatpush1.msra.mxu0 0.0
  %1505 = vmatprep.subr.mxu0 0.0
  %1506 = vmatpush1.msra.mxu0 0.0
  %1507 = vmatprep.subr.mxu0 0.0
  %1508 = vmatpush1.msra.mxu0 0.0
  %1509 = vmatprep.subr.mxu0 0.0
  %1510 = vmatpush1.msra.mxu0 0.0
  %1511 = vmatprep.subr.mxu0 0.0
  %1512 = vmatpush1.msra.mxu0 0.0
  %1513 = vmatprep.subr.mxu0 0.0
  %1514 = vmatpush1.msra.mxu0 0.0
  %1515 = vmatprep.subr.mxu0 0.0
  %1516 = vmatpush1.msra.mxu0 0.0
  %1517 = vmatprep.subr.mxu0 0.0
  %1518 = vmatpush1.msra.mxu0 0.0
  %1519 = vmatprep.subr.mxu0 0.0
  %1520 = vmatpush1.msra.mxu0 0.0
  %1521 = vmatprep.subr.mxu0 0.0
  %1522 = vmatpush1.msra.mxu0 0.0
  %1523 = vmatprep.subr.mxu0 0.0
  %1524 = vmatpush1.msra.mxu0 0.0
  %1525 = vmatprep.subr.mxu0 0.0
  %1526 = vmatpush1.msra.mxu0 0.0
  %1527 = vmatprep.subr.mxu0 0.0
  %1528 = vmatpush1.msra.mxu0 0.0
  %1529 = vmatprep.subr.mxu0 0.0
  %1530 = vmatpush1.msra.mxu0 0.0
  %1531 = vmatprep.subr.mxu0 0.0
  %1532 = vmatpush1.msra.mxu0 0.0
  %1533 = vmatprep.subr.mxu0 0.0
  %1534 = vmatpush1.msra.mxu0 0.0
  %1535 = vmatprep.subr.mxu0 0.0
  %1536 = vmatpush1.msra.mxu0 0.0
  %1537 = vmatprep.subr.mxu0 0.0
  %1538 = vmatpush1.msra.mxu0 0.0
  %1539 = vmatprep.subr.mxu0 0.0
  %1540 = vmatpush1.msra.mxu0 0.0
  %1541 = vmatprep.subr.mxu0 0.0
  %1542 = vmatpush1.msra.mxu0 0.0
  %1543 = vmatprep.subr.mxu0 0.0
  %1544 = vmatpush1.msra.mxu0 0.0
  %1545 = vmatprep.subr.mxu0 0.0
  %1546 = vmatpush1.msra.mxu0 0.0
  %1547 = vmatprep.subr.mxu0 0.0
  %1548 = vmatpush1.msra.mxu0 0.0
  %1549 = vmatprep.subr.mxu0 0.0
  %1550 = vmatpush1.msra.mxu0 0.0
  %1551 = vmatprep.subr.mxu0 0.0
  %1552 = vmatpush1.msra.mxu0 0.0
  %1553 = vmatprep.subr.mxu0 0.0
  %1554 = vmatpush1.msra.mxu0 0.0
  %1555 = vmatprep.subr.mxu0 0.0
  %1556 = vmatpush1.msra.mxu0 0.0
  %1557 = vmatprep.subr.mxu0 0.0
  %1558 = vmatpush1.msra.mxu0 0.0
  %1559 = vmatprep.subr.mxu0 0.0
  %1560 = vmatpush1.msra.mxu0 0.0
  %1561 = vmatprep.mubr.f32.mxu0 0.0
  %1562 = vmatmul.mubr.f32.gmra.mrb[0].mxu0 %v1341
  %v1563 = vpop.f32.mrb[0].mxu0
  %v1564 = vadd.f32 0.0, %v1563
  %v1565 = vpop.f32.mrb[0].mxu0
  %v1566 = vadd.f32 0.0, %v1565
  %1567 = vdwg.mxu0
  %v1568 = vadd.f32 %v1305, %v1422
  %v1569 = vadd.f32 %v1306, %v1424
  %v1570 = vadd.f32 %v1307, %v1493
  %v1571 = vadd.f32 %v1308, %v1495
  %v1572 = vadd.f32 %v1309, %v1564
  %v1573 = vadd.f32 %v1310, %v1566
  %v1574 = vld [vmem:[%s0 + $0x4] sm:$0xff]
  %v1575 = vld [vmem:[%s0 + $0xc] sm:$0xff]
  %v1576 = vld [vmem:[%s0 + $0x14] sm:$0xff]
  %s1577 = scalar_lea.vmem %s1, 24
  %v1578 = vld [vmem:[%s1577] sm:$0xf]
  %v1582 = vcombine.high %v1574, %v1574
  %v1583 = vcombine.high %v1575, %v1575
  %v1584 = vcombine.high %v1576, %v1576
  %1585 = vrot.lane.b32.xlu0 %v1574, 111
  %v1586 = vpop.permute.xlu0 %1585
  %1587 = vrot.lane.b32.xlu0 %v1582, 111
  %v1588 = vpop.permute.xlu0 %1587
  %1589 = vrot.lane.b32.xlu0 %v1575, 111
  %v1590 = vpop.permute.xlu0 %1589
  %1591 = vrot.lane.b32.xlu0 %v1583, 111
  %v1592 = vpop.permute.xlu0 %1591
  %1593 = vrot.lane.b32.xlu0 %v1576, 111
  %v1594 = vpop.permute.xlu0 %1593
  %1595 = vrot.lane.b32.xlu0 %v1584, 111
  %v1596 = vpop.permute.xlu0 %1595
  %vm1597 = vcmask 908288
  %v1598 = vsel %vm1597, %v1586, %v1588
  %v1599 = vsel %vm1597, %v1588, %v1590
  %v1600 = vsel %vm1597, %v1590, %v1592
  %v1601 = vsel %vm1597, %v1592, %v1594
  %v1602 = vsel %vm1597, %v1594, %v1596
  %v1604 = vsel %vm62, %v1578, 0
  %v1606 = vsel %vm66, %v1598, 0
  %v1608 = vsel %vm66, %v1599, 0
  %v1610 = vsel %vm66, %v1600, 0
  %v1612 = vsel %vm66, %v1601, 0
  %v1614 = vsel %vm66, %v1602, 0
  %v1616 = vsel %vm66, %v1596, 0
  %1618 = vmatprep.subr.mxu0 %v1608
  %1619 = vmatpush1.msra.mxu0 %v1606
  %1620 = vmatprep.subr.mxu0 0.0
  %1621 = vmatpush1.msra.mxu0 0.0
  %1622 = vmatprep.subr.mxu0 0.0
  %1623 = vmatpush1.msra.mxu0 0.0
  %1624 = vmatprep.subr.mxu0 0.0
  %1625 = vmatpush1.msra.mxu0 0.0
  %1626 = vmatprep.subr.mxu0 0.0
  %1627 = vmatpush1.msra.mxu0 0.0
  %1628 = vmatprep.subr.mxu0 0.0
  %1629 = vmatpush1.msra.mxu0 0.0
  %1630 = vmatprep.subr.mxu0 0.0
  %1631 = vmatpush1.msra.mxu0 0.0
  %1632 = vmatprep.subr.mxu0 0.0
  %1633 = vmatpush1.msra.mxu0 0.0
  %1634 = vmatprep.subr.mxu0 0.0
  %1635 = vmatpush1.msra.mxu0 0.0
  %1636 = vmatprep.subr.mxu0 0.0
  %1637 = vmatpush1.msra.mxu0 0.0
  %1638 = vmatprep.subr.mxu0 0.0
  %1639 = vmatpush1.msra.mxu0 0.0
  %1640 = vmatprep.subr.mxu0 0.0
  %1641 = vmatpush1.msra.mxu0 0.0
  %1642 = vmatprep.subr.mxu0 0.0
  %1643 = vmatpush1.msra.mxu0 0.0
  %1644 = vmatprep.subr.mxu0 0.0
  %1645 = vmatpush1.msra.mxu0 0.0
  %1646 = vmatprep.subr.mxu0 0.0
  %1647 = vmatpush1.msra.mxu0 0.0
  %1648 = vmatprep.subr.mxu0 0.0
  %1649 = vmatpush1.msra.mxu0 0.0
  %1650 = vmatprep.subr.mxu0 0.0
  %1651 = vmatpush1.msra.mxu0 0.0
  %1652 = vmatprep.subr.mxu0 0.0
  %1653 = vmatpush1.msra.mxu0 0.0
  %1654 = vmatprep.subr.mxu0 0.0
  %1655 = vmatpush1.msra.mxu0 0.0
  %1656 = vmatprep.subr.mxu0 0.0
  %1657 = vmatpush1.msra.mxu0 0.0
  %1658 = vmatprep.subr.mxu0 0.0
  %1659 = vmatpush1.msra.mxu0 0.0
  %1660 = vmatprep.subr.mxu0 0.0
  %1661 = vmatpush1.msra.mxu0 0.0
  %1662 = vmatprep.subr.mxu0 0.0
  %1663 = vmatpush1.msra.mxu0 0.0
  %1664 = vmatprep.subr.mxu0 0.0
  %1665 = vmatpush1.msra.mxu0 0.0
  %1666 = vmatprep.subr.mxu0 0.0
  %1667 = vmatpush1.msra.mxu0 0.0
  %1668 = vmatprep.subr.mxu0 0.0
  %1669 = vmatpush1.msra.mxu0 0.0
  %1670 = vmatprep.subr.mxu0 0.0
  %1671 = vmatpush1.msra.mxu0 0.0
  %1672 = vmatprep.subr.mxu0 0.0
  %1673 = vmatpush1.msra.mxu0 0.0
  %1674 = vmatprep.subr.mxu0 0.0
  %1675 = vmatpush1.msra.mxu0 0.0
  %1676 = vmatprep.subr.mxu0 0.0
  %1677 = vmatpush1.msra.mxu0 0.0
  %1678 = vmatprep.subr.mxu0 0.0
  %1679 = vmatpush1.msra.mxu0 0.0
  %1680 = vmatprep.subr.mxu0 0.0
  %1681 = vmatpush1.msra.mxu0 0.0
  %1682 = vmatprep.mubr.f32.mxu0 0.0
  %1683 = vmatmul.mubr.f32.gmra.mrb[0].mxu0 %v1604
  %v1684 = vpop.f32.mrb[0].mxu0
  %v1685 = vadd.f32 0.0, %v1684
  %v1686 = vpop.f32.mrb[0].mxu0
  %v1687 = vadd.f32 0.0, %v1686
  %1688 = vdwg.mxu0
  %1689 = vmatprep.subr.mxu0 %v1612
  %1690 = vmatpush1.msra.mxu0 %v1610
  %1691 = vmatprep.subr.mxu0 0.0
  %1692 = vmatpush1.msra.mxu0 0.0
  %1693 = vmatprep.subr.mxu0 0.0
  %1694 = vmatpush1.msra.mxu0 0.0
  %1695 = vmatprep.subr.mxu0 0.0
  %1696 = vmatpush1.msra.mxu0 0.0
  %1697 = vmatprep.subr.mxu0 0.0
  %1698 = vmatpush1.msra.mxu0 0.0
  %1699 = vmatprep.subr.mxu0 0.0
  %1700 = vmatpush1.msra.mxu0 0.0
  %1701 = vmatprep.subr.mxu0 0.0
  %1702 = vmatpush1.msra.mxu0 0.0
  %1703 = vmatprep.subr.mxu0 0.0
  %1704 = vmatpush1.msra.mxu0 0.0
  %1705 = vmatprep.subr.mxu0 0.0
  %1706 = vmatpush1.msra.mxu0 0.0
  %1707 = vmatprep.subr.mxu0 0.0
  %1708 = vmatpush1.msra.mxu0 0.0
  %1709 = vmatprep.subr.mxu0 0.0
  %1710 = vmatpush1.msra.mxu0 0.0
  %1711 = vmatprep.subr.mxu0 0.0
  %1712 = vmatpush1.msra.mxu0 0.0
  %1713 = vmatprep.subr.mxu0 0.0
  %1714 = vmatpush1.msra.mxu0 0.0
  %1715 = vmatprep.subr.mxu0 0.0
  %1716 = vmatpush1.msra.mxu0 0.0
  %1717 = vmatprep.subr.mxu0 0.0
  %1718 = vmatpush1.msra.mxu0 0.0
  %1719 = vmatprep.subr.mxu0 0.0
  %1720 = vmatpush1.msra.mxu0 0.0
  %1721 = vmatprep.subr.mxu0 0.0
  %1722 = vmatpush1.msra.mxu0 0.0
  %1723 = vmatprep.subr.mxu0 0.0
  %1724 = vmatpush1.msra.mxu0 0.0
  %1725 = vmatprep.subr.mxu0 0.0
  %1726 = vmatpush1.msra.mxu0 0.0
  %1727 = vmatprep.subr.mxu0 0.0
  %1728 = vmatpush1.msra.mxu0 0.0
  %1729 = vmatprep.subr.mxu0 0.0
  %1730 = vmatpush1.msra.mxu0 0.0
  %1731 = vmatprep.subr.mxu0 0.0
  %1732 = vmatpush1.msra.mxu0 0.0
  %1733 = vmatprep.subr.mxu0 0.0
  %1734 = vmatpush1.msra.mxu0 0.0
  %1735 = vmatprep.subr.mxu0 0.0
  %1736 = vmatpush1.msra.mxu0 0.0
  %1737 = vmatprep.subr.mxu0 0.0
  %1738 = vmatpush1.msra.mxu0 0.0
  %1739 = vmatprep.subr.mxu0 0.0
  %1740 = vmatpush1.msra.mxu0 0.0
  %1741 = vmatprep.subr.mxu0 0.0
  %1742 = vmatpush1.msra.mxu0 0.0
  %1743 = vmatprep.subr.mxu0 0.0
  %1744 = vmatpush1.msra.mxu0 0.0
  %1745 = vmatprep.subr.mxu0 0.0
  %1746 = vmatpush1.msra.mxu0 0.0
  %1747 = vmatprep.subr.mxu0 0.0
  %1748 = vmatpush1.msra.mxu0 0.0
  %1749 = vmatprep.subr.mxu0 0.0
  %1750 = vmatpush1.msra.mxu0 0.0
  %1751 = vmatprep.subr.mxu0 0.0
  %1752 = vmatpush1.msra.mxu0 0.0
  %1753 = vmatprep.mubr.f32.mxu0 0.0
  %1754 = vmatmul.mubr.f32.gmra.mrb[0].mxu0 %v1604
  %v1755 = vpop.f32.mrb[0].mxu0
  %v1756 = vadd.f32 0.0, %v1755
  %v1757 = vpop.f32.mrb[0].mxu0
  %v1758 = vadd.f32 0.0, %v1757
  %1759 = vdwg.mxu0
  %1760 = vmatprep.subr.mxu0 %v1616
  %1761 = vmatpush1.msra.mxu0 %v1614
  %1762 = vmatprep.subr.mxu0 0.0
  %1763 = vmatpush1.msra.mxu0 0.0
  %1764 = vmatprep.subr.mxu0 0.0
  %1765 = vmatpush1.msra.mxu0 0.0
  %1766 = vmatprep.subr.mxu0 0.0
  %1767 = vmatpush1.msra.mxu0 0.0
  %1768 = vmatprep.subr.mxu0 0.0
  %1769 = vmatpush1.msra.mxu0 0.0
  %1770 = vmatprep.subr.mxu0 0.0
  %1771 = vmatpush1.msra.mxu0 0.0
  %1772 = vmatprep.subr.mxu0 0.0
  %1773 = vmatpush1.msra.mxu0 0.0
  %1774 = vmatprep.subr.mxu0 0.0
  %1775 = vmatpush1.msra.mxu0 0.0
  %1776 = vmatprep.subr.mxu0 0.0
  %1777 = vmatpush1.msra.mxu0 0.0
  %1778 = vmatprep.subr.mxu0 0.0
  %1779 = vmatpush1.msra.mxu0 0.0
  %1780 = vmatprep.subr.mxu0 0.0
  %1781 = vmatpush1.msra.mxu0 0.0
  %1782 = vmatprep.subr.mxu0 0.0
  %1783 = vmatpush1.msra.mxu0 0.0
  %1784 = vmatprep.subr.mxu0 0.0
  %1785 = vmatpush1.msra.mxu0 0.0
  %1786 = vmatprep.subr.mxu0 0.0
  %1787 = vmatpush1.msra.mxu0 0.0
  %1788 = vmatprep.subr.mxu0 0.0
  %1789 = vmatpush1.msra.mxu0 0.0
  %1790 = vmatprep.subr.mxu0 0.0
  %1791 = vmatpush1.msra.mxu0 0.0
  %1792 = vmatprep.subr.mxu0 0.0
  %1793 = vmatpush1.msra.mxu0 0.0
  %1794 = vmatprep.subr.mxu0 0.0
  %1795 = vmatpush1.msra.mxu0 0.0
  %1796 = vmatprep.subr.mxu0 0.0
  %1797 = vmatpush1.msra.mxu0 0.0
  %1798 = vmatprep.subr.mxu0 0.0
  %1799 = vmatpush1.msra.mxu0 0.0
  %1800 = vmatprep.subr.mxu0 0.0
  %1801 = vmatpush1.msra.mxu0 0.0
  %1802 = vmatprep.subr.mxu0 0.0
  %1803 = vmatpush1.msra.mxu0 0.0
  %1804 = vmatprep.subr.mxu0 0.0
  %1805 = vmatpush1.msra.mxu0 0.0
  %1806 = vmatprep.subr.mxu0 0.0
  %1807 = vmatpush1.msra.mxu0 0.0
  %1808 = vmatprep.subr.mxu0 0.0
  %1809 = vmatpush1.msra.mxu0 0.0
  %1810 = vmatprep.subr.mxu0 0.0
  %1811 = vmatpush1.msra.mxu0 0.0
  %1812 = vmatprep.subr.mxu0 0.0
  %1813 = vmatpush1.msra.mxu0 0.0
  %1814 = vmatprep.subr.mxu0 0.0
  %1815 = vmatpush1.msra.mxu0 0.0
  %1816 = vmatprep.subr.mxu0 0.0
  %1817 = vmatpush1.msra.mxu0 0.0
  %1818 = vmatprep.subr.mxu0 0.0
  %1819 = vmatpush1.msra.mxu0 0.0
  %1820 = vmatprep.subr.mxu0 0.0
  %1821 = vmatpush1.msra.mxu0 0.0
  %1822 = vmatprep.subr.mxu0 0.0
  %1823 = vmatpush1.msra.mxu0 0.0
  %1824 = vmatprep.mubr.f32.mxu0 0.0
  %1825 = vmatmul.mubr.f32.gmra.mrb[0].mxu0 %v1604
  %v1826 = vpop.f32.mrb[0].mxu0
  %v1827 = vadd.f32 0.0, %v1826
  %v1828 = vpop.f32.mrb[0].mxu0
  %v1829 = vadd.f32 0.0, %v1828
  %1830 = vdwg.mxu0
  %v1831 = vadd.f32 %v1568, %v1685
  %v1832 = vadd.f32 %v1569, %v1687
  %v1833 = vadd.f32 %v1570, %v1756
  %v1834 = vadd.f32 %v1571, %v1758
  %v1835 = vadd.f32 %v1572, %v1827
  %v1836 = vadd.f32 %v1573, %v1829
  %v1837 = vld [vmem:[%s0 + $0x4] sm:$0xff]
  %v1838 = vld [vmem:[%s0 + $0xc] sm:$0xff]
  %v1839 = vld [vmem:[%s0 + $0x14] sm:$0xff]
  %s1840 = scalar_lea.vmem %s1, 28
  %v1841 = vld [vmem:[%s1840] sm:$0xf]
  %v1845 = vcombine.high %v1837, %v1837
  %v1846 = vcombine.high %v1838, %v1838
  %v1847 = vcombine.high %v1839, %v1839
  %1848 = vrot.lane.b32.xlu0 %v1837, 110
  %v1849 = vpop.permute.xlu0 %1848
  %1850 = vrot.lane.b32.xlu0 %v1845, 110
  %v1851 = vpop.permute.xlu0 %1850
  %1852 = vrot.lane.b32.xlu0 %v1838, 110
  %v1853 = vpop.permute.xlu0 %1852
  %1854 = vrot.lane.b32.xlu0 %v1846, 110
  %v1855 = vpop.permute.xlu0 %1854
  %1856 = vrot.lane.b32.xlu0 %v1839, 110
  %v1857 = vpop.permute.xlu0 %1856
  %1858 = vrot.lane.b32.xlu0 %v1847, 110
  %v1859 = vpop.permute.xlu0 %1858
  %vm1860 = vcmask 900096
  %v1861 = vsel %vm1860, %v1849, %v1851
  %v1862 = vsel %vm1860, %v1851, %v1853
  %v1863 = vsel %vm1860, %v1853, %v1855
  %v1864 = vsel %vm1860, %v1855, %v1857
  %v1865 = vsel %vm1860, %v1857, %v1859
  %v1867 = vsel %vm62, %v1841, 0
  %v1869 = vsel %vm66, %v1861, 0
  %v1871 = vsel %vm66, %v1862, 0
  %v1873 = vsel %vm66, %v1863, 0
  %v1875 = vsel %vm66, %v1864, 0
  %v1877 = vsel %vm66, %v1865, 0
  %v1879 = vsel %vm66, %v1859, 0
  %1881 = vmatprep.subr.mxu0 %v1871
  %1882 = vmatpush1.msra.mxu0 %v1869
  %1883 = vmatprep.subr.mxu0 0.0
  %1884 = vmatpush1.msra.mxu0 0.0
  %1885 = vmatprep.subr.mxu0 0.0
  %1886 = vmatpush1.msra.mxu0 0.0
  %1887 = vmatprep.subr.mxu0 0.0
  %1888 = vmatpush1.msra.mxu0 0.0
  %1889 = vmatprep.subr.mxu0 0.0
  %1890 = vmatpush1.msra.mxu0 0.0
  %1891 = vmatprep.subr.mxu0 0.0
  %1892 = vmatpush1.msra.mxu0 0.0
  %1893 = vmatprep.subr.mxu0 0.0
  %1894 = vmatpush1.msra.mxu0 0.0
  %1895 = vmatprep.subr.mxu0 0.0
  %1896 = vmatpush1.msra.mxu0 0.0
  %1897 = vmatprep.subr.mxu0 0.0
  %1898 = vmatpush1.msra.mxu0 0.0
  %1899 = vmatprep.subr.mxu0 0.0
  %1900 = vmatpush1.msra.mxu0 0.0
  %1901 = vmatprep.subr.mxu0 0.0
  %1902 = vmatpush1.msra.mxu0 0.0
  %1903 = vmatprep.subr.mxu0 0.0
  %1904 = vmatpush1.msra.mxu0 0.0
  %1905 = vmatprep.subr.mxu0 0.0
  %1906 = vmatpush1.msra.mxu0 0.0
  %1907 = vmatprep.subr.mxu0 0.0
  %1908 = vmatpush1.msra.mxu0 0.0
  %1909 = vmatprep.subr.mxu0 0.0
  %1910 = vmatpush1.msra.mxu0 0.0
  %1911 = vmatprep.subr.mxu0 0.0
  %1912 = vmatpush1.msra.mxu0 0.0
  %1913 = vmatprep.subr.mxu0 0.0
  %1914 = vmatpush1.msra.mxu0 0.0
  %1915 = vmatprep.subr.mxu0 0.0
  %1916 = vmatpush1.msra.mxu0 0.0
  %1917 = vmatprep.subr.mxu0 0.0
  %1918 = vmatpush1.msra.mxu0 0.0
  %1919 = vmatprep.subr.mxu0 0.0
  %1920 = vmatpush1.msra.mxu0 0.0
  %1921 = vmatprep.subr.mxu0 0.0
  %1922 = vmatpush1.msra.mxu0 0.0
  %1923 = vmatprep.subr.mxu0 0.0
  %1924 = vmatpush1.msra.mxu0 0.0
  %1925 = vmatprep.subr.mxu0 0.0
  %1926 = vmatpush1.msra.mxu0 0.0
  %1927 = vmatprep.subr.mxu0 0.0
  %1928 = vmatpush1.msra.mxu0 0.0
  %1929 = vmatprep.subr.mxu0 0.0
  %1930 = vmatpush1.msra.mxu0 0.0
  %1931 = vmatprep.subr.mxu0 0.0
  %1932 = vmatpush1.msra.mxu0 0.0
  %1933 = vmatprep.subr.mxu0 0.0
  %1934 = vmatpush1.msra.mxu0 0.0
  %1935 = vmatprep.subr.mxu0 0.0
  %1936 = vmatpush1.msra.mxu0 0.0
  %1937 = vmatprep.subr.mxu0 0.0
  %1938 = vmatpush1.msra.mxu0 0.0
  %1939 = vmatprep.subr.mxu0 0.0
  %1940 = vmatpush1.msra.mxu0 0.0
  %1941 = vmatprep.subr.mxu0 0.0
  %1942 = vmatpush1.msra.mxu0 0.0
  %1943 = vmatprep.subr.mxu0 0.0
  %1944 = vmatpush1.msra.mxu0 0.0
  %1945 = vmatprep.mubr.f32.mxu0 0.0
  %1946 = vmatmul.mubr.f32.gmra.mrb[0].mxu0 %v1867
  %v1947 = vpop.f32.mrb[0].mxu0
  %v1948 = vadd.f32 0.0, %v1947
  %v1949 = vpop.f32.mrb[0].mxu0
  %v1950 = vadd.f32 0.0, %v1949
  %1951 = vdwg.mxu0
  %1952 = vmatprep.subr.mxu0 %v1875
  %1953 = vmatpush1.msra.mxu0 %v1873
  %1954 = vmatprep.subr.mxu0 0.0
  %1955 = vmatpush1.msra.mxu0 0.0
  %1956 = vmatprep.subr.mxu0 0.0
  %1957 = vmatpush1.msra.mxu0 0.0
  %1958 = vmatprep.subr.mxu0 0.0
  %1959 = vmatpush1.msra.mxu0 0.0
  %1960 = vmatprep.subr.mxu0 0.0
  %1961 = vmatpush1.msra.mxu0 0.0
  %1962 = vmatprep.subr.mxu0 0.0
  %1963 = vmatpush1.msra.mxu0 0.0
  %1964 = vmatprep.subr.mxu0 0.0
  %1965 = vmatpush1.msra.mxu0 0.0
  %1966 = vmatprep.subr.mxu0 0.0
  %1967 = vmatpush1.msra.mxu0 0.0
  %1968 = vmatprep.subr.mxu0 0.0
  %1969 = vmatpush1.msra.mxu0 0.0
  %1970 = vmatprep.subr.mxu0 0.0
  %1971 = vmatpush1.msra.mxu0 0.0
  %1972 = vmatprep.subr.mxu0 0.0
  %1973 = vmatpush1.msra.mxu0 0.0
  %1974 = vmatprep.subr.mxu0 0.0
  %1975 = vmatpush1.msra.mxu0 0.0
  %1976 = vmatprep.subr.mxu0 0.0
  %1977 = vmatpush1.msra.mxu0 0.0
  %1978 = vmatprep.subr.mxu0 0.0
  %1979 = vmatpush1.msra.mxu0 0.0
  %1980 = vmatprep.subr.mxu0 0.0
  %1981 = vmatpush1.msra.mxu0 0.0
  %1982 = vmatprep.subr.mxu0 0.0
  %1983 = vmatpush1.msra.mxu0 0.0
  %1984 = vmatprep.subr.mxu0 0.0
  %1985 = vmatpush1.msra.mxu0 0.0
  %1986 = vmatprep.subr.mxu0 0.0
  %1987 = vmatpush1.msra.mxu0 0.0
  %1988 = vmatprep.subr.mxu0 0.0
  %1989 = vmatpush1.msra.mxu0 0.0
  %1990 = vmatprep.subr.mxu0 0.0
  %1991 = vmatpush1.msra.mxu0 0.0
  %1992 = vmatprep.subr.mxu0 0.0
  %1993 = vmatpush1.msra.mxu0 0.0
  %1994 = vmatprep.subr.mxu0 0.0
  %1995 = vmatpush1.msra.mxu0 0.0
  %1996 = vmatprep.subr.mxu0 0.0
  %1997 = vmatpush1.msra.mxu0 0.0
  %1998 = vmatprep.subr.mxu0 0.0
  %1999 = vmatpush1.msra.mxu0 0.0
  %2000 = vmatprep.subr.mxu0 0.0
  %2001 = vmatpush1.msra.mxu0 0.0
  %2002 = vmatprep.subr.mxu0 0.0
  %2003 = vmatpush1.msra.mxu0 0.0
  %2004 = vmatprep.subr.mxu0 0.0
  %2005 = vmatpush1.msra.mxu0 0.0
  %2006 = vmatprep.subr.mxu0 0.0
  %2007 = vmatpush1.msra.mxu0 0.0
  %2008 = vmatprep.subr.mxu0 0.0
  %2009 = vmatpush1.msra.mxu0 0.0
  %2010 = vmatprep.subr.mxu0 0.0
  %2011 = vmatpush1.msra.mxu0 0.0
  %2012 = vmatprep.subr.mxu0 0.0
  %2013 = vmatpush1.msra.mxu0 0.0
  %2014 = vmatprep.subr.mxu0 0.0
  %2015 = vmatpush1.msra.mxu0 0.0
  %2016 = vmatprep.mubr.f32.mxu0 0.0
  %2017 = vmatmul.mubr.f32.gmra.mrb[0].mxu0 %v1867
  %v2018 = vpop.f32.mrb[0].mxu0
  %v2019 = vadd.f32 0.0, %v2018
  %v2020 = vpop.f32.mrb[0].mxu0
  %v2021 = vadd.f32 0.0, %v2020
  %2022 = vdwg.mxu0
  %2023 = vmatprep.subr.mxu0 %v1879
  %2024 = vmatpush1.msra.mxu0 %v1877
  %2025 = vmatprep.subr.mxu0 0.0
  %2026 = vmatpush1.msra.mxu0 0.0
  %2027 = vmatprep.subr.mxu0 0.0
  %2028 = vmatpush1.msra.mxu0 0.0
  %2029 = vmatprep.subr.mxu0 0.0
  %2030 = vmatpush1.msra.mxu0 0.0
  %2031 = vmatprep.subr.mxu0 0.0
  %2032 = vmatpush1.msra.mxu0 0.0
  %2033 = vmatprep.subr.mxu0 0.0
  %2034 = vmatpush1.msra.mxu0 0.0
  %2035 = vmatprep.subr.mxu0 0.0
  %2036 = vmatpush1.msra.mxu0 0.0
  %2037 = vmatprep.subr.mxu0 0.0
  %2038 = vmatpush1.msra.mxu0 0.0
  %2039 = vmatprep.subr.mxu0 0.0
  %2040 = vmatpush1.msra.mxu0 0.0
  %2041 = vmatprep.subr.mxu0 0.0
  %2042 = vmatpush1.msra.mxu0 0.0
  %2043 = vmatprep.subr.mxu0 0.0
  %2044 = vmatpush1.msra.mxu0 0.0
  %2045 = vmatprep.subr.mxu0 0.0
  %2046 = vmatpush1.msra.mxu0 0.0
  %2047 = vmatprep.subr.mxu0 0.0
  %2048 = vmatpush1.msra.mxu0 0.0
  %2049 = vmatprep.subr.mxu0 0.0
  %2050 = vmatpush1.msra.mxu0 0.0
  %2051 = vmatprep.subr.mxu0 0.0
  %2052 = vmatpush1.msra.mxu0 0.0
  %2053 = vmatprep.subr.mxu0 0.0
  %2054 = vmatpush1.msra.mxu0 0.0
  %2055 = vmatprep.subr.mxu0 0.0
  %2056 = vmatpush1.msra.mxu0 0.0
  %2057 = vmatprep.subr.mxu0 0.0
  %2058 = vmatpush1.msra.mxu0 0.0
  %2059 = vmatprep.subr.mxu0 0.0
  %2060 = vmatpush1.msra.mxu0 0.0
  %2061 = vmatprep.subr.mxu0 0.0
  %2062 = vmatpush1.msra.mxu0 0.0
  %2063 = vmatprep.subr.mxu0 0.0
  %2064 = vmatpush1.msra.mxu0 0.0
  %2065 = vmatprep.subr.mxu0 0.0
  %2066 = vmatpush1.msra.mxu0 0.0
  %2067 = vmatprep.subr.mxu0 0.0
  %2068 = vmatpush1.msra.mxu0 0.0
  %2069 = vmatprep.subr.mxu0 0.0
  %2070 = vmatpush1.msra.mxu0 0.0
  %2071 = vmatprep.subr.mxu0 0.0
  %2072 = vmatpush1.msra.mxu0 0.0
  %2073 = vmatprep.subr.mxu0 0.0
  %2074 = vmatpush1.msra.mxu0 0.0
  %2075 = vmatprep.subr.mxu0 0.0
  %2076 = vmatpush1.msra.mxu0 0.0
  %2077 = vmatprep.subr.mxu0 0.0
  %2078 = vmatpush1.msra.mxu0 0.0
  %2079 = vmatprep.subr.mxu0 0.0
  %2080 = vmatpush1.msra.mxu0 0.0
  %2081 = vmatprep.subr.mxu0 0.0
  %2082 = vmatpush1.msra.mxu0 0.0
  %2083 = vmatprep.subr.mxu0 0.0
  %2084 = vmatpush1.msra.mxu0 0.0
  %2085 = vmatprep.subr.mxu0 0.0
  %2086 = vmatpush1.msra.mxu0 0.0
  %2087 = vmatprep.mubr.f32.mxu0 0.0
  %2088 = vmatmul.mubr.f32.gmra.mrb[0].mxu0 %v1867
  %v2089 = vpop.f32.mrb[0].mxu0
  %v2090 = vadd.f32 0.0, %v2089
  %v2091 = vpop.f32.mrb[0].mxu0
  %v2092 = vadd.f32 0.0, %v2091
  %2093 = vdwg.mxu0
  %v2094 = vadd.f32 %v1831, %v1948
  %v2095 = vadd.f32 %v1832, %v1950
  %v2096 = vadd.f32 %v1833, %v2019
  %v2097 = vadd.f32 %v1834, %v2021
  %v2098 = vadd.f32 %v1835, %v2090
  %v2099 = vadd.f32 %v1836, %v2092
  %v2100 = vld [vmem:[%s0 + $0x4] sm:$0xff]
  %v2101 = vld [vmem:[%s0 + $0xc] sm:$0xff]
  %v2102 = vld [vmem:[%s0 + $0x14] sm:$0xff]
  %s2103 = scalar_lea.vmem %s1, 32
  %v2104 = vld [vmem:[%s2103] sm:$0xf]
  %v2108 = vcombine.high %v2100, %v2100
  %v2109 = vcombine.high %v2101, %v2101
  %v2110 = vcombine.high %v2102, %v2102
  %2111 = vrot.lane.b32.xlu0 %v2100, 109
  %v2112 = vpop.permute.xlu0 %2111
  %2113 = vrot.lane.b32.xlu0 %v2108, 109
  %v2114 = vpop.permute.xlu0 %2113
  %2115 = vrot.lane.b32.xlu0 %v2101, 109
  %v2116 = vpop.permute.xlu0 %2115
  %2117 = vrot.lane.b32.xlu0 %v2109, 109
  %v2118 = vpop.permute.xlu0 %2117
  %2119 = vrot.lane.b32.xlu0 %v2102, 109
  %v2120 = vpop.permute.xlu0 %2119
  %2121 = vrot.lane.b32.xlu0 %v2110, 109
  %v2122 = vpop.permute.xlu0 %2121
  %vm2123 = vcmask 891904
  %v2124 = vsel %vm2123, %v2112, %v2114
  %v2125 = vsel %vm2123, %v2114, %v2116
  %v2126 = vsel %vm2123, %v2116, %v2118
  %v2127 = vsel %vm2123, %v2118, %v2120
  %v2128 = vsel %vm2123, %v2120, %v2122
  %v2130 = vsel %vm62, %v2104, 0
  %v2132 = vsel %vm66, %v2124, 0
  %v2134 = vsel %vm66, %v2125, 0
  %v2136 = vsel %vm66, %v2126, 0
  %v2138 = vsel %vm66, %v2127, 0
  %v2140 = vsel %vm66, %v2128, 0
  %v2142 = vsel %vm66, %v2122, 0
  %2144 = vmatprep.subr.mxu0 %v2134
  %2145 = vmatpush1.msra.mxu0 %v2132
  %2146 = vmatprep.subr.mxu0 0.0
  %2147 = vmatpush1.msra.mxu0 0.0
  %2148 = vmatprep.subr.mxu0 0.0
  %2149 = vmatpush1.msra.mxu0 0.0
  %2150 = vmatprep.subr.mxu0 0.0
  %2151 = vmatpush1.msra.mxu0 0.0
  %2152 = vmatprep.subr.mxu0 0.0
  %2153 = vmatpush1.msra.mxu0 0.0
  %2154 = vmatprep.subr.mxu0 0.0
  %2155 = vmatpush1.msra.mxu0 0.0
  %2156 = vmatprep.subr.mxu0 0.0
  %2157 = vmatpush1.msra.mxu0 0.0
  %2158 = vmatprep.subr.mxu0 0.0
  %2159 = vmatpush1.msra.mxu0 0.0
  %2160 = vmatprep.subr.mxu0 0.0
  %2161 = vmatpush1.msra.mxu0 0.0
  %2162 = vmatprep.subr.mxu0 0.0
  %2163 = vmatpush1.msra.mxu0 0.0
  %2164 = vmatprep.subr.mxu0 0.0
  %2165 = vmatpush1.msra.mxu0 0.0
  %2166 = vmatprep.subr.mxu0 0.0
  %2167 = vmatpush1.msra.mxu0 0.0
  %2168 = vmatprep.subr.mxu0 0.0
  %2169 = vmatpush1.msra.mxu0 0.0
  %2170 = vmatprep.subr.mxu0 0.0
  %2171 = vmatpush1.msra.mxu0 0.0
  %2172 = vmatprep.subr.mxu0 0.0
  %2173 = vmatpush1.msra.mxu0 0.0
  %2174 = vmatprep.subr.mxu0 0.0
  %2175 = vmatpush1.msra.mxu0 0.0
  %2176 = vmatprep.subr.mxu0 0.0
  %2177 = vmatpush1.msra.mxu0 0.0
  %2178 = vmatprep.subr.mxu0 0.0
  %2179 = vmatpush1.msra.mxu0 0.0
  %2180 = vmatprep.subr.mxu0 0.0
  %2181 = vmatpush1.msra.mxu0 0.0
  %2182 = vmatprep.subr.mxu0 0.0
  %2183 = vmatpush1.msra.mxu0 0.0
  %2184 = vmatprep.subr.mxu0 0.0
  %2185 = vmatpush1.msra.mxu0 0.0
  %2186 = vmatprep.subr.mxu0 0.0
  %2187 = vmatpush1.msra.mxu0 0.0
  %2188 = vmatprep.subr.mxu0 0.0
  %2189 = vmatpush1.msra.mxu0 0.0
  %2190 = vmatprep.subr.mxu0 0.0
  %2191 = vmatpush1.msra.mxu0 0.0
  %2192 = vmatprep.subr.mxu0 0.0
  %2193 = vmatpush1.msra.mxu0 0.0
  %2194 = vmatprep.subr.mxu0 0.0
  %2195 = vmatpush1.msra.mxu0 0.0
  %2196 = vmatprep.subr.mxu0 0.0
  %2197 = vmatpush1.msra.mxu0 0.0
  %2198 = vmatprep.subr.mxu0 0.0
  %2199 = vmatpush1.msra.mxu0 0.0
  %2200 = vmatprep.subr.mxu0 0.0
  %2201 = vmatpush1.msra.mxu0 0.0
  %2202 = vmatprep.subr.mxu0 0.0
  %2203 = vmatpush1.msra.mxu0 0.0
  %2204 = vmatprep.subr.mxu0 0.0
  %2205 = vmatpush1.msra.mxu0 0.0
  %2206 = vmatprep.subr.mxu0 0.0
  %2207 = vmatpush1.msra.mxu0 0.0
  %2208 = vmatprep.mubr.f32.mxu0 0.0
  %2209 = vmatmul.mubr.f32.gmra.mrb[0].mxu0 %v2130
  %v2210 = vpop.f32.mrb[0].mxu0
  %v2211 = vadd.f32 0.0, %v2210
  %v2212 = vpop.f32.mrb[0].mxu0
  %v2213 = vadd.f32 0.0, %v2212
  %2214 = vdwg.mxu0
  %2215 = vmatprep.subr.mxu0 %v2138
  %2216 = vmatpush1.msra.mxu0 %v2136
  %2217 = vmatprep.subr.mxu0 0.0
  %2218 = vmatpush1.msra.mxu0 0.0
  %2219 = vmatprep.subr.mxu0 0.0
  %2220 = vmatpush1.msra.mxu0 0.0
  %2221 = vmatprep.subr.mxu0 0.0
  %2222 = vmatpush1.msra.mxu0 0.0
  %2223 = vmatprep.subr.mxu0 0.0
  %2224 = vmatpush1.msra.mxu0 0.0
  %2225 = vmatprep.subr.mxu0 0.0
  %2226 = vmatpush1.msra.mxu0 0.0
  %2227 = vmatprep.subr.mxu0 0.0
  %2228 = vmatpush1.msra.mxu0 0.0
  %2229 = vmatprep.subr.mxu0 0.0
  %2230 = vmatpush1.msra.mxu0 0.0
  %2231 = vmatprep.subr.mxu0 0.0
  %2232 = vmatpush1.msra.mxu0 0.0
  %2233 = vmatprep.subr.mxu0 0.0
  %2234 = vmatpush1.msra.mxu0 0.0
  %2235 = vmatprep.subr.mxu0 0.0
  %2236 = vmatpush1.msra.mxu0 0.0
  %2237 = vmatprep.subr.mxu0 0.0
  %2238 = vmatpush1.msra.mxu0 0.0
  %2239 = vmatprep.subr.mxu0 0.0
  %2240 = vmatpush1.msra.mxu0 0.0
  %2241 = vmatprep.subr.mxu0 0.0
  %2242 = vmatpush1.msra.mxu0 0.0
  %2243 = vmatprep.subr.mxu0 0.0
  %2244 = vmatpush1.msra.mxu0 0.0
  %2245 = vmatprep.subr.mxu0 0.0
  %2246 = vmatpush1.msra.mxu0 0.0
  %2247 = vmatprep.subr.mxu0 0.0
  %2248 = vmatpush1.msra.mxu0 0.0
  %2249 = vmatprep.subr.mxu0 0.0
  %2250 = vmatpush1.msra.mxu0 0.0
  %2251 = vmatprep.subr.mxu0 0.0
  %2252 = vmatpush1.msra.mxu0 0.0
  %2253 = vmatprep.subr.mxu0 0.0
  %2254 = vmatpush1.msra.mxu0 0.0
  %2255 = vmatprep.subr.mxu0 0.0
  %2256 = vmatpush1.msra.mxu0 0.0
  %2257 = vmatprep.subr.mxu0 0.0
  %2258 = vmatpush1.msra.mxu0 0.0
  %2259 = vmatprep.subr.mxu0 0.0
  %2260 = vmatpush1.msra.mxu0 0.0
  %2261 = vmatprep.subr.mxu0 0.0
  %2262 = vmatpush1.msra.mxu0 0.0
  %2263 = vmatprep.subr.mxu0 0.0
  %2264 = vmatpush1.msra.mxu0 0.0
  %2265 = vmatprep.subr.mxu0 0.0
  %2266 = vmatpush1.msra.mxu0 0.0
  %2267 = vmatprep.subr.mxu0 0.0
  %2268 = vmatpush1.msra.mxu0 0.0
  %2269 = vmatprep.subr.mxu0 0.0
  %2270 = vmatpush1.msra.mxu0 0.0
  %2271 = vmatprep.subr.mxu0 0.0
  %2272 = vmatpush1.msra.mxu0 0.0
  %2273 = vmatprep.subr.mxu0 0.0
  %2274 = vmatpush1.msra.mxu0 0.0
  %2275 = vmatprep.subr.mxu0 0.0
  %2276 = vmatpush1.msra.mxu0 0.0
  %2277 = vmatprep.subr.mxu0 0.0
  %2278 = vmatpush1.msra.mxu0 0.0
  %2279 = vmatprep.mubr.f32.mxu0 0.0
  %2280 = vmatmul.mubr.f32.gmra.mrb[0].mxu0 %v2130
  %v2281 = vpop.f32.mrb[0].mxu0
  %v2282 = vadd.f32 0.0, %v2281
  %v2283 = vpop.f32.mrb[0].mxu0
  %v2284 = vadd.f32 0.0, %v2283
  %2285 = vdwg.mxu0
  %2286 = vmatprep.subr.mxu0 %v2142
  %2287 = vmatpush1.msra.mxu0 %v2140
  %2288 = vmatprep.subr.mxu0 0.0
  %2289 = vmatpush1.msra.mxu0 0.0
  %2290 = vmatprep.subr.mxu0 0.0
  %2291 = vmatpush1.msra.mxu0 0.0
  %2292 = vmatprep.subr.mxu0 0.0
  %2293 = vmatpush1.msra.mxu0 0.0
  %2294 = vmatprep.subr.mxu0 0.0
  %2295 = vmatpush1.msra.mxu0 0.0
  %2296 = vmatprep.subr.mxu0 0.0
  %2297 = vmatpush1.msra.mxu0 0.0
  %2298 = vmatprep.subr.mxu0 0.0
  %2299 = vmatpush1.msra.mxu0 0.0
  %2300 = vmatprep.subr.mxu0 0.0
  %2301 = vmatpush1.msra.mxu0 0.0
  %2302 = vmatprep.subr.mxu0 0.0
  %2303 = vmatpush1.msra.mxu0 0.0
  %2304 = vmatprep.subr.mxu0 0.0
  %2305 = vmatpush1.msra.mxu0 0.0
  %2306 = vmatprep.subr.mxu0 0.0
  %2307 = vmatpush1.msra.mxu0 0.0
  %2308 = vmatprep.subr.mxu0 0.0
  %2309 = vmatpush1.msra.mxu0 0.0
  %2310 = vmatprep.subr.mxu0 0.0
  %2311 = vmatpush1.msra.mxu0 0.0
  %2312 = vmatprep.subr.mxu0 0.0
  %2313 = vmatpush1.msra.mxu0 0.0
  %2314 = vmatprep.subr.mxu0 0.0
  %2315 = vmatpush1.msra.mxu0 0.0
  %2316 = vmatprep.subr.mxu0 0.0
  %2317 = vmatpush1.msra.mxu0 0.0
  %2318 = vmatprep.subr.mxu0 0.0
  %2319 = vmatpush1.msra.mxu0 0.0
  %2320 = vmatprep.subr.mxu0 0.0
  %2321 = vmatpush1.msra.mxu0 0.0
  %2322 = vmatprep.subr.mxu0 0.0
  %2323 = vmatpush1.msra.mxu0 0.0
  %2324 = vmatprep.subr.mxu0 0.0
  %2325 = vmatpush1.msra.mxu0 0.0
  %2326 = vmatprep.subr.mxu0 0.0
  %2327 = vmatpush1.msra.mxu0 0.0
  %2328 = vmatprep.subr.mxu0 0.0
  %2329 = vmatpush1.msra.mxu0 0.0
  %2330 = vmatprep.subr.mxu0 0.0
  %2331 = vmatpush1.msra.mxu0 0.0
  %2332 = vmatprep.subr.mxu0 0.0
  %2333 = vmatpush1.msra.mxu0 0.0
  %2334 = vmatprep.subr.mxu0 0.0
  %2335 = vmatpush1.msra.mxu0 0.0
  %2336 = vmatprep.subr.mxu0 0.0
  %2337 = vmatpush1.msra.mxu0 0.0
  %2338 = vmatprep.subr.mxu0 0.0
  %2339 = vmatpush1.msra.mxu0 0.0
  %2340 = vmatprep.subr.mxu0 0.0
  %2341 = vmatpush1.msra.mxu0 0.0
  %2342 = vmatprep.subr.mxu0 0.0
  %2343 = vmatpush1.msra.mxu0 0.0
  %2344 = vmatprep.subr.mxu0 0.0
  %2345 = vmatpush1.msra.mxu0 0.0
  %2346 = vmatprep.subr.mxu0 0.0
  %2347 = vmatpush1.msra.mxu0 0.0
  %2348 = vmatprep.subr.mxu0 0.0
  %2349 = vmatpush1.msra.mxu0 0.0
  %2350 = vmatprep.mubr.f32.mxu0 0.0
  %2351 = vmatmul.mubr.f32.gmra.mrb[0].mxu0 %v2130
  %v2352 = vpop.f32.mrb[0].mxu0
  %v2353 = vadd.f32 0.0, %v2352
  %v2354 = vpop.f32.mrb[0].mxu0
  %v2355 = vadd.f32 0.0, %v2354
  %2356 = vdwg.mxu0
  %v2357 = vadd.f32 %v2094, %v2211
  %v2358 = vadd.f32 %v2095, %v2213
  %v2359 = vadd.f32 %v2096, %v2282
  %v2360 = vadd.f32 %v2097, %v2284
  %v2361 = vadd.f32 %v2098, %v2353
  %v2362 = vadd.f32 %v2099, %v2355
  %v2363 = vld [vmem:[%s3] sm:$0xf]
  %2365 = vset.pattern.permute.xlu0 0
  %2366 = vperm.xlu0 %2365, %v2363
  %v2367 = vpop.permute.xlu0 %2366
  %v2369 = vmul.f32 %v2357, %v2367
  %v2370 = vmul.f32 %v2358, %v2367
  %v2371 = vmul.f32 %v2359, %v2367
  %v2372 = vmul.f32 %v2360, %v2367
  %v2373 = vmul.f32 %v2361, %v2367
  %v2374 = vmul.f32 %v2362, %v2367
  %v2375 = vld [vmem:[%s4] sm:$0xf]
  %2377 = vset.pattern.permute.xlu0 0
  %2378 = vperm.xlu0 %2377, %v2375
  %v2379 = vpop.permute.xlu0 %2378
  %v2381 = vadd.f32 %v2369, %v2379
  %v2382 = vadd.f32 %v2370, %v2379
  %v2383 = vadd.f32 %v2371, %v2379
  %v2384 = vadd.f32 %v2372, %v2379
  %v2385 = vadd.f32 %v2373, %v2379
  %v2386 = vadd.f32 %v2374, %v2379
  %vm2387 = vcmp.gt.f32.partialorder %v2381, 0.0
  %vm2388 = vcmp.gt.f32.partialorder %v2382, 0.0
  %vm2389 = vcmp.gt.f32.partialorder %v2383, 0.0
  %vm2390 = vcmp.gt.f32.partialorder %v2384, 0.0
  %vm2391 = vcmp.gt.f32.partialorder %v2385, 0.0
  %vm2392 = vcmp.gt.f32.partialorder %v2386, 0.0
  %v2393 = vmul.f32 %v2381, 0.2
  %v2394 = vmul.f32 %v2382, 0.2
  %v2395 = vmul.f32 %v2383, 0.2
  %v2396 = vmul.f32 %v2384, 0.2
  %v2397 = vmul.f32 %v2385, 0.2
  %v2398 = vmul.f32 %v2386, 0.2
  %v2399 = vsel %vm2387, %v2381, %v2393
  %v2400 = vsel %vm2388, %v2382, %v2394
  %v2401 = vsel %vm2389, %v2383, %v2395
  %v2402 = vsel %vm2390, %v2384, %v2396
  %v2403 = vsel %vm2391, %v2385, %v2397
  %v2404 = vsel %vm2392, %v2386, %v2398
  %v2405 = vld [vmem:[%s7] sm:$0x3f]
  %v2407 = vlaneseq
  %v2408 = vshrl.u32 %v2407, 7
  %v2409 = vsub.s32 0, %v2408
  %v2410 = vrot.slane %v2405, %v2409
  %v2411 = vlaneseq
  %v2412 = vshrl.u32 %v2411, 7
  %v2413 = vsub.s32 1, %v2412
  %v2414 = vrot.slane %v2405, %v2413
  %v2415 = vlaneseq
  %v2416 = vshrl.u32 %v2415, 7
  %v2417 = vsub.s32 2, %v2416
  %v2418 = vrot.slane %v2405, %v2417
  %v2419 = vlaneseq
  %v2420 = vshrl.u32 %v2419, 7
  %v2421 = vsub.s32 3, %v2420
  %v2422 = vrot.slane %v2405, %v2421
  %v2423 = vlaneseq
  %v2424 = vshrl.u32 %v2423, 7
  %v2425 = vsub.s32 4, %v2424
  %v2426 = vrot.slane %v2405, %v2425
  %v2427 = vlaneseq
  %v2428 = vshrl.u32 %v2427, 7
  %v2429 = vsub.s32 5, %v2428
  %v2430 = vrot.slane %v2405, %v2429
  %v2437 = vmul.f32 %v2399, %v2410
  %v2438 = vmul.f32 %v2400, %v2414
  %v2439 = vmul.f32 %v2401, %v2418
  %v2440 = vmul.f32 %v2402, %v2422
  %v2441 = vmul.f32 %v2403, %v2426
  %v2442 = vmul.f32 %v2404, %v2430
  %2443 = vst [vmem:[#allocation2] sm:$0xf] 0.0
  %vm2444 = vcmask 1043520
  %vm2445 = vcmask 64516
  %vm2446 = vmor %vm2445, %vm2444
  %2447 = vst.msk [vmem:[#allocation2 + $0x18] sm:$0xff] %vm2446, 0.0
  %v2454 = vcombine.low %v2437, %v2438
  %v2455 = vcombine.low %v2439, %v2440
  %v2456 = vcombine.low %v2441, %v2442
  %2460 = vst [vmem:[#allocation2 + $0x4] sm:$0xff] %v2454
  %2461 = vst [vmem:[#allocation2 + $0xc] sm:$0xff] %v2455
  %vm2462 = vmor %vm2445, %vm66
  %2463 = vst.msk [vmem:[#allocation2 + $0x14] sm:$0xff] %vm2462, %v2456
  %v2464 = vld [vmem:[%s2] sm:$0xf]
  %v2465 = vld [vmem:[#allocation2] sm:$0xff]
  %v2466 = vld [vmem:[#allocation2 + $0x8] sm:$0xff]
  %v2467 = vld [vmem:[#allocation2 + $0x10] sm:$0xff]
  %s2468 = scalar_lea.vmem %s2, 4
  %v2469 = vld [vmem:[%s2468] sm:$0xf]
  %v2473 = vcombine.high %v2465, %v2465
  %v2474 = vcombine.high %v2466, %v2466
  %v2475 = vcombine.high %v2467, %v2467
  %2476 = vrot.lane.b32.xlu0 %v2465, 18
  %v2477 = vpop.permute.xlu0 %2476
  %2478 = vrot.lane.b32.xlu0 %v2473, 18
  %v2479 = vpop.permute.xlu0 %2478
  %2480 = vrot.lane.b32.xlu0 %v2466, 18
  %v2481 = vpop.permute.xlu0 %2480
  %2482 = vrot.lane.b32.xlu0 %v2474, 18
  %v2483 = vpop.permute.xlu0 %2482
  %2484 = vrot.lane.b32.xlu0 %v2467, 18
  %v2485 = vpop.permute.xlu0 %2484
  %2486 = vrot.lane.b32.xlu0 %v2475, 18
  %v2487 = vpop.permute.xlu0 %2486
  %v2488 = vsel %vm56, %v2477, %v2479
  %v2489 = vsel %vm56, %v2479, %v2481
  %v2490 = vsel %vm56, %v2481, %v2483
  %v2491 = vsel %vm56, %v2483, %v2485
  %v2492 = vsel %vm56, %v2485, %v2487
  %v2494 = vsel %vm62, %v2469, 0
  %v2496 = vsel %vm66, %v2488, 0
  %v2498 = vsel %vm66, %v2489, 0
  %v2500 = vsel %vm66, %v2490, 0
  %v2502 = vsel %vm66, %v2491, 0
  %v2504 = vsel %vm66, %v2492, 0
  %v2506 = vsel %vm66, %v2487, 0
  %2508 = vmatprep.subr.mxu0 %v2498
  %2509 = vmatpush1.msra.mxu0 %v2496
  %2510 = vmatprep.subr.mxu0 0.0
  %2511 = vmatpush1.msra.mxu0 0.0
  %2512 = vmatprep.subr.mxu0 0.0
  %2513 = vmatpush1.msra.mxu0 0.0
  %2514 = vmatprep.subr.mxu0 0.0
  %2515 = vmatpush1.msra.mxu0 0.0
  %2516 = vmatprep.subr.mxu0 0.0
  %2517 = vmatpush1.msra.mxu0 0.0
  %2518 = vmatprep.subr.mxu0 0.0
  %2519 = vmatpush1.msra.mxu0 0.0
  %2520 = vmatprep.subr.mxu0 0.0
  %2521 = vmatpush1.msra.mxu0 0.0
  %2522 = vmatprep.subr.mxu0 0.0
  %2523 = vmatpush1.msra.mxu0 0.0
  %2524 = vmatprep.subr.mxu0 0.0
  %2525 = vmatpush1.msra.mxu0 0.0
  %2526 = vmatprep.subr.mxu0 0.0
  %2527 = vmatpush1.msra.mxu0 0.0
  %2528 = vmatprep.subr.mxu0 0.0
  %2529 = vmatpush1.msra.mxu0 0.0
  %2530 = vmatprep.subr.mxu0 0.0
  %2531 = vmatpush1.msra.mxu0 0.0
  %2532 = vmatprep.subr.mxu0 0.0
  %2533 = vmatpush1.msra.mxu0 0.0
  %2534 = vmatprep.subr.mxu0 0.0
  %2535 = vmatpush1.msra.mxu0 0.0
  %2536 = vmatprep.subr.mxu0 0.0
  %2537 = vmatpush1.msra.mxu0 0.0
  %2538 = vmatprep.subr.mxu0 0.0
  %2539 = vmatpush1.msra.mxu0 0.0
  %2540 = vmatprep.subr.mxu0 0.0
  %2541 = vmatpush1.msra.mxu0 0.0
  %2542 = vmatprep.subr.mxu0 0.0
  %2543 = vmatpush1.msra.mxu0 0.0
  %2544 = vmatprep.subr.mxu0 0.0
  %2545 = vmatpush1.msra.mxu0 0.0
  %2546 = vmatprep.subr.mxu0 0.0
  %2547 = vmatpush1.msra.mxu0 0.0
  %2548 = vmatprep.subr.mxu0 0.0
  %2549 = vmatpush1.msra.mxu0 0.0
  %2550 = vmatprep.subr.mxu0 0.0
  %2551 = vmatpush1.msra.mxu0 0.0
  %2552 = vmatprep.subr.mxu0 0.0
  %2553 = vmatpush1.msra.mxu0 0.0
  %2554 = vmatprep.subr.mxu0 0.0
  %2555 = vmatpush1.msra.mxu0 0.0
  %2556 = vmatprep.subr.mxu0 0.0
  %2557 = vmatpush1.msra.mxu0 0.0
  %2558 = vmatprep.subr.mxu0 0.0
  %2559 = vmatpush1.msra.mxu0 0.0
  %2560 = vmatprep.subr.mxu0 0.0
  %2561 = vmatpush1.msra.mxu0 0.0
  %2562 = vmatprep.subr.mxu0 0.0
  %2563 = vmatpush1.msra.mxu0 0.0
  %2564 = vmatprep.subr.mxu0 0.0
  %2565 = vmatpush1.msra.mxu0 0.0
  %2566 = vmatprep.subr.mxu0 0.0
  %2567 = vmatpush1.msra.mxu0 0.0
  %2568 = vmatprep.subr.mxu0 0.0
  %2569 = vmatpush1.msra.mxu0 0.0
  %2570 = vmatprep.subr.mxu0 0.0
  %2571 = vmatpush1.msra.mxu0 0.0
  %2572 = vmatprep.mubr.f32.mxu0 0.0
  %2573 = vmatmul.mubr.f32.gmra.mrb[0].mxu0 %v2494
  %v2574 = vpop.f32.mrb[0].mxu0
  %v2575 = vadd.f32 0.0, %v2574
  %v2576 = vpop.f32.mrb[0].mxu0
  %v2577 = vadd.f32 0.0, %v2576
  %2578 = vdwg.mxu0
  %2579 = vmatprep.subr.mxu0 %v2502
  %2580 = vmatpush1.msra.mxu0 %v2500
  %2581 = vmatprep.subr.mxu0 0.0
  %2582 = vmatpush1.msra.mxu0 0.0
  %2583 = vmatprep.subr.mxu0 0.0
  %2584 = vmatpush1.msra.mxu0 0.0
  %2585 = vmatprep.subr.mxu0 0.0
  %2586 = vmatpush1.msra.mxu0 0.0
  %2587 = vmatprep.subr.mxu0 0.0
  %2588 = vmatpush1.msra.mxu0 0.0
  %2589 = vmatprep.subr.mxu0 0.0
  %2590 = vmatpush1.msra.mxu0 0.0
  %2591 = vmatprep.subr.mxu0 0.0
  %2592 = vmatpush1.msra.mxu0 0.0
  %2593 = vmatprep.subr.mxu0 0.0
  %2594 = vmatpush1.msra.mxu0 0.0
  %2595 = vmatprep.subr.mxu0 0.0
  %2596 = vmatpush1.msra.mxu0 0.0
  %2597 = vmatprep.subr.mxu0 0.0
  %2598 = vmatpush1.msra.mxu0 0.0
  %2599 = vmatprep.subr.mxu0 0.0
  %2600 = vmatpush1.msra.mxu0 0.0
  %2601 = vmatprep.subr.mxu0 0.0
  %2602 = vmatpush1.msra.mxu0 0.0
  %2603 = vmatprep.subr.mxu0 0.0
  %2604 = vmatpush1.msra.mxu0 0.0
  %2605 = vmatprep.subr.mxu0 0.0
  %2606 = vmatpush1.msra.mxu0 0.0
  %2607 = vmatprep.subr.mxu0 0.0
  %2608 = vmatpush1.msra.mxu0 0.0
  %2609 = vmatprep.subr.mxu0 0.0
  %2610 = vmatpush1.msra.mxu0 0.0
  %2611 = vmatprep.subr.mxu0 0.0
  %2612 = vmatpush1.msra.mxu0 0.0
  %2613 = vmatprep.subr.mxu0 0.0
  %2614 = vmatpush1.msra.mxu0 0.0
  %2615 = vmatprep.subr.mxu0 0.0
  %2616 = vmatpush1.msra.mxu0 0.0
  %2617 = vmatprep.subr.mxu0 0.0
  %2618 = vmatpush1.msra.mxu0 0.0
  %2619 = vmatprep.subr.mxu0 0.0
  %2620 = vmatpush1.msra.mxu0 0.0
  %2621 = vmatprep.subr.mxu0 0.0
  %2622 = vmatpush1.msra.mxu0 0.0
  %2623 = vmatprep.subr.mxu0 0.0
  %2624 = vmatpush1.msra.mxu0 0.0
  %2625 = vmatprep.subr.mxu0 0.0
  %2626 = vmatpush1.msra.mxu0 0.0
  %2627 = vmatprep.subr.mxu0 0.0
  %2628 = vmatpush1.msra.mxu0 0.0
  %2629 = vmatprep.subr.mxu0 0.0
  %2630 = vmatpush1.msra.mxu0 0.0
  %2631 = vmatprep.subr.mxu0 0.0
  %2632 = vmatpush1.msra.mxu0 0.0
  %2633 = vmatprep.subr.mxu0 0.0
  %2634 = vmatpush1.msra.mxu0 0.0
  %2635 = vmatprep.subr.mxu0 0.0
  %2636 = vmatpush1.msra.mxu0 0.0
  %2637 = vmatprep.subr.mxu0 0.0
  %2638 = vmatpush1.msra.mxu0 0.0
  %2639 = vmatprep.subr.mxu0 0.0
  %2640 = vmatpush1.msra.mxu0 0.0
  %2641 = vmatprep.subr.mxu0 0.0
  %2642 = vmatpush1.msra.mxu0 0.0
  %2643 = vmatprep.mubr.f32.mxu0 0.0
  %2644 = vmatmul.mubr.f32.gmra.mrb[0].mxu0 %v2494
  %v2645 = vpop.f32.mrb[0].mxu0
  %v2646 = vadd.f32 0.0, %v2645
  %v2647 = vpop.f32.mrb[0].mxu0
  %v2648 = vadd.f32 0.0, %v2647
  %2649 = vdwg.mxu0
  %2650 = vmatprep.subr.mxu0 %v2506
  %2651 = vmatpush1.msra.mxu0 %v2504
  %2652 = vmatprep.subr.mxu0 0.0
  %2653 = vmatpush1.msra.mxu0 0.0
  %2654 = vmatprep.subr.mxu0 0.0
  %2655 = vmatpush1.msra.mxu0 0.0
  %2656 = vmatprep.subr.mxu0 0.0
  %2657 = vmatpush1.msra.mxu0 0.0
  %2658 = vmatprep.subr.mxu0 0.0
  %2659 = vmatpush1.msra.mxu0 0.0
  %2660 = vmatprep.subr.mxu0 0.0
  %2661 = vmatpush1.msra.mxu0 0.0
  %2662 = vmatprep.subr.mxu0 0.0
  %2663 = vmatpush1.msra.mxu0 0.0
  %2664 = vmatprep.subr.mxu0 0.0
  %2665 = vmatpush1.msra.mxu0 0.0
  %2666 = vmatprep.subr.mxu0 0.0
  %2667 = vmatpush1.msra.mxu0 0.0
  %2668 = vmatprep.subr.mxu0 0.0
  %2669 = vmatpush1.msra.mxu0 0.0
  %2670 = vmatprep.subr.mxu0 0.0
  %2671 = vmatpush1.msra.mxu0 0.0
  %2672 = vmatprep.subr.mxu0 0.0
  %2673 = vmatpush1.msra.mxu0 0.0
  %2674 = vmatprep.subr.mxu0 0.0
  %2675 = vmatpush1.msra.mxu0 0.0
  %2676 = vmatprep.subr.mxu0 0.0
  %2677 = vmatpush1.msra.mxu0 0.0
  %2678 = vmatprep.subr.mxu0 0.0
  %2679 = vmatpush1.msra.mxu0 0.0
  %2680 = vmatprep.subr.mxu0 0.0
  %2681 = vmatpush1.msra.mxu0 0.0
  %2682 = vmatprep.subr.mxu0 0.0
  %2683 = vmatpush1.msra.mxu0 0.0
  %2684 = vmatprep.subr.mxu0 0.0
  %2685 = vmatpush1.msra.mxu0 0.0
  %2686 = vmatprep.subr.mxu0 0.0
  %2687 = vmatpush1.msra.mxu0 0.0
  %2688 = vmatprep.subr.mxu0 0.0
  %2689 = vmatpush1.msra.mxu0 0.0
  %2690 = vmatprep.subr.mxu0 0.0
  %2691 = vmatpush1.msra.mxu0 0.0
  %2692 = vmatprep.subr.mxu0 0.0
  %2693 = vmatpush1.msra.mxu0 0.0
  %2694 = vmatprep.subr.mxu0 0.0
  %2695 = vmatpush1.msra.mxu0 0.0
  %2696 = vmatprep.subr.mxu0 0.0
  %2697 = vmatpush1.msra.mxu0 0.0
  %2698 = vmatprep.subr.mxu0 0.0
  %2699 = vmatpush1.msra.mxu0 0.0
  %2700 = vmatprep.subr.mxu0 0.0
  %2701 = vmatpush1.msra.mxu0 0.0
  %2702 = vmatprep.subr.mxu0 0.0
  %2703 = vmatpush1.msra.mxu0 0.0
  %2704 = vmatprep.subr.mxu0 0.0
  %2705 = vmatpush1.msra.mxu0 0.0
  %2706 = vmatprep.subr.mxu0 0.0
  %2707 = vmatpush1.msra.mxu0 0.0
  %2708 = vmatprep.subr.mxu0 0.0
  %2709 = vmatpush1.msra.mxu0 0.0
  %2710 = vmatprep.subr.mxu0 0.0
  %2711 = vmatpush1.msra.mxu0 0.0
  %2712 = vmatprep.subr.mxu0 0.0
  %2713 = vmatpush1.msra.mxu0 0.0
  %2714 = vmatprep.mubr.f32.mxu0 0.0
  %2715 = vmatmul.mubr.f32.gmra.mrb[0].mxu0 %v2494
  %v2716 = vpop.f32.mrb[0].mxu0
  %v2717 = vadd.f32 0.0, %v2716
  %v2718 = vpop.f32.mrb[0].mxu0
  %v2719 = vadd.f32 0.0, %v2718
  %2720 = vdwg.mxu0
  %2721 = vrot.lane.b32.xlu0 %v2465, 19
  %v2722 = vpop.permute.xlu0 %2721
  %2723 = vrot.lane.b32.xlu0 %v2473, 19
  %v2724 = vpop.permute.xlu0 %2723
  %2725 = vrot.lane.b32.xlu0 %v2466, 19
  %v2726 = vpop.permute.xlu0 %2725
  %2727 = vrot.lane.b32.xlu0 %v2474, 19
  %v2728 = vpop.permute.xlu0 %2727
  %2729 = vrot.lane.b32.xlu0 %v2467, 19
  %v2730 = vpop.permute.xlu0 %2729
  %2731 = vrot.lane.b32.xlu0 %v2475, 19
  %v2732 = vpop.permute.xlu0 %2731
  %v2733 = vsel %vm304, %v2722, %v2724
  %v2734 = vsel %vm304, %v2724, %v2726
  %v2735 = vsel %vm304, %v2726, %v2728
  %v2736 = vsel %vm304, %v2728, %v2730
  %v2737 = vsel %vm304, %v2730, %v2732
  %v2739 = vsel %vm62, %v2464, 0
  %v2741 = vsel %vm66, %v2733, 0
  %v2743 = vsel %vm66, %v2734, 0
  %v2745 = vsel %vm66, %v2735, 0
  %v2747 = vsel %vm66, %v2736, 0
  %v2749 = vsel %vm66, %v2737, 0
  %v2751 = vsel %vm66, %v2732, 0
  %2753 = vmatprep.subr.mxu0 %v2743
  %2754 = vmatpush1.msra.mxu0 %v2741
  %2755 = vmatprep.subr.mxu0 0.0
  %2756 = vmatpush1.msra.mxu0 0.0
  %2757 = vmatprep.subr.mxu0 0.0
  %2758 = vmatpush1.msra.mxu0 0.0
  %2759 = vmatprep.subr.mxu0 0.0
  %2760 = vmatpush1.msra.mxu0 0.0
  %2761 = vmatprep.subr.mxu0 0.0
  %2762 = vmatpush1.msra.mxu0 0.0
  %2763 = vmatprep.subr.mxu0 0.0
  %2764 = vmatpush1.msra.mxu0 0.0
  %2765 = vmatprep.subr.mxu0 0.0
  %2766 = vmatpush1.msra.mxu0 0.0
  %2767 = vmatprep.subr.mxu0 0.0
  %2768 = vmatpush1.msra.mxu0 0.0
  %2769 = vmatprep.subr.mxu0 0.0
  %2770 = vmatpush1.msra.mxu0 0.0
  %2771 = vmatprep.subr.mxu0 0.0
  %2772 = vmatpush1.msra.mxu0 0.0
  %2773 = vmatprep.subr.mxu0 0.0
  %2774 = vmatpush1.msra.mxu0 0.0
  %2775 = vmatprep.subr.mxu0 0.0
  %2776 = vmatpush1.msra.mxu0 0.0
  %2777 = vmatprep.subr.mxu0 0.0
  %2778 = vmatpush1.msra.mxu0 0.0
  %2779 = vmatprep.subr.mxu0 0.0
  %2780 = vmatpush1.msra.mxu0 0.0
  %2781 = vmatprep.subr.mxu0 0.0
  %2782 = vmatpush1.msra.mxu0 0.0
  %2783 = vmatprep.subr.mxu0 0.0
  %2784 = vmatpush1.msra.mxu0 0.0
  %2785 = vmatprep.subr.mxu0 0.0
  %2786 = vmatpush1.msra.mxu0 0.0
  %2787 = vmatprep.subr.mxu0 0.0
  %2788 = vmatpush1.msra.mxu0 0.0
  %2789 = vmatprep.subr.mxu0 0.0
  %2790 = vmatpush1.msra.mxu0 0.0
  %2791 = vmatprep.subr.mxu0 0.0
  %2792 = vmatpush1.msra.mxu0 0.0
  %2793 = vmatprep.subr.mxu0 0.0
  %2794 = vmatpush1.msra.mxu0 0.0
  %2795 = vmatprep.subr.mxu0 0.0
  %2796 = vmatpush1.msra.mxu0 0.0
  %2797 = vmatprep.subr.mxu0 0.0
  %2798 = vmatpush1.msra.mxu0 0.0
  %2799 = vmatprep.subr.mxu0 0.0
  %2800 = vmatpush1.msra.mxu0 0.0
  %2801 = vmatprep.subr.mxu0 0.0
  %2802 = vmatpush1.msra.mxu0 0.0
  %2803 = vmatprep.subr.mxu0 0.0
  %2804 = vmatpush1.msra.mxu0 0.0
  %2805 = vmatprep.subr.mxu0 0.0
  %2806 = vmatpush1.msra.mxu0 0.0
  %2807 = vmatprep.subr.mxu0 0.0
  %2808 = vmatpush1.msra.mxu0 0.0
  %2809 = vmatprep.subr.mxu0 0.0
  %2810 = vmatpush1.msra.mxu0 0.0
  %2811 = vmatprep.subr.mxu0 0.0
  %2812 = vmatpush1.msra.mxu0 0.0
  %2813 = vmatprep.subr.mxu0 0.0
  %2814 = vmatpush1.msra.mxu0 0.0
  %2815 = vmatprep.subr.mxu0 0.0
  %2816 = vmatpush1.msra.mxu0 0.0
  %2817 = vmatprep.mubr.f32.mxu0 0.0
  %2818 = vmatmul.mubr.f32.gmra.mrb[0].mxu0 %v2739
  %v2819 = vpop.f32.mrb[0].mxu0
  %v2820 = vadd.f32 %v2575, %v2819
  %v2821 = vpop.f32.mrb[0].mxu0
  %v2822 = vadd.f32 %v2577, %v2821
  %2823 = vdwg.mxu0
  %2824 = vmatprep.subr.mxu0 %v2747
  %2825 = vmatpush1.msra.mxu0 %v2745
  %2826 = vmatprep.subr.mxu0 0.0
  %2827 = vmatpush1.msra.mxu0 0.0
  %2828 = vmatprep.subr.mxu0 0.0
  %2829 = vmatpush1.msra.mxu0 0.0
  %2830 = vmatprep.subr.mxu0 0.0
  %2831 = vmatpush1.msra.mxu0 0.0
  %2832 = vmatprep.subr.mxu0 0.0
  %2833 = vmatpush1.msra.mxu0 0.0
  %2834 = vmatprep.subr.mxu0 0.0
  %2835 = vmatpush1.msra.mxu0 0.0
  %2836 = vmatprep.subr.mxu0 0.0
  %2837 = vmatpush1.msra.mxu0 0.0
  %2838 = vmatprep.subr.mxu0 0.0
  %2839 = vmatpush1.msra.mxu0 0.0
  %2840 = vmatprep.subr.mxu0 0.0
  %2841 = vmatpush1.msra.mxu0 0.0
  %2842 = vmatprep.subr.mxu0 0.0
  %2843 = vmatpush1.msra.mxu0 0.0
  %2844 = vmatprep.subr.mxu0 0.0
  %2845 = vmatpush1.msra.mxu0 0.0
  %2846 = vmatprep.subr.mxu0 0.0
  %2847 = vmatpush1.msra.mxu0 0.0
  %2848 = vmatprep.subr.mxu0 0.0
  %2849 = vmatpush1.msra.mxu0 0.0
  %2850 = vmatprep.subr.mxu0 0.0
  %2851 = vmatpush1.msra.mxu0 0.0
  %2852 = vmatprep.subr.mxu0 0.0
  %2853 = vmatpush1.msra.mxu0 0.0
  %2854 = vmatprep.subr.mxu0 0.0
  %2855 = vmatpush1.msra.mxu0 0.0
  %2856 = vmatprep.subr.mxu0 0.0
  %2857 = vmatpush1.msra.mxu0 0.0
  %2858 = vmatprep.subr.mxu0 0.0
  %2859 = vmatpush1.msra.mxu0 0.0
  %2860 = vmatprep.subr.mxu0 0.0
  %2861 = vmatpush1.msra.mxu0 0.0
  %2862 = vmatprep.subr.mxu0 0.0
  %2863 = vmatpush1.msra.mxu0 0.0
  %2864 = vmatprep.subr.mxu0 0.0
  %2865 = vmatpush1.msra.mxu0 0.0
  %2866 = vmatprep.subr.mxu0 0.0
  %2867 = vmatpush1.msra.mxu0 0.0
  %2868 = vmatprep.subr.mxu0 0.0
  %2869 = vmatpush1.msra.mxu0 0.0
  %2870 = vmatprep.subr.mxu0 0.0
  %2871 = vmatpush1.msra.mxu0 0.0
  %2872 = vmatprep.subr.mxu0 0.0
  %2873 = vmatpush1.msra.mxu0 0.0
  %2874 = vmatprep.subr.mxu0 0.0
  %2875 = vmatpush1.msra.mxu0 0.0
  %2876 = vmatprep.subr.mxu0 0.0
  %2877 = vmatpush1.msra.mxu0 0.0
  %2878 = vmatprep.subr.mxu0 0.0
  %2879 = vmatpush1.msra.mxu0 0.0
  %2880 = vmatprep.subr.mxu0 0.0
  %2881 = vmatpush1.msra.mxu0 0.0
  %2882 = vmatprep.subr.mxu0 0.0
  %2883 = vmatpush1.msra.mxu0 0.0
  %2884 = vmatprep.subr.mxu0 0.0
  %2885 = vmatpush1.msra.mxu0 0.0
  %2886 = vmatprep.subr.mxu0 0.0
  %2887 = vmatpush1.msra.mxu0 0.0
  %2888 = vmatprep.mubr.f32.mxu0 0.0
  %2889 = vmatmul.mubr.f32.gmra.mrb[0].mxu0 %v2739
  %v2890 = vpop.f32.mrb[0].mxu0
  %v2891 = vadd.f32 %v2646, %v2890
  %v2892 = vpop.f32.mrb[0].mxu0
  %v2893 = vadd.f32 %v2648, %v2892
  %2894 = vdwg.mxu0
  %2895 = vmatprep.subr.mxu0 %v2751
  %2896 = vmatpush1.msra.mxu0 %v2749
  %2897 = vmatprep.subr.mxu0 0.0
  %2898 = vmatpush1.msra.mxu0 0.0
  %2899 = vmatprep.subr.mxu0 0.0
  %2900 = vmatpush1.msra.mxu0 0.0
  %2901 = vmatprep.subr.mxu0 0.0
  %2902 = vmatpush1.msra.mxu0 0.0
  %2903 = vmatprep.subr.mxu0 0.0
  %2904 = vmatpush1.msra.mxu0 0.0
  %2905 = vmatprep.subr.mxu0 0.0
  %2906 = vmatpush1.msra.mxu0 0.0
  %2907 = vmatprep.subr.mxu0 0.0
  %2908 = vmatpush1.msra.mxu0 0.0
  %2909 = vmatprep.subr.mxu0 0.0
  %2910 = vmatpush1.msra.mxu0 0.0
  %2911 = vmatprep.subr.mxu0 0.0
  %2912 = vmatpush1.msra.mxu0 0.0
  %2913 = vmatprep.subr.mxu0 0.0
  %2914 = vmatpush1.msra.mxu0 0.0
  %2915 = vmatprep.subr.mxu0 0.0
  %2916 = vmatpush1.msra.mxu0 0.0
  %2917 = vmatprep.subr.mxu0 0.0
  %2918 = vmatpush1.msra.mxu0 0.0
  %2919 = vmatprep.subr.mxu0 0.0
  %2920 = vmatpush1.msra.mxu0 0.0
  %2921 = vmatprep.subr.mxu0 0.0
  %2922 = vmatpush1.msra.mxu0 0.0
  %2923 = vmatprep.subr.mxu0 0.0
  %2924 = vmatpush1.msra.mxu0 0.0
  %2925 = vmatprep.subr.mxu0 0.0
  %2926 = vmatpush1.msra.mxu0 0.0
  %2927 = vmatprep.subr.mxu0 0.0
  %2928 = vmatpush1.msra.mxu0 0.0
  %2929 = vmatprep.subr.mxu0 0.0
  %2930 = vmatpush1.msra.mxu0 0.0
  %2931 = vmatprep.subr.mxu0 0.0
  %2932 = vmatpush1.msra.mxu0 0.0
  %2933 = vmatprep.subr.mxu0 0.0
  %2934 = vmatpush1.msra.mxu0 0.0
  %2935 = vmatprep.subr.mxu0 0.0
  %2936 = vmatpush1.msra.mxu0 0.0
  %2937 = vmatprep.subr.mxu0 0.0
  %2938 = vmatpush1.msra.mxu0 0.0
  %2939 = vmatprep.subr.mxu0 0.0
  %2940 = vmatpush1.msra.mxu0 0.0
  %2941 = vmatprep.subr.mxu0 0.0
  %2942 = vmatpush1.msra.mxu0 0.0
  %2943 = vmatprep.subr.mxu0 0.0
  %2944 = vmatpush1.msra.mxu0 0.0
  %2945 = vmatprep.subr.mxu0 0.0
  %2946 = vmatpush1.msra.mxu0 0.0
  %2947 = vmatprep.subr.mxu0 0.0
  %2948 = vmatpush1.msra.mxu0 0.0
  %2949 = vmatprep.subr.mxu0 0.0
  %2950 = vmatpush1.msra.mxu0 0.0
  %2951 = vmatprep.subr.mxu0 0.0
  %2952 = vmatpush1.msra.mxu0 0.0
  %2953 = vmatprep.subr.mxu0 0.0
  %2954 = vmatpush1.msra.mxu0 0.0
  %2955 = vmatprep.subr.mxu0 0.0
  %2956 = vmatpush1.msra.mxu0 0.0
  %2957 = vmatprep.subr.mxu0 0.0
  %2958 = vmatpush1.msra.mxu0 0.0
  %2959 = vmatprep.mubr.f32.mxu0 0.0
  %2960 = vmatmul.mubr.f32.gmra.mrb[0].mxu0 %v2739
  %v2961 = vpop.f32.mrb[0].mxu0
  %v2962 = vadd.f32 %v2717, %v2961
  %v2963 = vpop.f32.mrb[0].mxu0
  %v2964 = vadd.f32 %v2719, %v2963
  %2965 = vdwg.mxu0
  %s2966 = scalar_lea.vmem %s2, 8
  %v2967 = vld [vmem:[%s2966] sm:$0xf]
  %v2968 = vld [vmem:[#allocation2] sm:$0xff]
  %v2969 = vld [vmem:[#allocation2 + $0x8] sm:$0xff]
  %v2970 = vld [vmem:[#allocation2 + $0x10] sm:$0xff]
  %v2974 = vcombine.high %v2968, %v2968
  %v2975 = vcombine.high %v2969, %v2969
  %v2976 = vcombine.high %v2970, %v2970
  %2977 = vrot.lane.b32.xlu0 %v2968, 17
  %v2978 = vpop.permute.xlu0 %2977
  %2979 = vrot.lane.b32.xlu0 %v2974, 17
  %v2980 = vpop.permute.xlu0 %2979
  %2981 = vrot.lane.b32.xlu0 %v2969, 17
  %v2982 = vpop.permute.xlu0 %2981
  %2983 = vrot.lane.b32.xlu0 %v2975, 17
  %v2984 = vpop.permute.xlu0 %2983
  %2985 = vrot.lane.b32.xlu0 %v2970, 17
  %v2986 = vpop.permute.xlu0 %2985
  %2987 = vrot.lane.b32.xlu0 %v2976, 17
  %v2988 = vpop.permute.xlu0 %2987
  %v2989 = vsel %vm561, %v2978, %v2980
  %v2990 = vsel %vm561, %v2980, %v2982
  %v2991 = vsel %vm561, %v2982, %v2984
  %v2992 = vsel %vm561, %v2984, %v2986
  %v2993 = vsel %vm561, %v2986, %v2988
  %v2995 = vsel %vm62, %v2967, 0
  %v2997 = vsel %vm66, %v2989, 0
  %v2999 = vsel %vm66, %v2990, 0
  %v3001 = vsel %vm66, %v2991, 0
  %v3003 = vsel %vm66, %v2992, 0
  %v3005 = vsel %vm66, %v2993, 0
  %v3007 = vsel %vm66, %v2988, 0
  %3009 = vmatprep.subr.mxu0 %v2999
  %3010 = vmatpush1.msra.mxu0 %v2997
  %3011 = vmatprep.subr.mxu0 0.0
  %3012 = vmatpush1.msra.mxu0 0.0
  %3013 = vmatprep.subr.mxu0 0.0
  %3014 = vmatpush1.msra.mxu0 0.0
  %3015 = vmatprep.subr.mxu0 0.0
  %3016 = vmatpush1.msra.mxu0 0.0
  %3017 = vmatprep.subr.mxu0 0.0
  %3018 = vmatpush1.msra.mxu0 0.0
  %3019 = vmatprep.subr.mxu0 0.0
  %3020 = vmatpush1.msra.mxu0 0.0
  %3021 = vmatprep.subr.mxu0 0.0
  %3022 = vmatpush1.msra.mxu0 0.0
  %3023 = vmatprep.subr.mxu0 0.0
  %3024 = vmatpush1.msra.mxu0 0.0
  %3025 = vmatprep.subr.mxu0 0.0
  %3026 = vmatpush1.msra.mxu0 0.0
  %3027 = vmatprep.subr.mxu0 0.0
  %3028 = vmatpush1.msra.mxu0 0.0
  %3029 = vmatprep.subr.mxu0 0.0
  %3030 = vmatpush1.msra.mxu0 0.0
  %3031 = vmatprep.subr.mxu0 0.0
  %3032 = vmatpush1.msra.mxu0 0.0
  %3033 = vmatprep.subr.mxu0 0.0
  %3034 = vmatpush1.msra.mxu0 0.0
  %3035 = vmatprep.subr.mxu0 0.0
  %3036 = vmatpush1.msra.mxu0 0.0
  %3037 = vmatprep.subr.mxu0 0.0
  %3038 = vmatpush1.msra.mxu0 0.0
  %3039 = vmatprep.subr.mxu0 0.0
  %3040 = vmatpush1.msra.mxu0 0.0
  %3041 = vmatprep.subr.mxu0 0.0
  %3042 = vmatpush1.msra.mxu0 0.0
  %3043 = vmatprep.subr.mxu0 0.0
  %3044 = vmatpush1.msra.mxu0 0.0
  %3045 = vmatprep.subr.mxu0 0.0
  %3046 = vmatpush1.msra.mxu0 0.0
  %3047 = vmatprep.subr.mxu0 0.0
  %3048 = vmatpush1.msra.mxu0 0.0
  %3049 = vmatprep.subr.mxu0 0.0
  %3050 = vmatpush1.msra.mxu0 0.0
  %3051 = vmatprep.subr.mxu0 0.0
  %3052 = vmatpush1.msra.mxu0 0.0
  %3053 = vmatprep.subr.mxu0 0.0
  %3054 = vmatpush1.msra.mxu0 0.0
  %3055 = vmatprep.subr.mxu0 0.0
  %3056 = vmatpush1.msra.mxu0 0.0
  %3057 = vmatprep.subr.mxu0 0.0
  %3058 = vmatpush1.msra.mxu0 0.0
  %3059 = vmatprep.subr.mxu0 0.0
  %3060 = vmatpush1.msra.mxu0 0.0
  %3061 = vmatprep.subr.mxu0 0.0
  %3062 = vmatpush1.msra.mxu0 0.0
  %3063 = vmatprep.subr.mxu0 0.0
  %3064 = vmatpush1.msra.mxu0 0.0
  %3065 = vmatprep.subr.mxu0 0.0
  %3066 = vmatpush1.msra.mxu0 0.0
  %3067 = vmatprep.subr.mxu0 0.0
  %3068 = vmatpush1.msra.mxu0 0.0
  %3069 = vmatprep.subr.mxu0 0.0
  %3070 = vmatpush1.msra.mxu0 0.0
  %3071 = vmatprep.subr.mxu0 0.0
  %3072 = vmatpush1.msra.mxu0 0.0
  %3073 = vmatprep.mubr.f32.mxu0 0.0
  %3074 = vmatmul.mubr.f32.gmra.mrb[0].mxu0 %v2995
  %v3075 = vpop.f32.mrb[0].mxu0
  %v3076 = vadd.f32 0.0, %v3075
  %v3077 = vpop.f32.mrb[0].mxu0
  %v3078 = vadd.f32 0.0, %v3077
  %3079 = vdwg.mxu0
  %3080 = vmatprep.subr.mxu0 %v3003
  %3081 = vmatpush1.msra.mxu0 %v3001
  %3082 = vmatprep.subr.mxu0 0.0
  %3083 = vmatpush1.msra.mxu0 0.0
  %3084 = vmatprep.subr.mxu0 0.0
  %3085 = vmatpush1.msra.mxu0 0.0
  %3086 = vmatprep.subr.mxu0 0.0
  %3087 = vmatpush1.msra.mxu0 0.0
  %3088 = vmatprep.subr.mxu0 0.0
  %3089 = vmatpush1.msra.mxu0 0.0
  %3090 = vmatprep.subr.mxu0 0.0
  %3091 = vmatpush1.msra.mxu0 0.0
  %3092 = vmatprep.subr.mxu0 0.0
  %3093 = vmatpush1.msra.mxu0 0.0
  %3094 = vmatprep.subr.mxu0 0.0
  %3095 = vmatpush1.msra.mxu0 0.0
  %3096 = vmatprep.subr.mxu0 0.0
  %3097 = vmatpush1.msra.mxu0 0.0
  %3098 = vmatprep.subr.mxu0 0.0
  %3099 = vmatpush1.msra.mxu0 0.0
  %3100 = vmatprep.subr.mxu0 0.0
  %3101 = vmatpush1.msra.mxu0 0.0
  %3102 = vmatprep.subr.mxu0 0.0
  %3103 = vmatpush1.msra.mxu0 0.0
  %3104 = vmatprep.subr.mxu0 0.0
  %3105 = vmatpush1.msra.mxu0 0.0
  %3106 = vmatprep.subr.mxu0 0.0
  %3107 = vmatpush1.msra.mxu0 0.0
  %3108 = vmatprep.subr.mxu0 0.0
  %3109 = vmatpush1.msra.mxu0 0.0
  %3110 = vmatprep.subr.mxu0 0.0
  %3111 = vmatpush1.msra.mxu0 0.0
  %3112 = vmatprep.subr.mxu0 0.0
  %3113 = vmatpush1.msra.mxu0 0.0
  %3114 = vmatprep.subr.mxu0 0.0
  %3115 = vmatpush1.msra.mxu0 0.0
  %3116 = vmatprep.subr.mxu0 0.0
  %3117 = vmatpush1.msra.mxu0 0.0
  %3118 = vmatprep.subr.mxu0 0.0
  %3119 = vmatpush1.msra.mxu0 0.0
  %3120 = vmatprep.subr.mxu0 0.0
  %3121 = vmatpush1.msra.mxu0 0.0
  %3122 = vmatprep.subr.mxu0 0.0
  %3123 = vmatpush1.msra.mxu0 0.0
  %3124 = vmatprep.subr.mxu0 0.0
  %3125 = vmatpush1.msra.mxu0 0.0
  %3126 = vmatprep.subr.mxu0 0.0
  %3127 = vmatpush1.msra.mxu0 0.0
  %3128 = vmatprep.subr.mxu0 0.0
  %3129 = vmatpush1.msra.mxu0 0.0
  %3130 = vmatprep.subr.mxu0 0.0
  %3131 = vmatpush1.msra.mxu0 0.0
  %3132 = vmatprep.subr.mxu0 0.0
  %3133 = vmatpush1.msra.mxu0 0.0
  %3134 = vmatprep.subr.mxu0 0.0
  %3135 = vmatpush1.msra.mxu0 0.0
  %3136 = vmatprep.subr.mxu0 0.0
  %3137 = vmatpush1.msra.mxu0 0.0
  %3138 = vmatprep.subr.mxu0 0.0
  %3139 = vmatpush1.msra.mxu0 0.0
  %3140 = vmatprep.subr.mxu0 0.0
  %3141 = vmatpush1.msra.mxu0 0.0
  %3142 = vmatprep.subr.mxu0 0.0
  %3143 = vmatpush1.msra.mxu0 0.0
  %3144 = vmatprep.mubr.f32.mxu0 0.0
  %3145 = vmatmul.mubr.f32.gmra.mrb[0].mxu0 %v2995
  %v3146 = vpop.f32.mrb[0].mxu0
  %v3147 = vadd.f32 0.0, %v3146
  %v3148 = vpop.f32.mrb[0].mxu0
  %v3149 = vadd.f32 0.0, %v3148
  %3150 = vdwg.mxu0
  %3151 = vmatprep.subr.mxu0 %v3007
  %3152 = vmatpush1.msra.mxu0 %v3005
  %3153 = vmatprep.subr.mxu0 0.0
  %3154 = vmatpush1.msra.mxu0 0.0
  %3155 = vmatprep.subr.mxu0 0.0
  %3156 = vmatpush1.msra.mxu0 0.0
  %3157 = vmatprep.subr.mxu0 0.0
  %3158 = vmatpush1.msra.mxu0 0.0
  %3159 = vmatprep.subr.mxu0 0.0
  %3160 = vmatpush1.msra.mxu0 0.0
  %3161 = vmatprep.subr.mxu0 0.0
  %3162 = vmatpush1.msra.mxu0 0.0
  %3163 = vmatprep.subr.mxu0 0.0
  %3164 = vmatpush1.msra.mxu0 0.0
  %3165 = vmatprep.subr.mxu0 0.0
  %3166 = vmatpush1.msra.mxu0 0.0
  %3167 = vmatprep.subr.mxu0 0.0
  %3168 = vmatpush1.msra.mxu0 0.0
  %3169 = vmatprep.subr.mxu0 0.0
  %3170 = vmatpush1.msra.mxu0 0.0
  %3171 = vmatprep.subr.mxu0 0.0
  %3172 = vmatpush1.msra.mxu0 0.0
  %3173 = vmatprep.subr.mxu0 0.0
  %3174 = vmatpush1.msra.mxu0 0.0
  %3175 = vmatprep.subr.mxu0 0.0
  %3176 = vmatpush1.msra.mxu0 0.0
  %3177 = vmatprep.subr.mxu0 0.0
  %3178 = vmatpush1.msra.mxu0 0.0
  %3179 = vmatprep.subr.mxu0 0.0
  %3180 = vmatpush1.msra.mxu0 0.0
  %3181 = vmatprep.subr.mxu0 0.0
  %3182 = vmatpush1.msra.mxu0 0.0
  %3183 = vmatprep.subr.mxu0 0.0
  %3184 = vmatpush1.msra.mxu0 0.0
  %3185 = vmatprep.subr.mxu0 0.0
  %3186 = vmatpush1.msra.mxu0 0.0
  %3187 = vmatprep.subr.mxu0 0.0
  %3188 = vmatpush1.msra.mxu0 0.0
  %3189 = vmatprep.subr.mxu0 0.0
  %3190 = vmatpush1.msra.mxu0 0.0
  %3191 = vmatprep.subr.mxu0 0.0
  %3192 = vmatpush1.msra.mxu0 0.0
  %3193 = vmatprep.subr.mxu0 0.0
  %3194 = vmatpush1.msra.mxu0 0.0
  %3195 = vmatprep.subr.mxu0 0.0
  %3196 = vmatpush1.msra.mxu0 0.0
  %3197 = vmatprep.subr.mxu0 0.0
  %3198 = vmatpush1.msra.mxu0 0.0
  %3199 = vmatprep.subr.mxu0 0.0
  %3200 = vmatpush1.msra.mxu0 0.0
  %3201 = vmatprep.subr.mxu0 0.0
  %3202 = vmatpush1.msra.mxu0 0.0
  %3203 = vmatprep.subr.mxu0 0.0
  %3204 = vmatpush1.msra.mxu0 0.0
  %3205 = vmatprep.subr.mxu0 0.0
  %3206 = vmatpush1.msra.mxu0 0.0
  %3207 = vmatprep.subr.mxu0 0.0
  %3208 = vmatpush1.msra.mxu0 0.0
  %3209 = vmatprep.subr.mxu0 0.0
  %3210 = vmatpush1.msra.mxu0 0.0
  %3211 = vmatprep.subr.mxu0 0.0
  %3212 = vmatpush1.msra.mxu0 0.0
  %3213 = vmatprep.subr.mxu0 0.0
  %3214 = vmatpush1.msra.mxu0 0.0
  %3215 = vmatprep.mubr.f32.mxu0 0.0
  %3216 = vmatmul.mubr.f32.gmra.mrb[0].mxu0 %v2995
  %v3217 = vpop.f32.mrb[0].mxu0
  %v3218 = vadd.f32 0.0, %v3217
  %v3219 = vpop.f32.mrb[0].mxu0
  %v3220 = vadd.f32 0.0, %v3219
  %3221 = vdwg.mxu0
  %v3222 = vadd.f32 %v2820, %v3076
  %v3223 = vadd.f32 %v2822, %v3078
  %v3224 = vadd.f32 %v2891, %v3147
  %v3225 = vadd.f32 %v2893, %v3149
  %v3226 = vadd.f32 %v2962, %v3218
  %v3227 = vadd.f32 %v2964, %v3220
  %s3228 = scalar_lea.vmem %s2, 12
  %v3229 = vld [vmem:[%s3228] sm:$0xf]
  %v3230 = vld [vmem:[#allocation2] sm:$0xff]
  %v3231 = vld [vmem:[#allocation2 + $0x8] sm:$0xff]
  %v3232 = vld [vmem:[#allocation2 + $0x10] sm:$0xff]
  %v3233 = vld [vmem:[#allocation2 + $0x18] sm:$0xf]
  %v3238 = vcombine.high %v3230, %v3230
  %v3239 = vcombine.high %v3231, %v3231
  %v3240 = vcombine.high %v3232, %v3232
  %3241 = vrot.lane.b32.xlu0 %v3230, 1
  %v3242 = vpop.permute.xlu0 %3241
  %3243 = vrot.lane.b32.xlu0 %v3238, 1
  %v3244 = vpop.permute.xlu0 %3243
  %3245 = vrot.lane.b32.xlu0 %v3231, 1
  %v3246 = vpop.permute.xlu0 %3245
  %3247 = vrot.lane.b32.xlu0 %v3239, 1
  %v3248 = vpop.permute.xlu0 %3247
  %3249 = vrot.lane.b32.xlu0 %v3232, 1
  %v3250 = vpop.permute.xlu0 %3249
  %3251 = vrot.lane.b32.xlu0 %v3240, 1
  %v3252 = vpop.permute.xlu0 %3251
  %3253 = vrot.lane.b32.xlu0 %v3233, 1
  %v3254 = vpop.permute.xlu0 %3253
  %v3255 = vsel %vm828, %v3242, %v3244
  %v3256 = vsel %vm828, %v3244, %v3246
  %v3257 = vsel %vm828, %v3246, %v3248
  %v3258 = vsel %vm828, %v3248, %v3250
  %v3259 = vsel %vm828, %v3250, %v3252
  %v3260 = vsel %vm828, %v3252, %v3254
  %v3262 = vsel %vm62, %v3229, 0
  %v3264 = vsel %vm66, %v3255, 0
  %v3266 = vsel %vm66, %v3256, 0
  %v3268 = vsel %vm66, %v3257, 0
  %v3270 = vsel %vm66, %v3258, 0
  %v3272 = vsel %vm66, %v3259, 0
  %v3274 = vsel %vm66, %v3260, 0
  %3276 = vmatprep.subr.mxu0 %v3266
  %3277 = vmatpush1.msra.mxu0 %v3264
  %3278 = vmatprep.subr.mxu0 0.0
  %3279 = vmatpush1.msra.mxu0 0.0
  %3280 = vmatprep.subr.mxu0 0.0
  %3281 = vmatpush1.msra.mxu0 0.0
  %3282 = vmatprep.subr.mxu0 0.0
  %3283 = vmatpush1.msra.mxu0 0.0
  %3284 = vmatprep.subr.mxu0 0.0
  %3285 = vmatpush1.msra.mxu0 0.0
  %3286 = vmatprep.subr.mxu0 0.0
  %3287 = vmatpush1.msra.mxu0 0.0
  %3288 = vmatprep.subr.mxu0 0.0
  %3289 = vmatpush1.msra.mxu0 0.0
  %3290 = vmatprep.subr.mxu0 0.0
  %3291 = vmatpush1.msra.mxu0 0.0
  %3292 = vmatprep.subr.mxu0 0.0
  %3293 = vmatpush1.msra.mxu0 0.0
  %3294 = vmatprep.subr.mxu0 0.0
  %3295 = vmatpush1.msra.mxu0 0.0
  %3296 = vmatprep.subr.mxu0 0.0
  %3297 = vmatpush1.msra.mxu0 0.0
  %3298 = vmatprep.subr.mxu0 0.0
  %3299 = vmatpush1.msra.mxu0 0.0
  %3300 = vmatprep.subr.mxu0 0.0
  %3301 = vmatpush1.msra.mxu0 0.0
  %3302 = vmatprep.subr.mxu0 0.0
  %3303 = vmatpush1.msra.mxu0 0.0
  %3304 = vmatprep.subr.mxu0 0.0
  %3305 = vmatpush1.msra.mxu0 0.0
  %3306 = vmatprep.subr.mxu0 0.0
  %3307 = vmatpush1.msra.mxu0 0.0
  %3308 = vmatprep.subr.mxu0 0.0
  %3309 = vmatpush1.msra.mxu0 0.0
  %3310 = vmatprep.subr.mxu0 0.0
  %3311 = vmatpush1.msra.mxu0 0.0
  %3312 = vmatprep.subr.mxu0 0.0
  %3313 = vmatpush1.msra.mxu0 0.0
  %3314 = vmatprep.subr.mxu0 0.0
  %3315 = vmatpush1.msra.mxu0 0.0
  %3316 = vmatprep.subr.mxu0 0.0
  %3317 = vmatpush1.msra.mxu0 0.0
  %3318 = vmatprep.subr.mxu0 0.0
  %3319 = vmatpush1.msra.mxu0 0.0
  %3320 = vmatprep.subr.mxu0 0.0
  %3321 = vmatpush1.msra.mxu0 0.0
  %3322 = vmatprep.subr.mxu0 0.0
  %3323 = vmatpush1.msra.mxu0 0.0
  %3324 = vmatprep.subr.mxu0 0.0
  %3325 = vmatpush1.msra.mxu0 0.0
  %3326 = vmatprep.subr.mxu0 0.0
  %3327 = vmatpush1.msra.mxu0 0.0
  %3328 = vmatprep.subr.mxu0 0.0
  %3329 = vmatpush1.msra.mxu0 0.0
  %3330 = vmatprep.subr.mxu0 0.0
  %3331 = vmatpush1.msra.mxu0 0.0
  %3332 = vmatprep.subr.mxu0 0.0
  %3333 = vmatpush1.msra.mxu0 0.0
  %3334 = vmatprep.subr.mxu0 0.0
  %3335 = vmatpush1.msra.mxu0 0.0
  %3336 = vmatprep.subr.mxu0 0.0
  %3337 = vmatpush1.msra.mxu0 0.0
  %3338 = vmatprep.subr.mxu0 0.0
  %3339 = vmatpush1.msra.mxu0 0.0
  %3340 = vmatprep.mubr.f32.mxu0 0.0
  %3341 = vmatmul.mubr.f32.gmra.mrb[0].mxu0 %v3262
  %v3342 = vpop.f32.mrb[0].mxu0
  %v3343 = vadd.f32 0.0, %v3342
  %v3344 = vpop.f32.mrb[0].mxu0
  %v3345 = vadd.f32 0.0, %v3344
  %3346 = vdwg.mxu0
  %3347 = vmatprep.subr.mxu0 %v3270
  %3348 = vmatpush1.msra.mxu0 %v3268
  %3349 = vmatprep.subr.mxu0 0.0
  %3350 = vmatpush1.msra.mxu0 0.0
  %3351 = vmatprep.subr.mxu0 0.0
  %3352 = vmatpush1.msra.mxu0 0.0
  %3353 = vmatprep.subr.mxu0 0.0
  %3354 = vmatpush1.msra.mxu0 0.0
  %3355 = vmatprep.subr.mxu0 0.0
  %3356 = vmatpush1.msra.mxu0 0.0
  %3357 = vmatprep.subr.mxu0 0.0
  %3358 = vmatpush1.msra.mxu0 0.0
  %3359 = vmatprep.subr.mxu0 0.0
  %3360 = vmatpush1.msra.mxu0 0.0
  %3361 = vmatprep.subr.mxu0 0.0
  %3362 = vmatpush1.msra.mxu0 0.0
  %3363 = vmatprep.subr.mxu0 0.0
  %3364 = vmatpush1.msra.mxu0 0.0
  %3365 = vmatprep.subr.mxu0 0.0
  %3366 = vmatpush1.msra.mxu0 0.0
  %3367 = vmatprep.subr.mxu0 0.0
  %3368 = vmatpush1.msra.mxu0 0.0
  %3369 = vmatprep.subr.mxu0 0.0
  %3370 = vmatpush1.msra.mxu0 0.0
  %3371 = vmatprep.subr.mxu0 0.0
  %3372 = vmatpush1.msra.mxu0 0.0
  %3373 = vmatprep.subr.mxu0 0.0
  %3374 = vmatpush1.msra.mxu0 0.0
  %3375 = vmatprep.subr.mxu0 0.0
  %3376 = vmatpush1.msra.mxu0 0.0
  %3377 = vmatprep.subr.mxu0 0.0
  %3378 = vmatpush1.msra.mxu0 0.0
  %3379 = vmatprep.subr.mxu0 0.0
  %3380 = vmatpush1.msra.mxu0 0.0
  %3381 = vmatprep.subr.mxu0 0.0
  %3382 = vmatpush1.msra.mxu0 0.0
  %3383 = vmatprep.subr.mxu0 0.0
  %3384 = vmatpush1.msra.mxu0 0.0
  %3385 = vmatprep.subr.mxu0 0.0
  %3386 = vmatpush1.msra.mxu0 0.0
  %3387 = vmatprep.subr.mxu0 0.0
  %3388 = vmatpush1.msra.mxu0 0.0
  %3389 = vmatprep.subr.mxu0 0.0
  %3390 = vmatpush1.msra.mxu0 0.0
  %3391 = vmatprep.subr.mxu0 0.0
  %3392 = vmatpush1.msra.mxu0 0.0
  %3393 = vmatprep.subr.mxu0 0.0
  %3394 = vmatpush1.msra.mxu0 0.0
  %3395 = vmatprep.subr.mxu0 0.0
  %3396 = vmatpush1.msra.mxu0 0.0
  %3397 = vmatprep.subr.mxu0 0.0
  %3398 = vmatpush1.msra.mxu0 0.0
  %3399 = vmatprep.subr.mxu0 0.0
  %3400 = vmatpush1.msra.mxu0 0.0
  %3401 = vmatprep.subr.mxu0 0.0
  %3402 = vmatpush1.msra.mxu0 0.0
  %3403 = vmatprep.subr.mxu0 0.0
  %3404 = vmatpush1.msra.mxu0 0.0
  %3405 = vmatprep.subr.mxu0 0.0
  %3406 = vmatpush1.msra.mxu0 0.0
  %3407 = vmatprep.subr.mxu0 0.0
  %3408 = vmatpush1.msra.mxu0 0.0
  %3409 = vmatprep.subr.mxu0 0.0
  %3410 = vmatpush1.msra.mxu0 0.0
  %3411 = vmatprep.mubr.f32.mxu0 0.0
  %3412 = vmatmul.mubr.f32.gmra.mrb[0].mxu0 %v3262
  %v3413 = vpop.f32.mrb[0].mxu0
  %v3414 = vadd.f32 0.0, %v3413
  %v3415 = vpop.f32.mrb[0].mxu0
  %v3416 = vadd.f32 0.0, %v3415
  %3417 = vdwg.mxu0
  %3418 = vmatprep.subr.mxu0 %v3274
  %3419 = vmatpush1.msra.mxu0 %v3272
  %3420 = vmatprep.subr.mxu0 0.0
  %3421 = vmatpush1.msra.mxu0 0.0
  %3422 = vmatprep.subr.mxu0 0.0
  %3423 = vmatpush1.msra.mxu0 0.0
  %3424 = vmatprep.subr.mxu0 0.0
  %3425 = vmatpush1.msra.mxu0 0.0
  %3426 = vmatprep.subr.mxu0 0.0
  %3427 = vmatpush1.msra.mxu0 0.0
  %3428 = vmatprep.subr.mxu0 0.0
  %3429 = vmatpush1.msra.mxu0 0.0
  %3430 = vmatprep.subr.mxu0 0.0
  %3431 = vmatpush1.msra.mxu0 0.0
  %3432 = vmatprep.subr.mxu0 0.0
  %3433 = vmatpush1.msra.mxu0 0.0
  %3434 = vmatprep.subr.mxu0 0.0
  %3435 = vmatpush1.msra.mxu0 0.0
  %3436 = vmatprep.subr.mxu0 0.0
  %3437 = vmatpush1.msra.mxu0 0.0
  %3438 = vmatprep.subr.mxu0 0.0
  %3439 = vmatpush1.msra.mxu0 0.0
  %3440 = vmatprep.subr.mxu0 0.0
  %3441 = vmatpush1.msra.mxu0 0.0
  %3442 = vmatprep.subr.mxu0 0.0
  %3443 = vmatpush1.msra.mxu0 0.0
  %3444 = vmatprep.subr.mxu0 0.0
  %3445 = vmatpush1.msra.mxu0 0.0
  %3446 = vmatprep.subr.mxu0 0.0
  %3447 = vmatpush1.msra.mxu0 0.0
  %3448 = vmatprep.subr.mxu0 0.0
  %3449 = vmatpush1.msra.mxu0 0.0
  %3450 = vmatprep.subr.mxu0 0.0
  %3451 = vmatpush1.msra.mxu0 0.0
  %3452 = vmatprep.subr.mxu0 0.0
  %3453 = vmatpush1.msra.mxu0 0.0
  %3454 = vmatprep.subr.mxu0 0.0
  %3455 = vmatpush1.msra.mxu0 0.0
  %3456 = vmatprep.subr.mxu0 0.0
  %3457 = vmatpush1.msra.mxu0 0.0
  %3458 = vmatprep.subr.mxu0 0.0
  %3459 = vmatpush1.msra.mxu0 0.0
  %3460 = vmatprep.subr.mxu0 0.0
  %3461 = vmatpush1.msra.mxu0 0.0
  %3462 = vmatprep.subr.mxu0 0.0
  %3463 = vmatpush1.msra.mxu0 0.0
  %3464 = vmatprep.subr.mxu0 0.0
  %3465 = vmatpush1.msra.mxu0 0.0
  %3466 = vmatprep.subr.mxu0 0.0
  %3467 = vmatpush1.msra.mxu0 0.0
  %3468 = vmatprep.subr.mxu0 0.0
  %3469 = vmatpush1.msra.mxu0 0.0
  %3470 = vmatprep.subr.mxu0 0.0
  %3471 = vmatpush1.msra.mxu0 0.0
  %3472 = vmatprep.subr.mxu0 0.0
  %3473 = vmatpush1.msra.mxu0 0.0
  %3474 = vmatprep.subr.mxu0 0.0
  %3475 = vmatpush1.msra.mxu0 0.0
  %3476 = vmatprep.subr.mxu0 0.0
  %3477 = vmatpush1.msra.mxu0 0.0
  %3478 = vmatprep.subr.mxu0 0.0
  %3479 = vmatpush1.msra.mxu0 0.0
  %3480 = vmatprep.subr.mxu0 0.0
  %3481 = vmatpush1.msra.mxu0 0.0
  %3482 = vmatprep.mubr.f32.mxu0 0.0
  %3483 = vmatmul.mubr.f32.gmra.mrb[0].mxu0 %v3262
  %v3484 = vpop.f32.mrb[0].mxu0
  %v3485 = vadd.f32 0.0, %v3484
  %v3486 = vpop.f32.mrb[0].mxu0
  %v3487 = vadd.f32 0.0, %v3486
  %3488 = vdwg.mxu0
  %v3489 = vadd.f32 %v3222, %v3343
  %v3490 = vadd.f32 %v3223, %v3345
  %v3491 = vadd.f32 %v3224, %v3414
  %v3492 = vadd.f32 %v3225, %v3416
  %v3493 = vadd.f32 %v3226, %v3485
  %v3494 = vadd.f32 %v3227, %v3487
  %s3495 = scalar_lea.vmem %s2, 16
  %v3496 = vld [vmem:[%s3495] sm:$0xf]
  %v3497 = vld [vmem:[#allocation2 + $0x4] sm:$0xff]
  %v3498 = vld [vmem:[#allocation2 + $0xc] sm:$0xff]
  %v3499 = vld [vmem:[#allocation2 + $0x14] sm:$0xff]
  %v3503 = vcombine.high %v3497, %v3497
  %v3504 = vcombine.high %v3498, %v3498
  %v3505 = vcombine.high %v3499, %v3499
  %v3507 = vsel %vm62, %v3496, 0
  %v3509 = vsel %vm66, %v3497, 0
  %v3511 = vsel %vm66, %v3503, 0
  %v3513 = vsel %vm66, %v3498, 0
  %v3515 = vsel %vm66, %v3504, 0
  %v3517 = vsel %vm66, %v3499, 0
  %v3519 = vsel %vm66, %v3505, 0
  %3521 = vmatprep.subr.mxu0 %v3511
  %3522 = vmatpush1.msra.mxu0 %v3509
  %3523 = vmatprep.subr.mxu0 0.0
  %3524 = vmatpush1.msra.mxu0 0.0
  %3525 = vmatprep.subr.mxu0 0.0
  %3526 = vmatpush1.msra.mxu0 0.0
  %3527 = vmatprep.subr.mxu0 0.0
  %3528 = vmatpush1.msra.mxu0 0.0
  %3529 = vmatprep.subr.mxu0 0.0
  %3530 = vmatpush1.msra.mxu0 0.0
  %3531 = vmatprep.subr.mxu0 0.0
  %3532 = vmatpush1.msra.mxu0 0.0
  %3533 = vmatprep.subr.mxu0 0.0
  %3534 = vmatpush1.msra.mxu0 0.0
  %3535 = vmatprep.subr.mxu0 0.0
  %3536 = vmatpush1.msra.mxu0 0.0
  %3537 = vmatprep.subr.mxu0 0.0
  %3538 = vmatpush1.msra.mxu0 0.0
  %3539 = vmatprep.subr.mxu0 0.0
  %3540 = vmatpush1.msra.mxu0 0.0
  %3541 = vmatprep.subr.mxu0 0.0
  %3542 = vmatpush1.msra.mxu0 0.0
  %3543 = vmatprep.subr.mxu0 0.0
  %3544 = vmatpush1.msra.mxu0 0.0
  %3545 = vmatprep.subr.mxu0 0.0
  %3546 = vmatpush1.msra.mxu0 0.0
  %3547 = vmatprep.subr.mxu0 0.0
  %3548 = vmatpush1.msra.mxu0 0.0
  %3549 = vmatprep.subr.mxu0 0.0
  %3550 = vmatpush1.msra.mxu0 0.0
  %3551 = vmatprep.subr.mxu0 0.0
  %3552 = vmatpush1.msra.mxu0 0.0
  %3553 = vmatprep.subr.mxu0 0.0
  %3554 = vmatpush1.msra.mxu0 0.0
  %3555 = vmatprep.subr.mxu0 0.0
  %3556 = vmatpush1.msra.mxu0 0.0
  %3557 = vmatprep.subr.mxu0 0.0
  %3558 = vmatpush1.msra.mxu0 0.0
  %3559 = vmatprep.subr.mxu0 0.0
  %3560 = vmatpush1.msra.mxu0 0.0
  %3561 = vmatprep.subr.mxu0 0.0
  %3562 = vmatpush1.msra.mxu0 0.0
  %3563 = vmatprep.subr.mxu0 0.0
  %3564 = vmatpush1.msra.mxu0 0.0
  %3565 = vmatprep.subr.mxu0 0.0
  %3566 = vmatpush1.msra.mxu0 0.0
  %3567 = vmatprep.subr.mxu0 0.0
  %3568 = vmatpush1.msra.mxu0 0.0
  %3569 = vmatprep.subr.mxu0 0.0
  %3570 = vmatpush1.msra.mxu0 0.0
  %3571 = vmatprep.subr.mxu0 0.0
  %3572 = vmatpush1.msra.mxu0 0.0
  %3573 = vmatprep.subr.mxu0 0.0
  %3574 = vmatpush1.msra.mxu0 0.0
  %3575 = vmatprep.subr.mxu0 0.0
  %3576 = vmatpush1.msra.mxu0 0.0
  %3577 = vmatprep.subr.mxu0 0.0
  %3578 = vmatpush1.msra.mxu0 0.0
  %3579 = vmatprep.subr.mxu0 0.0
  %3580 = vmatpush1.msra.mxu0 0.0
  %3581 = vmatprep.subr.mxu0 0.0
  %3582 = vmatpush1.msra.mxu0 0.0
  %3583 = vmatprep.subr.mxu0 0.0
  %3584 = vmatpush1.msra.mxu0 0.0
  %3585 = vmatprep.mubr.f32.mxu0 0.0
  %3586 = vmatmul.mubr.f32.gmra.mrb[0].mxu0 %v3507
  %v3587 = vpop.f32.mrb[0].mxu0
  %v3588 = vadd.f32 0.0, %v3587
  %v3589 = vpop.f32.mrb[0].mxu0
  %v3590 = vadd.f32 0.0, %v3589
  %3591 = vdwg.mxu0
  %3592 = vmatprep.subr.mxu0 %v3515
  %3593 = vmatpush1.msra.mxu0 %v3513
  %3594 = vmatprep.subr.mxu0 0.0
  %3595 = vmatpush1.msra.mxu0 0.0
  %3596 = vmatprep.subr.mxu0 0.0
  %3597 = vmatpush1.msra.mxu0 0.0
  %3598 = vmatprep.subr.mxu0 0.0
  %3599 = vmatpush1.msra.mxu0 0.0
  %3600 = vmatprep.subr.mxu0 0.0
  %3601 = vmatpush1.msra.mxu0 0.0
  %3602 = vmatprep.subr.mxu0 0.0
  %3603 = vmatpush1.msra.mxu0 0.0
  %3604 = vmatprep.subr.mxu0 0.0
  %3605 = vmatpush1.msra.mxu0 0.0
  %3606 = vmatprep.subr.mxu0 0.0
  %3607 = vmatpush1.msra.mxu0 0.0
  %3608 = vmatprep.subr.mxu0 0.0
  %3609 = vmatpush1.msra.mxu0 0.0
  %3610 = vmatprep.subr.mxu0 0.0
  %3611 = vmatpush1.msra.mxu0 0.0
  %3612 = vmatprep.subr.mxu0 0.0
  %3613 = vmatpush1.msra.mxu0 0.0
  %3614 = vmatprep.subr.mxu0 0.0
  %3615 = vmatpush1.msra.mxu0 0.0
  %3616 = vmatprep.subr.mxu0 0.0
  %3617 = vmatpush1.msra.mxu0 0.0
  %3618 = vmatprep.subr.mxu0 0.0
  %3619 = vmatpush1.msra.mxu0 0.0
  %3620 = vmatprep.subr.mxu0 0.0
  %3621 = vmatpush1.msra.mxu0 0.0
  %3622 = vmatprep.subr.mxu0 0.0
  %3623 = vmatpush1.msra.mxu0 0.0
  %3624 = vmatprep.subr.mxu0 0.0
  %3625 = vmatpush1.msra.mxu0 0.0
  %3626 = vmatprep.subr.mxu0 0.0
  %3627 = vmatpush1.msra.mxu0 0.0
  %3628 = vmatprep.subr.mxu0 0.0
  %3629 = vmatpush1.msra.mxu0 0.0
  %3630 = vmatprep.subr.mxu0 0.0
  %3631 = vmatpush1.msra.mxu0 0.0
  %3632 = vmatprep.subr.mxu0 0.0
  %3633 = vmatpush1.msra.mxu0 0.0
  %3634 = vmatprep.subr.mxu0 0.0
  %3635 = vmatpush1.msra.mxu0 0.0
  %3636 = vmatprep.subr.mxu0 0.0
  %3637 = vmatpush1.msra.mxu0 0.0
  %3638 = vmatprep.subr.mxu0 0.0
  %3639 = vmatpush1.msra.mxu0 0.0
  %3640 = vmatprep.subr.mxu0 0.0
  %3641 = vmatpush1.msra.mxu0 0.0
  %3642 = vmatprep.subr.mxu0 0.0
  %3643 = vmatpush1.msra.mxu0 0.0
  %3644 = vmatprep.subr.mxu0 0.0
  %3645 = vmatpush1.msra.mxu0 0.0
  %3646 = vmatprep.subr.mxu0 0.0
  %3647 = vmatpush1.msra.mxu0 0.0
  %3648 = vmatprep.subr.mxu0 0.0
  %3649 = vmatpush1.msra.mxu0 0.0
  %3650 = vmatprep.subr.mxu0 0.0
  %3651 = vmatpush1.msra.mxu0 0.0
  %3652 = vmatprep.subr.mxu0 0.0
  %3653 = vmatpush1.msra.mxu0 0.0
  %3654 = vmatprep.subr.mxu0 0.0
  %3655 = vmatpush1.msra.mxu0 0.0
  %3656 = vmatprep.mubr.f32.mxu0 0.0
  %3657 = vmatmul.mubr.f32.gmra.mrb[0].mxu0 %v3507
  %v3658 = vpop.f32.mrb[0].mxu0
  %v3659 = vadd.f32 0.0, %v3658
  %v3660 = vpop.f32.mrb[0].mxu0
  %v3661 = vadd.f32 0.0, %v3660
  %3662 = vdwg.mxu0
  %3663 = vmatprep.subr.mxu0 %v3519
  %3664 = vmatpush1.msra.mxu0 %v3517
  %3665 = vmatprep.subr.mxu0 0.0
  %3666 = vmatpush1.msra.mxu0 0.0
  %3667 = vmatprep.subr.mxu0 0.0
  %3668 = vmatpush1.msra.mxu0 0.0
  %3669 = vmatprep.subr.mxu0 0.0
  %3670 = vmatpush1.msra.mxu0 0.0
  %3671 = vmatprep.subr.mxu0 0.0
  %3672 = vmatpush1.msra.mxu0 0.0
  %3673 = vmatprep.subr.mxu0 0.0
  %3674 = vmatpush1.msra.mxu0 0.0
  %3675 = vmatprep.subr.mxu0 0.0
  %3676 = vmatpush1.msra.mxu0 0.0
  %3677 = vmatprep.subr.mxu0 0.0
  %3678 = vmatpush1.msra.mxu0 0.0
  %3679 = vmatprep.subr.mxu0 0.0
  %3680 = vmatpush1.msra.mxu0 0.0
  %3681 = vmatprep.subr.mxu0 0.0
  %3682 = vmatpush1.msra.mxu0 0.0
  %3683 = vmatprep.subr.mxu0 0.0
  %3684 = vmatpush1.msra.mxu0 0.0
  %3685 = vmatprep.subr.mxu0 0.0
  %3686 = vmatpush1.msra.mxu0 0.0
  %3687 = vmatprep.subr.mxu0 0.0
  %3688 = vmatpush1.msra.mxu0 0.0
  %3689 = vmatprep.subr.mxu0 0.0
  %3690 = vmatpush1.msra.mxu0 0.0
  %3691 = vmatprep.subr.mxu0 0.0
  %3692 = vmatpush1.msra.mxu0 0.0
  %3693 = vmatprep.subr.mxu0 0.0
  %3694 = vmatpush1.msra.mxu0 0.0
  %3695 = vmatprep.subr.mxu0 0.0
  %3696 = vmatpush1.msra.mxu0 0.0
  %3697 = vmatprep.subr.mxu0 0.0
  %3698 = vmatpush1.msra.mxu0 0.0
  %3699 = vmatprep.subr.mxu0 0.0
  %3700 = vmatpush1.msra.mxu0 0.0
  %3701 = vmatprep.subr.mxu0 0.0
  %3702 = vmatpush1.msra.mxu0 0.0
  %3703 = vmatprep.subr.mxu0 0.0
  %3704 = vmatpush1.msra.mxu0 0.0
  %3705 = vmatprep.subr.mxu0 0.0
  %3706 = vmatpush1.msra.mxu0 0.0
  %3707 = vmatprep.subr.mxu0 0.0
  %3708 = vmatpush1.msra.mxu0 0.0
  %3709 = vmatprep.subr.mxu0 0.0
  %3710 = vmatpush1.msra.mxu0 0.0
  %3711 = vmatprep.subr.mxu0 0.0
  %3712 = vmatpush1.msra.mxu0 0.0
  %3713 = vmatprep.subr.mxu0 0.0
  %3714 = vmatpush1.msra.mxu0 0.0
  %3715 = vmatprep.subr.mxu0 0.0
  %3716 = vmatpush1.msra.mxu0 0.0
  %3717 = vmatprep.subr.mxu0 0.0
  %3718 = vmatpush1.msra.mxu0 0.0
  %3719 = vmatprep.subr.mxu0 0.0
  %3720 = vmatpush1.msra.mxu0 0.0
  %3721 = vmatprep.subr.mxu0 0.0
  %3722 = vmatpush1.msra.mxu0 0.0
  %3723 = vmatprep.subr.mxu0 0.0
  %3724 = vmatpush1.msra.mxu0 0.0
  %3725 = vmatprep.subr.mxu0 0.0
  %3726 = vmatpush1.msra.mxu0 0.0
  %3727 = vmatprep.mubr.f32.mxu0 0.0
  %3728 = vmatmul.mubr.f32.gmra.mrb[0].mxu0 %v3507
  %v3729 = vpop.f32.mrb[0].mxu0
  %v3730 = vadd.f32 0.0, %v3729
  %v3731 = vpop.f32.mrb[0].mxu0
  %v3732 = vadd.f32 0.0, %v3731
  %3733 = vdwg.mxu0
  %v3734 = vadd.f32 %v3489, %v3588
  %v3735 = vadd.f32 %v3490, %v3590
  %v3736 = vadd.f32 %v3491, %v3659
  %v3737 = vadd.f32 %v3492, %v3661
  %v3738 = vadd.f32 %v3493, %v3730
  %v3739 = vadd.f32 %v3494, %v3732
  %s3740 = scalar_lea.vmem %s2, 20
  %v3741 = vld [vmem:[%s3740] sm:$0xf]
  %v3742 = vld [vmem:[#allocation2 + $0x4] sm:$0xff]
  %v3743 = vld [vmem:[#allocation2 + $0xc] sm:$0xff]
  %v3744 = vld [vmem:[#allocation2 + $0x14] sm:$0xff]
  %v3748 = vcombine.high %v3742, %v3742
  %v3749 = vcombine.high %v3743, %v3743
  %v3750 = vcombine.high %v3744, %v3744
  %3751 = vrot.lane.b32.xlu0 %v3742, 127
  %v3752 = vpop.permute.xlu0 %3751
  %3753 = vrot.lane.b32.xlu0 %v3748, 127
  %v3754 = vpop.permute.xlu0 %3753
  %3755 = vrot.lane.b32.xlu0 %v3743, 127
  %v3756 = vpop.permute.xlu0 %3755
  %3757 = vrot.lane.b32.xlu0 %v3749, 127
  %v3758 = vpop.permute.xlu0 %3757
  %3759 = vrot.lane.b32.xlu0 %v3744, 127
  %v3760 = vpop.permute.xlu0 %3759
  %3761 = vrot.lane.b32.xlu0 %v3750, 127
  %v3762 = vpop.permute.xlu0 %3761
  %v3763 = vsel %vm1334, %v3752, %v3754
  %v3764 = vsel %vm1334, %v3754, %v3756
  %v3765 = vsel %vm1334, %v3756, %v3758
  %v3766 = vsel %vm1334, %v3758, %v3760
  %v3767 = vsel %vm1334, %v3760, %v3762
  %v3769 = vsel %vm62, %v3741, 0
  %v3771 = vsel %vm66, %v3763, 0
  %v3773 = vsel %vm66, %v3764, 0
  %v3775 = vsel %vm66, %v3765, 0
  %v3777 = vsel %vm66, %v3766, 0
  %v3779 = vsel %vm66, %v3767, 0
  %v3781 = vsel %vm66, %v3762, 0
  %3783 = vmatprep.subr.mxu0 %v3773
  %3784 = vmatpush1.msra.mxu0 %v3771
  %3785 = vmatprep.subr.mxu0 0.0
  %3786 = vmatpush1.msra.mxu0 0.0
  %3787 = vmatprep.subr.mxu0 0.0
  %3788 = vmatpush1.msra.mxu0 0.0
  %3789 = vmatprep.subr.mxu0 0.0
  %3790 = vmatpush1.msra.mxu0 0.0
  %3791 = vmatprep.subr.mxu0 0.0
  %3792 = vmatpush1.msra.mxu0 0.0
  %3793 = vmatprep.subr.mxu0 0.0
  %3794 = vmatpush1.msra.mxu0 0.0
  %3795 = vmatprep.subr.mxu0 0.0
  %3796 = vmatpush1.msra.mxu0 0.0
  %3797 = vmatprep.subr.mxu0 0.0
  %3798 = vmatpush1.msra.mxu0 0.0
  %3799 = vmatprep.subr.mxu0 0.0
  %3800 = vmatpush1.msra.mxu0 0.0
  %3801 = vmatprep.subr.mxu0 0.0
  %3802 = vmatpush1.msra.mxu0 0.0
  %3803 = vmatprep.subr.mxu0 0.0
  %3804 = vmatpush1.msra.mxu0 0.0
  %3805 = vmatprep.subr.mxu0 0.0
  %3806 = vmatpush1.msra.mxu0 0.0
  %3807 = vmatprep.subr.mxu0 0.0
  %3808 = vmatpush1.msra.mxu0 0.0
  %3809 = vmatprep.subr.mxu0 0.0
  %3810 = vmatpush1.msra.mxu0 0.0
  %3811 = vmatprep.subr.mxu0 0.0
  %3812 = vmatpush1.msra.mxu0 0.0
  %3813 = vmatprep.subr.mxu0 0.0
  %3814 = vmatpush1.msra.mxu0 0.0
  %3815 = vmatprep.subr.mxu0 0.0
  %3816 = vmatpush1.msra.mxu0 0.0
  %3817 = vmatprep.subr.mxu0 0.0
  %3818 = vmatpush1.msra.mxu0 0.0
  %3819 = vmatprep.subr.mxu0 0.0
  %3820 = vmatpush1.msra.mxu0 0.0
  %3821 = vmatprep.subr.mxu0 0.0
  %3822 = vmatpush1.msra.mxu0 0.0
  %3823 = vmatprep.subr.mxu0 0.0
  %3824 = vmatpush1.msra.mxu0 0.0
  %3825 = vmatprep.subr.mxu0 0.0
  %3826 = vmatpush1.msra.mxu0 0.0
  %3827 = vmatprep.subr.mxu0 0.0
  %3828 = vmatpush1.msra.mxu0 0.0
  %3829 = vmatprep.subr.mxu0 0.0
  %3830 = vmatpush1.msra.mxu0 0.0
  %3831 = vmatprep.subr.mxu0 0.0
  %3832 = vmatpush1.msra.mxu0 0.0
  %3833 = vmatprep.subr.mxu0 0.0
  %3834 = vmatpush1.msra.mxu0 0.0
  %3835 = vmatprep.subr.mxu0 0.0
  %3836 = vmatpush1.msra.mxu0 0.0
  %3837 = vmatprep.subr.mxu0 0.0
  %3838 = vmatpush1.msra.mxu0 0.0
  %3839 = vmatprep.subr.mxu0 0.0
  %3840 = vmatpush1.msra.mxu0 0.0
  %3841 = vmatprep.subr.mxu0 0.0
  %3842 = vmatpush1.msra.mxu0 0.0
  %3843 = vmatprep.subr.mxu0 0.0
  %3844 = vmatpush1.msra.mxu0 0.0
  %3845 = vmatprep.subr.mxu0 0.0
  %3846 = vmatpush1.msra.mxu0 0.0
  %3847 = vmatprep.mubr.f32.mxu0 0.0
  %3848 = vmatmul.mubr.f32.gmra.mrb[0].mxu0 %v3769
  %v3849 = vpop.f32.mrb[0].mxu0
  %v3850 = vadd.f32 0.0, %v3849
  %v3851 = vpop.f32.mrb[0].mxu0
  %v3852 = vadd.f32 0.0, %v3851
  %3853 = vdwg.mxu0
  %3854 = vmatprep.subr.mxu0 %v3777
  %3855 = vmatpush1.msra.mxu0 %v3775
  %3856 = vmatprep.subr.mxu0 0.0
  %3857 = vmatpush1.msra.mxu0 0.0
  %3858 = vmatprep.subr.mxu0 0.0
  %3859 = vmatpush1.msra.mxu0 0.0
  %3860 = vmatprep.subr.mxu0 0.0
  %3861 = vmatpush1.msra.mxu0 0.0
  %3862 = vmatprep.subr.mxu0 0.0
  %3863 = vmatpush1.msra.mxu0 0.0
  %3864 = vmatprep.subr.mxu0 0.0
  %3865 = vmatpush1.msra.mxu0 0.0
  %3866 = vmatprep.subr.mxu0 0.0
  %3867 = vmatpush1.msra.mxu0 0.0
  %3868 = vmatprep.subr.mxu0 0.0
  %3869 = vmatpush1.msra.mxu0 0.0
  %3870 = vmatprep.subr.mxu0 0.0
  %3871 = vmatpush1.msra.mxu0 0.0
  %3872 = vmatprep.subr.mxu0 0.0
  %3873 = vmatpush1.msra.mxu0 0.0
  %3874 = vmatprep.subr.mxu0 0.0
  %3875 = vmatpush1.msra.mxu0 0.0
  %3876 = vmatprep.subr.mxu0 0.0
  %3877 = vmatpush1.msra.mxu0 0.0
  %3878 = vmatprep.subr.mxu0 0.0
  %3879 = vmatpush1.msra.mxu0 0.0
  %3880 = vmatprep.subr.mxu0 0.0
  %3881 = vmatpush1.msra.mxu0 0.0
  %3882 = vmatprep.subr.mxu0 0.0
  %3883 = vmatpush1.msra.mxu0 0.0
  %3884 = vmatprep.subr.mxu0 0.0
  %3885 = vmatpush1.msra.mxu0 0.0
  %3886 = vmatprep.subr.mxu0 0.0
  %3887 = vmatpush1.msra.mxu0 0.0
  %3888 = vmatprep.subr.mxu0 0.0
  %3889 = vmatpush1.msra.mxu0 0.0
  %3890 = vmatprep.subr.mxu0 0.0
  %3891 = vmatpush1.msra.mxu0 0.0
  %3892 = vmatprep.subr.mxu0 0.0
  %3893 = vmatpush1.msra.mxu0 0.0
  %3894 = vmatprep.subr.mxu0 0.0
  %3895 = vmatpush1.msra.mxu0 0.0
  %3896 = vmatprep.subr.mxu0 0.0
  %3897 = vmatpush1.msra.mxu0 0.0
  %3898 = vmatprep.subr.mxu0 0.0
  %3899 = vmatpush1.msra.mxu0 0.0
  %3900 = vmatprep.subr.mxu0 0.0
  %3901 = vmatpush1.msra.mxu0 0.0
  %3902 = vmatprep.subr.mxu0 0.0
  %3903 = vmatpush1.msra.mxu0 0.0
  %3904 = vmatprep.subr.mxu0 0.0
  %3905 = vmatpush1.msra.mxu0 0.0
  %3906 = vmatprep.subr.mxu0 0.0
  %3907 = vmatpush1.msra.mxu0 0.0
  %3908 = vmatprep.subr.mxu0 0.0
  %3909 = vmatpush1.msra.mxu0 0.0
  %3910 = vmatprep.subr.mxu0 0.0
  %3911 = vmatpush1.msra.mxu0 0.0
  %3912 = vmatprep.subr.mxu0 0.0
  %3913 = vmatpush1.msra.mxu0 0.0
  %3914 = vmatprep.subr.mxu0 0.0
  %3915 = vmatpush1.msra.mxu0 0.0
  %3916 = vmatprep.subr.mxu0 0.0
  %3917 = vmatpush1.msra.mxu0 0.0
  %3918 = vmatprep.mubr.f32.mxu0 0.0
  %3919 = vmatmul.mubr.f32.gmra.mrb[0].mxu0 %v3769
  %v3920 = vpop.f32.mrb[0].mxu0
  %v3921 = vadd.f32 0.0, %v3920
  %v3922 = vpop.f32.mrb[0].mxu0
  %v3923 = vadd.f32 0.0, %v3922
  %3924 = vdwg.mxu0
  %3925 = vmatprep.subr.mxu0 %v3781
  %3926 = vmatpush1.msra.mxu0 %v3779
  %3927 = vmatprep.subr.mxu0 0.0
  %3928 = vmatpush1.msra.mxu0 0.0
  %3929 = vmatprep.subr.mxu0 0.0
  %3930 = vmatpush1.msra.mxu0 0.0
  %3931 = vmatprep.subr.mxu0 0.0
  %3932 = vmatpush1.msra.mxu0 0.0
  %3933 = vmatprep.subr.mxu0 0.0
  %3934 = vmatpush1.msra.mxu0 0.0
  %3935 = vmatprep.subr.mxu0 0.0
  %3936 = vmatpush1.msra.mxu0 0.0
  %3937 = vmatprep.subr.mxu0 0.0
  %3938 = vmatpush1.msra.mxu0 0.0
  %3939 = vmatprep.subr.mxu0 0.0
  %3940 = vmatpush1.msra.mxu0 0.0
  %3941 = vmatprep.subr.mxu0 0.0
  %3942 = vmatpush1.msra.mxu0 0.0
  %3943 = vmatprep.subr.mxu0 0.0
  %3944 = vmatpush1.msra.mxu0 0.0
  %3945 = vmatprep.subr.mxu0 0.0
  %3946 = vmatpush1.msra.mxu0 0.0
  %3947 = vmatprep.subr.mxu0 0.0
  %3948 = vmatpush1.msra.mxu0 0.0
  %3949 = vmatprep.subr.mxu0 0.0
  %3950 = vmatpush1.msra.mxu0 0.0
  %3951 = vmatprep.subr.mxu0 0.0
  %3952 = vmatpush1.msra.mxu0 0.0
  %3953 = vmatprep.subr.mxu0 0.0
  %3954 = vmatpush1.msra.mxu0 0.0
  %3955 = vmatprep.subr.mxu0 0.0
  %3956 = vmatpush1.msra.mxu0 0.0
  %3957 = vmatprep.subr.mxu0 0.0
  %3958 = vmatpush1.msra.mxu0 0.0
  %3959 = vmatprep.subr.mxu0 0.0
  %3960 = vmatpush1.msra.mxu0 0.0
  %3961 = vmatprep.subr.mxu0 0.0
  %3962 = vmatpush1.msra.mxu0 0.0
  %3963 = vmatprep.subr.mxu0 0.0
  %3964 = vmatpush1.msra.mxu0 0.0
  %3965 = vmatprep.subr.mxu0 0.0
  %3966 = vmatpush1.msra.mxu0 0.0
  %3967 = vmatprep.subr.mxu0 0.0
  %3968 = vmatpush1.msra.mxu0 0.0
  %3969 = vmatprep.subr.mxu0 0.0
  %3970 = vmatpush1.msra.mxu0 0.0
  %3971 = vmatprep.subr.mxu0 0.0
  %3972 = vmatpush1.msra.mxu0 0.0
  %3973 = vmatprep.subr.mxu0 0.0
  %3974 = vmatpush1.msra.mxu0 0.0
  %3975 = vmatprep.subr.mxu0 0.0
  %3976 = vmatpush1.msra.mxu0 0.0
  %3977 = vmatprep.subr.mxu0 0.0
  %3978 = vmatpush1.msra.mxu0 0.0
  %3979 = vmatprep.subr.mxu0 0.0
  %3980 = vmatpush1.msra.mxu0 0.0
  %3981 = vmatprep.subr.mxu0 0.0
  %3982 = vmatpush1.msra.mxu0 0.0
  %3983 = vmatprep.subr.mxu0 0.0
  %3984 = vmatpush1.msra.mxu0 0.0
  %3985 = vmatprep.subr.mxu0 0.0
  %3986 = vmatpush1.msra.mxu0 0.0
  %3987 = vmatprep.subr.mxu0 0.0
  %3988 = vmatpush1.msra.mxu0 0.0
  %3989 = vmatprep.mubr.f32.mxu0 0.0
  %3990 = vmatmul.mubr.f32.gmra.mrb[0].mxu0 %v3769
  %v3991 = vpop.f32.mrb[0].mxu0
  %v3992 = vadd.f32 0.0, %v3991
  %v3993 = vpop.f32.mrb[0].mxu0
  %v3994 = vadd.f32 0.0, %v3993
  %3995 = vdwg.mxu0
  %v3996 = vadd.f32 %v3734, %v3850
  %v3997 = vadd.f32 %v3735, %v3852
  %v3998 = vadd.f32 %v3736, %v3921
  %v3999 = vadd.f32 %v3737, %v3923
  %v4000 = vadd.f32 %v3738, %v3992
  %v4001 = vadd.f32 %v3739, %v3994
  %s4002 = scalar_lea.vmem %s2, 24
  %v4003 = vld [vmem:[%s4002] sm:$0xf]
  %v4004 = vld [vmem:[#allocation2 + $0x4] sm:$0xff]
  %v4005 = vld [vmem:[#allocation2 + $0xc] sm:$0xff]
  %v4006 = vld [vmem:[#allocation2 + $0x14] sm:$0xff]
  %v4010 = vcombine.high %v4004, %v4004
  %v4011 = vcombine.high %v4005, %v4005
  %v4012 = vcombine.high %v4006, %v4006
  %4013 = vrot.lane.b32.xlu0 %v4004, 111
  %v4014 = vpop.permute.xlu0 %4013
  %4015 = vrot.lane.b32.xlu0 %v4010, 111
  %v4016 = vpop.permute.xlu0 %4015
  %4017 = vrot.lane.b32.xlu0 %v4005, 111
  %v4018 = vpop.permute.xlu0 %4017
  %4019 = vrot.lane.b32.xlu0 %v4011, 111
  %v4020 = vpop.permute.xlu0 %4019
  %4021 = vrot.lane.b32.xlu0 %v4006, 111
  %v4022 = vpop.permute.xlu0 %4021
  %4023 = vrot.lane.b32.xlu0 %v4012, 111
  %v4024 = vpop.permute.xlu0 %4023
  %v4025 = vsel %vm1597, %v4014, %v4016
  %v4026 = vsel %vm1597, %v4016, %v4018
  %v4027 = vsel %vm1597, %v4018, %v4020
  %v4028 = vsel %vm1597, %v4020, %v4022
  %v4029 = vsel %vm1597, %v4022, %v4024
  %v4031 = vsel %vm62, %v4003, 0
  %v4033 = vsel %vm66, %v4025, 0
  %v4035 = vsel %vm66, %v4026, 0
  %v4037 = vsel %vm66, %v4027, 0
  %v4039 = vsel %vm66, %v4028, 0
  %v4041 = vsel %vm66, %v4029, 0
  %v4043 = vsel %vm66, %v4024, 0
  %4045 = vmatprep.subr.mxu0 %v4035
  %4046 = vmatpush1.msra.mxu0 %v4033
  %4047 = vmatprep.subr.mxu0 0.0
  %4048 = vmatpush1.msra.mxu0 0.0
  %4049 = vmatprep.subr.mxu0 0.0
  %4050 = vmatpush1.msra.mxu0 0.0
  %4051 = vmatprep.subr.mxu0 0.0
  %4052 = vmatpush1.msra.mxu0 0.0
  %4053 = vmatprep.subr.mxu0 0.0
  %4054 = vmatpush1.msra.mxu0 0.0
  %4055 = vmatprep.subr.mxu0 0.0
  %4056 = vmatpush1.msra.mxu0 0.0
  %4057 = vmatprep.subr.mxu0 0.0
  %4058 = vmatpush1.msra.mxu0 0.0
  %4059 = vmatprep.subr.mxu0 0.0
  %4060 = vmatpush1.msra.mxu0 0.0
  %4061 = vmatprep.subr.mxu0 0.0
  %4062 = vmatpush1.msra.mxu0 0.0
  %4063 = vmatprep.subr.mxu0 0.0
  %4064 = vmatpush1.msra.mxu0 0.0
  %4065 = vmatprep.subr.mxu0 0.0
  %4066 = vmatpush1.msra.mxu0 0.0
  %4067 = vmatprep.subr.mxu0 0.0
  %4068 = vmatpush1.msra.mxu0 0.0
  %4069 = vmatprep.subr.mxu0 0.0
  %4070 = vmatpush1.msra.mxu0 0.0
  %4071 = vmatprep.subr.mxu0 0.0
  %4072 = vmatpush1.msra.mxu0 0.0
  %4073 = vmatprep.subr.mxu0 0.0
  %4074 = vmatpush1.msra.mxu0 0.0
  %4075 = vmatprep.subr.mxu0 0.0
  %4076 = vmatpush1.msra.mxu0 0.0
  %4077 = vmatprep.subr.mxu0 0.0
  %4078 = vmatpush1.msra.mxu0 0.0
  %4079 = vmatprep.subr.mxu0 0.0
  %4080 = vmatpush1.msra.mxu0 0.0
  %4081 = vmatprep.subr.mxu0 0.0
  %4082 = vmatpush1.msra.mxu0 0.0
  %4083 = vmatprep.subr.mxu0 0.0
  %4084 = vmatpush1.msra.mxu0 0.0
  %4085 = vmatprep.subr.mxu0 0.0
  %4086 = vmatpush1.msra.mxu0 0.0
  %4087 = vmatprep.subr.mxu0 0.0
  %4088 = vmatpush1.msra.mxu0 0.0
  %4089 = vmatprep.subr.mxu0 0.0
  %4090 = vmatpush1.msra.mxu0 0.0
  %4091 = vmatprep.subr.mxu0 0.0
  %4092 = vmatpush1.msra.mxu0 0.0
  %4093 = vmatprep.subr.mxu0 0.0
  %4094 = vmatpush1.msra.mxu0 0.0
  %4095 = vmatprep.subr.mxu0 0.0
  %4096 = vmatpush1.msra.mxu0 0.0
  %4097 = vmatprep.subr.mxu0 0.0
  %4098 = vmatpush1.msra.mxu0 0.0
  %4099 = vmatprep.subr.mxu0 0.0
  %4100 = vmatpush1.msra.mxu0 0.0
  %4101 = vmatprep.subr.mxu0 0.0
  %4102 = vmatpush1.msra.mxu0 0.0
  %4103 = vmatprep.subr.mxu0 0.0
  %4104 = vmatpush1.msra.mxu0 0.0
  %4105 = vmatprep.subr.mxu0 0.0
  %4106 = vmatpush1.msra.mxu0 0.0
  %4107 = vmatprep.subr.mxu0 0.0
  %4108 = vmatpush1.msra.mxu0 0.0
  %4109 = vmatprep.mubr.f32.mxu0 0.0
  %4110 = vmatmul.mubr.f32.gmra.mrb[0].mxu0 %v4031
  %v4111 = vpop.f32.mrb[0].mxu0
  %v4112 = vadd.f32 0.0, %v4111
  %v4113 = vpop.f32.mrb[0].mxu0
  %v4114 = vadd.f32 0.0, %v4113
  %4115 = vdwg.mxu0
  %4116 = vmatprep.subr.mxu0 %v4039
  %4117 = vmatpush1.msra.mxu0 %v4037
  %4118 = vmatprep.subr.mxu0 0.0
  %4119 = vmatpush1.msra.mxu0 0.0
  %4120 = vmatprep.subr.mxu0 0.0
  %4121 = vmatpush1.msra.mxu0 0.0
  %4122 = vmatprep.subr.mxu0 0.0
  %4123 = vmatpush1.msra.mxu0 0.0
  %4124 = vmatprep.subr.mxu0 0.0
  %4125 = vmatpush1.msra.mxu0 0.0
  %4126 = vmatprep.subr.mxu0 0.0
  %4127 = vmatpush1.msra.mxu0 0.0
  %4128 = vmatprep.subr.mxu0 0.0
  %4129 = vmatpush1.msra.mxu0 0.0
  %4130 = vmatprep.subr.mxu0 0.0
  %4131 = vmatpush1.msra.mxu0 0.0
  %4132 = vmatprep.subr.mxu0 0.0
  %4133 = vmatpush1.msra.mxu0 0.0
  %4134 = vmatprep.subr.mxu0 0.0
  %4135 = vmatpush1.msra.mxu0 0.0
  %4136 = vmatprep.subr.mxu0 0.0
  %4137 = vmatpush1.msra.mxu0 0.0
  %4138 = vmatprep.subr.mxu0 0.0
  %4139 = vmatpush1.msra.mxu0 0.0
  %4140 = vmatprep.subr.mxu0 0.0
  %4141 = vmatpush1.msra.mxu0 0.0
  %4142 = vmatprep.subr.mxu0 0.0
  %4143 = vmatpush1.msra.mxu0 0.0
  %4144 = vmatprep.subr.mxu0 0.0
  %4145 = vmatpush1.msra.mxu0 0.0
  %4146 = vmatprep.subr.mxu0 0.0
  %4147 = vmatpush1.msra.mxu0 0.0
  %4148 = vmatprep.subr.mxu0 0.0
  %4149 = vmatpush1.msra.mxu0 0.0
  %4150 = vmatprep.subr.mxu0 0.0
  %4151 = vmatpush1.msra.mxu0 0.0
  %4152 = vmatprep.subr.mxu0 0.0
  %4153 = vmatpush1.msra.mxu0 0.0
  %4154 = vmatprep.subr.mxu0 0.0
  %4155 = vmatpush1.msra.mxu0 0.0
  %4156 = vmatprep.subr.mxu0 0.0
  %4157 = vmatpush1.msra.mxu0 0.0
  %4158 = vmatprep.subr.mxu0 0.0
  %4159 = vmatpush1.msra.mxu0 0.0
  %4160 = vmatprep.subr.mxu0 0.0
  %4161 = vmatpush1.msra.mxu0 0.0
  %4162 = vmatprep.subr.mxu0 0.0
  %4163 = vmatpush1.msra.mxu0 0.0
  %4164 = vmatprep.subr.mxu0 0.0
  %4165 = vmatpush1.msra.mxu0 0.0
  %4166 = vmatprep.subr.mxu0 0.0
  %4167 = vmatpush1.msra.mxu0 0.0
  %4168 = vmatprep.subr.mxu0 0.0
  %4169 = vmatpush1.msra.mxu0 0.0
  %4170 = vmatprep.subr.mxu0 0.0
  %4171 = vmatpush1.msra.mxu0 0.0
  %4172 = vmatprep.subr.mxu0 0.0
  %4173 = vmatpush1.msra.mxu0 0.0
  %4174 = vmatprep.subr.mxu0 0.0
  %4175 = vmatpush1.msra.mxu0 0.0
  %4176 = vmatprep.subr.mxu0 0.0
  %4177 = vmatpush1.msra.mxu0 0.0
  %4178 = vmatprep.subr.mxu0 0.0
  %4179 = vmatpush1.msra.mxu0 0.0
  %4180 = vmatprep.mubr.f32.mxu0 0.0
  %4181 = vmatmul.mubr.f32.gmra.mrb[0].mxu0 %v4031
  %v4182 = vpop.f32.mrb[0].mxu0
  %v4183 = vadd.f32 0.0, %v4182
  %v4184 = vpop.f32.mrb[0].mxu0
  %v4185 = vadd.f32 0.0, %v4184
  %4186 = vdwg.mxu0
  %4187 = vmatprep.subr.mxu0 %v4043
  %4188 = vmatpush1.msra.mxu0 %v4041
  %4189 = vmatprep.subr.mxu0 0.0
  %4190 = vmatpush1.msra.mxu0 0.0
  %4191 = vmatprep.subr.mxu0 0.0
  %4192 = vmatpush1.msra.mxu0 0.0
  %4193 = vmatprep.subr.mxu0 0.0
  %4194 = vmatpush1.msra.mxu0 0.0
  %4195 = vmatprep.subr.mxu0 0.0
  %4196 = vmatpush1.msra.mxu0 0.0
  %4197 = vmatprep.subr.mxu0 0.0
  %4198 = vmatpush1.msra.mxu0 0.0
  %4199 = vmatprep.subr.mxu0 0.0
  %4200 = vmatpush1.msra.mxu0 0.0
  %4201 = vmatprep.subr.mxu0 0.0
  %4202 = vmatpush1.msra.mxu0 0.0
  %4203 = vmatprep.subr.mxu0 0.0
  %4204 = vmatpush1.msra.mxu0 0.0
  %4205 = vmatprep.subr.mxu0 0.0
  %4206 = vmatpush1.msra.mxu0 0.0
  %4207 = vmatprep.subr.mxu0 0.0
  %4208 = vmatpush1.msra.mxu0 0.0
  %4209 = vmatprep.subr.mxu0 0.0
  %4210 = vmatpush1.msra.mxu0 0.0
  %4211 = vmatprep.subr.mxu0 0.0
  %4212 = vmatpush1.msra.mxu0 0.0
  %4213 = vmatprep.subr.mxu0 0.0
  %4214 = vmatpush1.msra.mxu0 0.0
  %4215 = vmatprep.subr.mxu0 0.0
  %4216 = vmatpush1.msra.mxu0 0.0
  %4217 = vmatprep.subr.mxu0 0.0
  %4218 = vmatpush1.msra.mxu0 0.0
  %4219 = vmatprep.subr.mxu0 0.0
  %4220 = vmatpush1.msra.mxu0 0.0
  %4221 = vmatprep.subr.mxu0 0.0
  %4222 = vmatpush1.msra.mxu0 0.0
  %4223 = vmatprep.subr.mxu0 0.0
  %4224 = vmatpush1.msra.mxu0 0.0
  %4225 = vmatprep.subr.mxu0 0.0
  %4226 = vmatpush1.msra.mxu0 0.0
  %4227 = vmatprep.subr.mxu0 0.0
  %4228 = vmatpush1.msra.mxu0 0.0
  %4229 = vmatprep.subr.mxu0 0.0
  %4230 = vmatpush1.msra.mxu0 0.0
  %4231 = vmatprep.subr.mxu0 0.0
  %4232 = vmatpush1.msra.mxu0 0.0
  %4233 = vmatprep.subr.mxu0 0.0
  %4234 = vmatpush1.msra.mxu0 0.0
  %4235 = vmatprep.subr.mxu0 0.0
  %4236 = vmatpush1.msra.mxu0 0.0
  %4237 = vmatprep.subr.mxu0 0.0
  %4238 = vmatpush1.msra.mxu0 0.0
  %4239 = vmatprep.subr.mxu0 0.0
  %4240 = vmatpush1.msra.mxu0 0.0
  %4241 = vmatprep.subr.mxu0 0.0
  %4242 = vmatpush1.msra.mxu0 0.0
  %4243 = vmatprep.subr.mxu0 0.0
  %4244 = vmatpush1.msra.mxu0 0.0
  %4245 = vmatprep.subr.mxu0 0.0
  %4246 = vmatpush1.msra.mxu0 0.0
  %4247 = vmatprep.subr.mxu0 0.0
  %4248 = vmatpush1.msra.mxu0 0.0
  %4249 = vmatprep.subr.mxu0 0.0
  %4250 = vmatpush1.msra.mxu0 0.0
  %4251 = vmatprep.mubr.f32.mxu0 0.0
  %4252 = vmatmul.mubr.f32.gmra.mrb[0].mxu0 %v4031
  %v4253 = vpop.f32.mrb[0].mxu0
  %v4254 = vadd.f32 0.0, %v4253
  %v4255 = vpop.f32.mrb[0].mxu0
  %v4256 = vadd.f32 0.0, %v4255
  %4257 = vdwg.mxu0
  %v4258 = vadd.f32 %v3996, %v4112
  %v4259 = vadd.f32 %v3997, %v4114
  %v4260 = vadd.f32 %v3998, %v4183
  %v4261 = vadd.f32 %v3999, %v4185
  %v4262 = vadd.f32 %v4000, %v4254
  %v4263 = vadd.f32 %v4001, %v4256
  %s4264 = scalar_lea.vmem %s2, 28
  %v4265 = vld [vmem:[%s4264] sm:$0xf]
  %v4266 = vld [vmem:[#allocation2 + $0x4] sm:$0xff]
  %v4267 = vld [vmem:[#allocation2 + $0xc] sm:$0xff]
  %v4268 = vld [vmem:[#allocation2 + $0x14] sm:$0xff]
  %v4272 = vcombine.high %v4266, %v4266
  %v4273 = vcombine.high %v4267, %v4267
  %v4274 = vcombine.high %v4268, %v4268
  %4275 = vrot.lane.b32.xlu0 %v4266, 110
  %v4276 = vpop.permute.xlu0 %4275
  %4277 = vrot.lane.b32.xlu0 %v4272, 110
  %v4278 = vpop.permute.xlu0 %4277
  %4279 = vrot.lane.b32.xlu0 %v4267, 110
  %v4280 = vpop.permute.xlu0 %4279
  %4281 = vrot.lane.b32.xlu0 %v4273, 110
  %v4282 = vpop.permute.xlu0 %4281
  %4283 = vrot.lane.b32.xlu0 %v4268, 110
  %v4284 = vpop.permute.xlu0 %4283
  %4285 = vrot.lane.b32.xlu0 %v4274, 110
  %v4286 = vpop.permute.xlu0 %4285
  %v4287 = vsel %vm1860, %v4276, %v4278
  %v4288 = vsel %vm1860, %v4278, %v4280
  %v4289 = vsel %vm1860, %v4280, %v4282
  %v4290 = vsel %vm1860, %v4282, %v4284
  %v4291 = vsel %vm1860, %v4284, %v4286
  %v4293 = vsel %vm62, %v4265, 0
  %v4295 = vsel %vm66, %v4287, 0
  %v4297 = vsel %vm66, %v4288, 0
  %v4299 = vsel %vm66, %v4289, 0
  %v4301 = vsel %vm66, %v4290, 0
  %v4303 = vsel %vm66, %v4291, 0
  %v4305 = vsel %vm66, %v4286, 0
  %4307 = vmatprep.subr.mxu0 %v4297
  %4308 = vmatpush1.msra.mxu0 %v4295
  %4309 = vmatprep.subr.mxu0 0.0
  %4310 = vmatpush1.msra.mxu0 0.0
  %4311 = vmatprep.subr.mxu0 0.0
  %4312 = vmatpush1.msra.mxu0 0.0
  %4313 = vmatprep.subr.mxu0 0.0
  %4314 = vmatpush1.msra.mxu0 0.0
  %4315 = vmatprep.subr.mxu0 0.0
  %4316 = vmatpush1.msra.mxu0 0.0
  %4317 = vmatprep.subr.mxu0 0.0
  %4318 = vmatpush1.msra.mxu0 0.0
  %4319 = vmatprep.subr.mxu0 0.0
  %4320 = vmatpush1.msra.mxu0 0.0
  %4321 = vmatprep.subr.mxu0 0.0
  %4322 = vmatpush1.msra.mxu0 0.0
  %4323 = vmatprep.subr.mxu0 0.0
  %4324 = vmatpush1.msra.mxu0 0.0
  %4325 = vmatprep.subr.mxu0 0.0
  %4326 = vmatpush1.msra.mxu0 0.0
  %4327 = vmatprep.subr.mxu0 0.0
  %4328 = vmatpush1.msra.mxu0 0.0
  %4329 = vmatprep.subr.mxu0 0.0
  %4330 = vmatpush1.msra.mxu0 0.0
  %4331 = vmatprep.subr.mxu0 0.0
  %4332 = vmatpush1.msra.mxu0 0.0
  %4333 = vmatprep.subr.mxu0 0.0
  %4334 = vmatpush1.msra.mxu0 0.0
  %4335 = vmatprep.subr.mxu0 0.0
  %4336 = vmatpush1.msra.mxu0 0.0
  %4337 = vmatprep.subr.mxu0 0.0
  %4338 = vmatpush1.msra.mxu0 0.0
  %4339 = vmatprep.subr.mxu0 0.0
  %4340 = vmatpush1.msra.mxu0 0.0
  %4341 = vmatprep.subr.mxu0 0.0
  %4342 = vmatpush1.msra.mxu0 0.0
  %4343 = vmatprep.subr.mxu0 0.0
  %4344 = vmatpush1.msra.mxu0 0.0
  %4345 = vmatprep.subr.mxu0 0.0
  %4346 = vmatpush1.msra.mxu0 0.0
  %4347 = vmatprep.subr.mxu0 0.0
  %4348 = vmatpush1.msra.mxu0 0.0
  %4349 = vmatprep.subr.mxu0 0.0
  %4350 = vmatpush1.msra.mxu0 0.0
  %4351 = vmatprep.subr.mxu0 0.0
  %4352 = vmatpush1.msra.mxu0 0.0
  %4353 = vmatprep.subr.mxu0 0.0
  %4354 = vmatpush1.msra.mxu0 0.0
  %4355 = vmatprep.subr.mxu0 0.0
  %4356 = vmatpush1.msra.mxu0 0.0
  %4357 = vmatprep.subr.mxu0 0.0
  %4358 = vmatpush1.msra.mxu0 0.0
  %4359 = vmatprep.subr.mxu0 0.0
  %4360 = vmatpush1.msra.mxu0 0.0
  %4361 = vmatprep.subr.mxu0 0.0
  %4362 = vmatpush1.msra.mxu0 0.0
  %4363 = vmatprep.subr.mxu0 0.0
  %4364 = vmatpush1.msra.mxu0 0.0
  %4365 = vmatprep.subr.mxu0 0.0
  %4366 = vmatpush1.msra.mxu0 0.0
  %4367 = vmatprep.subr.mxu0 0.0
  %4368 = vmatpush1.msra.mxu0 0.0
  %4369 = vmatprep.subr.mxu0 0.0
  %4370 = vmatpush1.msra.mxu0 0.0
  %4371 = vmatprep.mubr.f32.mxu0 0.0
  %4372 = vmatmul.mubr.f32.gmra.mrb[0].mxu0 %v4293
  %v4373 = vpop.f32.mrb[0].mxu0
  %v4374 = vadd.f32 0.0, %v4373
  %v4375 = vpop.f32.mrb[0].mxu0
  %v4376 = vadd.f32 0.0, %v4375
  %4377 = vdwg.mxu0
  %4378 = vmatprep.subr.mxu0 %v4301
  %4379 = vmatpush1.msra.mxu0 %v4299
  %4380 = vmatprep.subr.mxu0 0.0
  %4381 = vmatpush1.msra.mxu0 0.0
  %4382 = vmatprep.subr.mxu0 0.0
  %4383 = vmatpush1.msra.mxu0 0.0
  %4384 = vmatprep.subr.mxu0 0.0
  %4385 = vmatpush1.msra.mxu0 0.0
  %4386 = vmatprep.subr.mxu0 0.0
  %4387 = vmatpush1.msra.mxu0 0.0
  %4388 = vmatprep.subr.mxu0 0.0
  %4389 = vmatpush1.msra.mxu0 0.0
  %4390 = vmatprep.subr.mxu0 0.0
  %4391 = vmatpush1.msra.mxu0 0.0
  %4392 = vmatprep.subr.mxu0 0.0
  %4393 = vmatpush1.msra.mxu0 0.0
  %4394 = vmatprep.subr.mxu0 0.0
  %4395 = vmatpush1.msra.mxu0 0.0
  %4396 = vmatprep.subr.mxu0 0.0
  %4397 = vmatpush1.msra.mxu0 0.0
  %4398 = vmatprep.subr.mxu0 0.0
  %4399 = vmatpush1.msra.mxu0 0.0
  %4400 = vmatprep.subr.mxu0 0.0
  %4401 = vmatpush1.msra.mxu0 0.0
  %4402 = vmatprep.subr.mxu0 0.0
  %4403 = vmatpush1.msra.mxu0 0.0
  %4404 = vmatprep.subr.mxu0 0.0
  %4405 = vmatpush1.msra.mxu0 0.0
  %4406 = vmatprep.subr.mxu0 0.0
  %4407 = vmatpush1.msra.mxu0 0.0
  %4408 = vmatprep.subr.mxu0 0.0
  %4409 = vmatpush1.msra.mxu0 0.0
  %4410 = vmatprep.subr.mxu0 0.0
  %4411 = vmatpush1.msra.mxu0 0.0
  %4412 = vmatprep.subr.mxu0 0.0
  %4413 = vmatpush1.msra.mxu0 0.0
  %4414 = vmatprep.subr.mxu0 0.0
  %4415 = vmatpush1.msra.mxu0 0.0
  %4416 = vmatprep.subr.mxu0 0.0
  %4417 = vmatpush1.msra.mxu0 0.0
  %4418 = vmatprep.subr.mxu0 0.0
  %4419 = vmatpush1.msra.mxu0 0.0
  %4420 = vmatprep.subr.mxu0 0.0
  %4421 = vmatpush1.msra.mxu0 0.0
  %4422 = vmatprep.subr.mxu0 0.0
  %4423 = vmatpush1.msra.mxu0 0.0
  %4424 = vmatprep.subr.mxu0 0.0
  %4425 = vmatpush1.msra.mxu0 0.0
  %4426 = vmatprep.subr.mxu0 0.0
  %4427 = vmatpush1.msra.mxu0 0.0
  %4428 = vmatprep.subr.mxu0 0.0
  %4429 = vmatpush1.msra.mxu0 0.0
  %4430 = vmatprep.subr.mxu0 0.0
  %4431 = vmatpush1.msra.mxu0 0.0
  %4432 = vmatprep.subr.mxu0 0.0
  %4433 = vmatpush1.msra.mxu0 0.0
  %4434 = vmatprep.subr.mxu0 0.0
  %4435 = vmatpush1.msra.mxu0 0.0
  %4436 = vmatprep.subr.mxu0 0.0
  %4437 = vmatpush1.msra.mxu0 0.0
  %4438 = vmatprep.subr.mxu0 0.0
  %4439 = vmatpush1.msra.mxu0 0.0
  %4440 = vmatprep.subr.mxu0 0.0
  %4441 = vmatpush1.msra.mxu0 0.0
  %4442 = vmatprep.mubr.f32.mxu0 0.0
  %4443 = vmatmul.mubr.f32.gmra.mrb[0].mxu0 %v4293
  %v4444 = vpop.f32.mrb[0].mxu0
  %v4445 = vadd.f32 0.0, %v4444
  %v4446 = vpop.f32.mrb[0].mxu0
  %v4447 = vadd.f32 0.0, %v4446
  %4448 = vdwg.mxu0
  %4449 = vmatprep.subr.mxu0 %v4305
  %4450 = vmatpush1.msra.mxu0 %v4303
  %4451 = vmatprep.subr.mxu0 0.0
  %4452 = vmatpush1.msra.mxu0 0.0
  %4453 = vmatprep.subr.mxu0 0.0
  %4454 = vmatpush1.msra.mxu0 0.0
  %4455 = vmatprep.subr.mxu0 0.0
  %4456 = vmatpush1.msra.mxu0 0.0
  %4457 = vmatprep.subr.mxu0 0.0
  %4458 = vmatpush1.msra.mxu0 0.0
  %4459 = vmatprep.subr.mxu0 0.0
  %4460 = vmatpush1.msra.mxu0 0.0
  %4461 = vmatprep.subr.mxu0 0.0
  %4462 = vmatpush1.msra.mxu0 0.0
  %4463 = vmatprep.subr.mxu0 0.0
  %4464 = vmatpush1.msra.mxu0 0.0
  %4465 = vmatprep.subr.mxu0 0.0
  %4466 = vmatpush1.msra.mxu0 0.0
  %4467 = vmatprep.subr.mxu0 0.0
  %4468 = vmatpush1.msra.mxu0 0.0
  %4469 = vmatprep.subr.mxu0 0.0
  %4470 = vmatpush1.msra.mxu0 0.0
  %4471 = vmatprep.subr.mxu0 0.0
  %4472 = vmatpush1.msra.mxu0 0.0
  %4473 = vmatprep.subr.mxu0 0.0
  %4474 = vmatpush1.msra.mxu0 0.0
  %4475 = vmatprep.subr.mxu0 0.0
  %4476 = vmatpush1.msra.mxu0 0.0
  %4477 = vmatprep.subr.mxu0 0.0
  %4478 = vmatpush1.msra.mxu0 0.0
  %4479 = vmatprep.subr.mxu0 0.0
  %4480 = vmatpush1.msra.mxu0 0.0
  %4481 = vmatprep.subr.mxu0 0.0
  %4482 = vmatpush1.msra.mxu0 0.0
  %4483 = vmatprep.subr.mxu0 0.0
  %4484 = vmatpush1.msra.mxu0 0.0
  %4485 = vmatprep.subr.mxu0 0.0
  %4486 = vmatpush1.msra.mxu0 0.0
  %4487 = vmatprep.subr.mxu0 0.0
  %4488 = vmatpush1.msra.mxu0 0.0
  %4489 = vmatprep.subr.mxu0 0.0
  %4490 = vmatpush1.msra.mxu0 0.0
  %4491 = vmatprep.subr.mxu0 0.0
  %4492 = vmatpush1.msra.mxu0 0.0
  %4493 = vmatprep.subr.mxu0 0.0
  %4494 = vmatpush1.msra.mxu0 0.0
  %4495 = vmatprep.subr.mxu0 0.0
  %4496 = vmatpush1.msra.mxu0 0.0
  %4497 = vmatprep.subr.mxu0 0.0
  %4498 = vmatpush1.msra.mxu0 0.0
  %4499 = vmatprep.subr.mxu0 0.0
  %4500 = vmatpush1.msra.mxu0 0.0
  %4501 = vmatprep.subr.mxu0 0.0
  %4502 = vmatpush1.msra.mxu0 0.0
  %4503 = vmatprep.subr.mxu0 0.0
  %4504 = vmatpush1.msra.mxu0 0.0
  %4505 = vmatprep.subr.mxu0 0.0
  %4506 = vmatpush1.msra.mxu0 0.0
  %4507 = vmatprep.subr.mxu0 0.0
  %4508 = vmatpush1.msra.mxu0 0.0
  %4509 = vmatprep.subr.mxu0 0.0
  %4510 = vmatpush1.msra.mxu0 0.0
  %4511 = vmatprep.subr.mxu0 0.0
  %4512 = vmatpush1.msra.mxu0 0.0
  %4513 = vmatprep.mubr.f32.mxu0 0.0
  %4514 = vmatmul.mubr.f32.gmra.mrb[0].mxu0 %v4293
  %v4515 = vpop.f32.mrb[0].mxu0
  %v4516 = vadd.f32 0.0, %v4515
  %v4517 = vpop.f32.mrb[0].mxu0
  %v4518 = vadd.f32 0.0, %v4517
  %4519 = vdwg.mxu0
  %v4520 = vadd.f32 %v4258, %v4374
  %v4521 = vadd.f32 %v4259, %v4376
  %v4522 = vadd.f32 %v4260, %v4445
  %v4523 = vadd.f32 %v4261, %v4447
  %v4524 = vadd.f32 %v4262, %v4516
  %v4525 = vadd.f32 %v4263, %v4518
  %s4526 = scalar_lea.vmem %s2, 32
  %v4527 = vld [vmem:[%s4526] sm:$0xf]
  %v4528 = vld [vmem:[#allocation2 + $0x4] sm:$0xff]
  %v4529 = vld [vmem:[#allocation2 + $0xc] sm:$0xff]
  %v4530 = vld [vmem:[#allocation2 + $0x14] sm:$0xff]
  %v4534 = vcombine.high %v4528, %v4528
  %v4535 = vcombine.high %v4529, %v4529
  %v4536 = vcombine.high %v4530, %v4530
  %4537 = vrot.lane.b32.xlu0 %v4528, 109
  %v4538 = vpop.permute.xlu0 %4537
  %4539 = vrot.lane.b32.xlu0 %v4534, 109
  %v4540 = vpop.permute.xlu0 %4539
  %4541 = vrot.lane.b32.xlu0 %v4529, 109
  %v4542 = vpop.permute.xlu0 %4541
  %4543 = vrot.lane.b32.xlu0 %v4535, 109
  %v4544 = vpop.permute.xlu0 %4543
  %4545 = vrot.lane.b32.xlu0 %v4530, 109
  %v4546 = vpop.permute.xlu0 %4545
  %4547 = vrot.lane.b32.xlu0 %v4536, 109
  %v4548 = vpop.permute.xlu0 %4547
  %v4549 = vsel %vm2123, %v4538, %v4540
  %v4550 = vsel %vm2123, %v4540, %v4542
  %v4551 = vsel %vm2123, %v4542, %v4544
  %v4552 = vsel %vm2123, %v4544, %v4546
  %v4553 = vsel %vm2123, %v4546, %v4548
  %v4555 = vsel %vm62, %v4527, 0
  %v4557 = vsel %vm66, %v4549, 0
  %v4559 = vsel %vm66, %v4550, 0
  %v4561 = vsel %vm66, %v4551, 0
  %v4563 = vsel %vm66, %v4552, 0
  %v4565 = vsel %vm66, %v4553, 0
  %v4567 = vsel %vm66, %v4548, 0
  %4569 = vmatprep.subr.mxu0 %v4559
  %4570 = vmatpush1.msra.mxu0 %v4557
  %4571 = vmatprep.subr.mxu0 0.0
  %4572 = vmatpush1.msra.mxu0 0.0
  %4573 = vmatprep.subr.mxu0 0.0
  %4574 = vmatpush1.msra.mxu0 0.0
  %4575 = vmatprep.subr.mxu0 0.0
  %4576 = vmatpush1.msra.mxu0 0.0
  %4577 = vmatprep.subr.mxu0 0.0
  %4578 = vmatpush1.msra.mxu0 0.0
  %4579 = vmatprep.subr.mxu0 0.0
  %4580 = vmatpush1.msra.mxu0 0.0
  %4581 = vmatprep.subr.mxu0 0.0
  %4582 = vmatpush1.msra.mxu0 0.0
  %4583 = vmatprep.subr.mxu0 0.0
  %4584 = vmatpush1.msra.mxu0 0.0
  %4585 = vmatprep.subr.mxu0 0.0
  %4586 = vmatpush1.msra.mxu0 0.0
  %4587 = vmatprep.subr.mxu0 0.0
  %4588 = vmatpush1.msra.mxu0 0.0
  %4589 = vmatprep.subr.mxu0 0.0
  %4590 = vmatpush1.msra.mxu0 0.0
  %4591 = vmatprep.subr.mxu0 0.0
  %4592 = vmatpush1.msra.mxu0 0.0
  %4593 = vmatprep.subr.mxu0 0.0
  %4594 = vmatpush1.msra.mxu0 0.0
  %4595 = vmatprep.subr.mxu0 0.0
  %4596 = vmatpush1.msra.mxu0 0.0
  %4597 = vmatprep.subr.mxu0 0.0
  %4598 = vmatpush1.msra.mxu0 0.0
  %4599 = vmatprep.subr.mxu0 0.0
  %4600 = vmatpush1.msra.mxu0 0.0
  %4601 = vmatprep.subr.mxu0 0.0
  %4602 = vmatpush1.msra.mxu0 0.0
  %4603 = vmatprep.subr.mxu0 0.0
  %4604 = vmatpush1.msra.mxu0 0.0
  %4605 = vmatprep.subr.mxu0 0.0
  %4606 = vmatpush1.msra.mxu0 0.0
  %4607 = vmatprep.subr.mxu0 0.0
  %4608 = vmatpush1.msra.mxu0 0.0
  %4609 = vmatprep.subr.mxu0 0.0
  %4610 = vmatpush1.msra.mxu0 0.0
  %4611 = vmatprep.subr.mxu0 0.0
  %4612 = vmatpush1.msra.mxu0 0.0
  %4613 = vmatprep.subr.mxu0 0.0
  %4614 = vmatpush1.msra.mxu0 0.0
  %4615 = vmatprep.subr.mxu0 0.0
  %4616 = vmatpush1.msra.mxu0 0.0
  %4617 = vmatprep.subr.mxu0 0.0
  %4618 = vmatpush1.msra.mxu0 0.0
  %4619 = vmatprep.subr.mxu0 0.0
  %4620 = vmatpush1.msra.mxu0 0.0
  %4621 = vmatprep.subr.mxu0 0.0
  %4622 = vmatpush1.msra.mxu0 0.0
  %4623 = vmatprep.subr.mxu0 0.0
  %4624 = vmatpush1.msra.mxu0 0.0
  %4625 = vmatprep.subr.mxu0 0.0
  %4626 = vmatpush1.msra.mxu0 0.0
  %4627 = vmatprep.subr.mxu0 0.0
  %4628 = vmatpush1.msra.mxu0 0.0
  %4629 = vmatprep.subr.mxu0 0.0
  %4630 = vmatpush1.msra.mxu0 0.0
  %4631 = vmatprep.subr.mxu0 0.0
  %4632 = vmatpush1.msra.mxu0 0.0
  %4633 = vmatprep.mubr.f32.mxu0 0.0
  %4634 = vmatmul.mubr.f32.gmra.mrb[0].mxu0 %v4555
  %v4635 = vpop.f32.mrb[0].mxu0
  %v4636 = vadd.f32 0.0, %v4635
  %v4637 = vpop.f32.mrb[0].mxu0
  %v4638 = vadd.f32 0.0, %v4637
  %4639 = vdwg.mxu0
  %4640 = vmatprep.subr.mxu0 %v4563
  %4641 = vmatpush1.msra.mxu0 %v4561
  %4642 = vmatprep.subr.mxu0 0.0
  %4643 = vmatpush1.msra.mxu0 0.0
  %4644 = vmatprep.subr.mxu0 0.0
  %4645 = vmatpush1.msra.mxu0 0.0
  %4646 = vmatprep.subr.mxu0 0.0
  %4647 = vmatpush1.msra.mxu0 0.0
  %4648 = vmatprep.subr.mxu0 0.0
  %4649 = vmatpush1.msra.mxu0 0.0
  %4650 = vmatprep.subr.mxu0 0.0
  %4651 = vmatpush1.msra.mxu0 0.0
  %4652 = vmatprep.subr.mxu0 0.0
  %4653 = vmatpush1.msra.mxu0 0.0
  %4654 = vmatprep.subr.mxu0 0.0
  %4655 = vmatpush1.msra.mxu0 0.0
  %4656 = vmatprep.subr.mxu0 0.0
  %4657 = vmatpush1.msra.mxu0 0.0
  %4658 = vmatprep.subr.mxu0 0.0
  %4659 = vmatpush1.msra.mxu0 0.0
  %4660 = vmatprep.subr.mxu0 0.0
  %4661 = vmatpush1.msra.mxu0 0.0
  %4662 = vmatprep.subr.mxu0 0.0
  %4663 = vmatpush1.msra.mxu0 0.0
  %4664 = vmatprep.subr.mxu0 0.0
  %4665 = vmatpush1.msra.mxu0 0.0
  %4666 = vmatprep.subr.mxu0 0.0
  %4667 = vmatpush1.msra.mxu0 0.0
  %4668 = vmatprep.subr.mxu0 0.0
  %4669 = vmatpush1.msra.mxu0 0.0
  %4670 = vmatprep.subr.mxu0 0.0
  %4671 = vmatpush1.msra.mxu0 0.0
  %4672 = vmatprep.subr.mxu0 0.0
  %4673 = vmatpush1.msra.mxu0 0.0
  %4674 = vmatprep.subr.mxu0 0.0
  %4675 = vmatpush1.msra.mxu0 0.0
  %4676 = vmatprep.subr.mxu0 0.0
  %4677 = vmatpush1.msra.mxu0 0.0
  %4678 = vmatprep.subr.mxu0 0.0
  %4679 = vmatpush1.msra.mxu0 0.0
  %4680 = vmatprep.subr.mxu0 0.0
  %4681 = vmatpush1.msra.mxu0 0.0
  %4682 = vmatprep.subr.mxu0 0.0
  %4683 = vmatpush1.msra.mxu0 0.0
  %4684 = vmatprep.subr.mxu0 0.0
  %4685 = vmatpush1.msra.mxu0 0.0
  %4686 = vmatprep.subr.mxu0 0.0
  %4687 = vmatpush1.msra.mxu0 0.0
  %4688 = vmatprep.subr.mxu0 0.0
  %4689 = vmatpush1.msra.mxu0 0.0
  %4690 = vmatprep.subr.mxu0 0.0
  %4691 = vmatpush1.msra.mxu0 0.0
  %4692 = vmatprep.subr.mxu0 0.0
  %4693 = vmatpush1.msra.mxu0 0.0
  %4694 = vmatprep.subr.mxu0 0.0
  %4695 = vmatpush1.msra.mxu0 0.0
  %4696 = vmatprep.subr.mxu0 0.0
  %4697 = vmatpush1.msra.mxu0 0.0
  %4698 = vmatprep.subr.mxu0 0.0
  %4699 = vmatpush1.msra.mxu0 0.0
  %4700 = vmatprep.subr.mxu0 0.0
  %4701 = vmatpush1.msra.mxu0 0.0
  %4702 = vmatprep.subr.mxu0 0.0
  %4703 = vmatpush1.msra.mxu0 0.0
  %4704 = vmatprep.mubr.f32.mxu0 0.0
  %4705 = vmatmul.mubr.f32.gmra.mrb[0].mxu0 %v4555
  %v4706 = vpop.f32.mrb[0].mxu0
  %v4707 = vadd.f32 0.0, %v4706
  %v4708 = vpop.f32.mrb[0].mxu0
  %v4709 = vadd.f32 0.0, %v4708
  %4710 = vdwg.mxu0
  %4711 = vmatprep.subr.mxu0 %v4567
  %4712 = vmatpush1.msra.mxu0 %v4565
  %4713 = vmatprep.subr.mxu0 0.0
  %4714 = vmatpush1.msra.mxu0 0.0
  %4715 = vmatprep.subr.mxu0 0.0
  %4716 = vmatpush1.msra.mxu0 0.0
  %4717 = vmatprep.subr.mxu0 0.0
  %4718 = vmatpush1.msra.mxu0 0.0
  %4719 = vmatprep.subr.mxu0 0.0
  %4720 = vmatpush1.msra.mxu0 0.0
  %4721 = vmatprep.subr.mxu0 0.0
  %4722 = vmatpush1.msra.mxu0 0.0
  %4723 = vmatprep.subr.mxu0 0.0
  %4724 = vmatpush1.msra.mxu0 0.0
  %4725 = vmatprep.subr.mxu0 0.0
  %4726 = vmatpush1.msra.mxu0 0.0
  %4727 = vmatprep.subr.mxu0 0.0
  %4728 = vmatpush1.msra.mxu0 0.0
  %4729 = vmatprep.subr.mxu0 0.0
  %4730 = vmatpush1.msra.mxu0 0.0
  %4731 = vmatprep.subr.mxu0 0.0
  %4732 = vmatpush1.msra.mxu0 0.0
  %4733 = vmatprep.subr.mxu0 0.0
  %4734 = vmatpush1.msra.mxu0 0.0
  %4735 = vmatprep.subr.mxu0 0.0
  %4736 = vmatpush1.msra.mxu0 0.0
  %4737 = vmatprep.subr.mxu0 0.0
  %4738 = vmatpush1.msra.mxu0 0.0
  %4739 = vmatprep.subr.mxu0 0.0
  %4740 = vmatpush1.msra.mxu0 0.0
  %4741 = vmatprep.subr.mxu0 0.0
  %4742 = vmatpush1.msra.mxu0 0.0
  %4743 = vmatprep.subr.mxu0 0.0
  %4744 = vmatpush1.msra.mxu0 0.0
  %4745 = vmatprep.subr.mxu0 0.0
  %4746 = vmatpush1.msra.mxu0 0.0
  %4747 = vmatprep.subr.mxu0 0.0
  %4748 = vmatpush1.msra.mxu0 0.0
  %4749 = vmatprep.subr.mxu0 0.0
  %4750 = vmatpush1.msra.mxu0 0.0
  %4751 = vmatprep.subr.mxu0 0.0
  %4752 = vmatpush1.msra.mxu0 0.0
  %4753 = vmatprep.subr.mxu0 0.0
  %4754 = vmatpush1.msra.mxu0 0.0
  %4755 = vmatprep.subr.mxu0 0.0
  %4756 = vmatpush1.msra.mxu0 0.0
  %4757 = vmatprep.subr.mxu0 0.0
  %4758 = vmatpush1.msra.mxu0 0.0
  %4759 = vmatprep.subr.mxu0 0.0
  %4760 = vmatpush1.msra.mxu0 0.0
  %4761 = vmatprep.subr.mxu0 0.0
  %4762 = vmatpush1.msra.mxu0 0.0
  %4763 = vmatprep.subr.mxu0 0.0
  %4764 = vmatpush1.msra.mxu0 0.0
  %4765 = vmatprep.subr.mxu0 0.0
  %4766 = vmatpush1.msra.mxu0 0.0
  %4767 = vmatprep.subr.mxu0 0.0
  %4768 = vmatpush1.msra.mxu0 0.0
  %4769 = vmatprep.subr.mxu0 0.0
  %4770 = vmatpush1.msra.mxu0 0.0
  %4771 = vmatprep.subr.mxu0 0.0
  %4772 = vmatpush1.msra.mxu0 0.0
  %4773 = vmatprep.subr.mxu0 0.0
  %4774 = vmatpush1.msra.mxu0 0.0
  %4775 = vmatprep.mubr.f32.mxu0 0.0
  %4776 = vmatmul.mubr.f32.gmra.mrb[0].mxu0 %v4555
  %v4777 = vpop.f32.mrb[0].mxu0
  %v4778 = vadd.f32 0.0, %v4777
  %v4779 = vpop.f32.mrb[0].mxu0
  %v4780 = vadd.f32 0.0, %v4779
  %4781 = vdwg.mxu0
  %v4782 = vadd.f32 %v4520, %v4636
  %v4783 = vadd.f32 %v4521, %v4638
  %v4784 = vadd.f32 %v4522, %v4707
  %v4785 = vadd.f32 %v4523, %v4709
  %v4786 = vadd.f32 %v4524, %v4778
  %v4787 = vadd.f32 %v4525, %v4780
  %v4788 = vld [vmem:[%s5] sm:$0xf]
  %4790 = vset.pattern.permute.xlu0 0
  %4791 = vperm.xlu0 %4790, %v4788
  %v4792 = vpop.permute.xlu0 %4791
  %v4794 = vmul.f32 %v4782, %v4792
  %v4795 = vmul.f32 %v4783, %v4792
  %v4796 = vmul.f32 %v4784, %v4792
  %v4797 = vmul.f32 %v4785, %v4792
  %v4798 = vmul.f32 %v4786, %v4792
  %v4799 = vmul.f32 %v4787, %v4792
  %v4800 = vld [vmem:[%s6] sm:$0xf]
  %4802 = vset.pattern.permute.xlu0 0
  %4803 = vperm.xlu0 %4802, %v4800
  %v4804 = vpop.permute.xlu0 %4803
  %v4806 = vadd.f32 %v4794, %v4804
  %v4807 = vadd.f32 %v4795, %v4804
  %v4808 = vadd.f32 %v4796, %v4804
  %v4809 = vadd.f32 %v4797, %v4804
  %v4810 = vadd.f32 %v4798, %v4804
  %v4811 = vadd.f32 %v4799, %v4804
  %vm4812 = vcmp.gt.f32.partialorder %v4806, 0.0
  %vm4813 = vcmp.gt.f32.partialorder %v4807, 0.0
  %vm4814 = vcmp.gt.f32.partialorder %v4808, 0.0
  %vm4815 = vcmp.gt.f32.partialorder %v4809, 0.0
  %vm4816 = vcmp.gt.f32.partialorder %v4810, 0.0
  %vm4817 = vcmp.gt.f32.partialorder %v4811, 0.0
  %v4818 = vmul.f32 %v4806, 0.2
  %v4819 = vmul.f32 %v4807, 0.2
  %v4820 = vmul.f32 %v4808, 0.2
  %v4821 = vmul.f32 %v4809, 0.2
  %v4822 = vmul.f32 %v4810, 0.2
  %v4823 = vmul.f32 %v4811, 0.2
  %v4824 = vsel %vm4812, %v4806, %v4818
  %v4825 = vsel %vm4813, %v4807, %v4819
  %v4826 = vsel %vm4814, %v4808, %v4820
  %v4827 = vsel %vm4815, %v4809, %v4821
  %v4828 = vsel %vm4816, %v4810, %v4822
  %v4829 = vsel %vm4817, %v4811, %v4823
  %v4833 = vadd.f32 %v4824, %v29
  %v4834 = vadd.f32 %v4825, %v1074
  %v4835 = vadd.f32 %v4826, %v30
  %v4836 = vadd.f32 %v4827, %v1075
  %v4837 = vadd.f32 %v4828, %v31
  %v4838 = vadd.f32 %v4829, %v1076
  %v4845 = vcombine.low %v4833, %v4834
  %v4846 = vcombine.low %v4835, %v4836
  %v4847 = vcombine.low %v4837, %v4838
  %4851 = vst [vmem:[%s8] sm:$0xff] %v4845
  %4852 = vst [vmem:[%s8 + $0x8] sm:$0xff] %v4846
  %4853 = vst.msk [vmem:[%s8 + $0x10] sm:$0xff] %vm2462, %v4847
  // Predicated region
  $region34: #{resblock_forward.1} parent=0 // pred_check
    _
  $region35: #{resblock_forward.1} parent=0 // pred_check_branch
    %4855 = sbr.rel (0) target = $region37
  $region36: #{resblock_forward.1} parent=0 // pred_region
    _
  $region37: #{resblock_forward.1} parent=0 // pred_fallthru
    _
  // Predicated region
  $region38: #{resblock_forward.1} parent=0 // pred_check
    _
  $region39: #{resblock_forward.1} parent=0 // pred_check_branch
    %4857 = sbr.rel (0) target = $region41
  $region40: #{resblock_forward.1} parent=0 // pred_region
    _
  $region41: #{resblock_forward.1} parent=0 // pred_fallthru
    _

</llo_original>
